<compile_context>
chip_gen: v6e
topology: v6e:2x2x1
jax: 0.10.0
libtpu: 0.0.40
codegen_flags: <defaults>
</compile_context>

<pallas_src>
import math
import jax
import jax.numpy as jnp
from jax import lax
from jax.experimental import pallas as pl
from jax.experimental.pallas import tpu as pltpu

# ----- model hyper-parameters (small, deterministic, synthetic) -------------
B, S, D, H, DFF, VOCAB, NLAYERS = 2, 8, 32, 4, 64, 64, 2
DH = D // H
EPS = 1e-6  # LayerNormalization eps used by the reference tutorial module


def _layer_norm(x, gamma, beta):
    mu = jnp.mean(x, axis=-1, keepdims=True)
    var = jnp.mean((x - mu) ** 2, axis=-1, keepdims=True)
    return gamma * (x - mu) * lax.rsqrt(var + EPS) + beta


# ----------------------------------------------------------------------------
# Single fused kernel: embed-scale + PE -> NLAYERS decoder blocks -> final LN
# -> vocab projection + log_softmax.  Grid is over batch (one program per b).
# ----------------------------------------------------------------------------
def gpt_kernel(emb_ref, pe_ref, amask_ref,
               wqkv_ref, bqkv_ref, wo_ref, bo_ref, ln_ref,
               w1_ref, b1_ref, w2_ref, b2_ref,
               lnf_ref, wp_ref, bp_ref,
               out_ref):
    # ---- embedding scale + positional encoding ----------------------------
    x = emb_ref[0] * jnp.float32(math.sqrt(D)) + pe_ref[...]       # (S, D)
    amask = amask_ref[...]                                         # (S, S) additive

    inv_sqrt_dh = jnp.float32(1.0 / math.sqrt(DH))

    # ---- decoder blocks (static, fully unrolled layer loop) ---------------
    for l in range(NLAYERS):
        ln_l = ln_ref[l]                                           # (4, D)
        g1, be1 = ln_l[0:1, :], ln_l[1:2, :]
        g2, be2 = ln_l[2:3, :], ln_l[3:4, :]

        # masked multi-head self-attention (pre-norm, residual)
        h = _layer_norm(x, g1, be1)                                # (S, D)
        qkv = (jnp.dot(h, wqkv_ref[l], preferred_element_type=jnp.float32)
               + bqkv_ref[l])                                      # (S, 3D)
        q = qkv[:, 0:D]
        k = qkv[:, D:2 * D]
        v = qkv[:, 2 * D:3 * D]

        head_outs = []
        for hh in range(H):                                        # static unroll
            lo, hi = hh * DH, (hh + 1) * DH
            qh, kh, vh = q[:, lo:hi], k[:, lo:hi], v[:, lo:hi]     # (S, DH)
            s = lax.dot_general(qh, kh, (((1,), (1,)), ((), ())),
                                preferred_element_type=jnp.float32)  # (S, S)
            s = s * inv_sqrt_dh + amask
            m = jnp.max(s, axis=-1, keepdims=True)
            p = jnp.exp(s - m)
            p = p * pl.reciprocal(jnp.sum(p, axis=-1, keepdims=True),
                                  approx=True)
            head_outs.append(jnp.dot(p, vh,
                                     preferred_element_type=jnp.float32))
        attn = jnp.concatenate(head_outs, axis=-1)                 # (S, D)
        attn = (jnp.dot(attn, wo_ref[l], preferred_element_type=jnp.float32)
                + bo_ref[l])
        x = x + attn

        # position-wise feed-forward (pre-norm, residual)
        h = _layer_norm(x, g2, be2)
        f = (jnp.dot(h, w1_ref[l], preferred_element_type=jnp.float32)
             + b1_ref[l])
        f = jnp.maximum(f, 0.0)
        f = (jnp.dot(f, w2_ref[l], preferred_element_type=jnp.float32)
             + b2_ref[l])
        x = x + f

    # ---- final LayerNorm + projection + log_softmax ------------------------
    lnf = lnf_ref[...]                                             # (2, D)
    h = _layer_norm(x, lnf[0:1, :], lnf[1:2, :])                   # (S, D)
    logits = (jnp.dot(h, wp_ref[...], preferred_element_type=jnp.float32)
              + bp_ref[...])                                       # (S, VOCAB)
    m = jnp.max(logits, axis=-1, keepdims=True)
    z = logits - m
    lse = jnp.log(jnp.sum(jnp.exp(z), axis=-1, keepdims=True))
    out_ref[...] = z - lse


def gpt_forward(tokens, mask, params):
    # Embedding lookup (gather) stays in plain JAX glue.
    emb = jnp.take(params['emb_table'], tokens, axis=0)            # (B, S, D)
    pe = sinusoidal_pe(S, D)                                       # (S, D)
    # Additive float mask: 0 where attend, -1e9 where masked.
    amask = jnp.where(mask == 0, jnp.float32(-1e9), jnp.float32(0.0))

    args = (emb, pe, amask,
            params['wqkv'], params['bqkv'], params['wo'], params['bo'],
            params['ln'], params['w1'], params['b1'], params['w2'],
            params['b2'], params['lnf'], params['wp'], params['bp'])

    in_specs = [
        pl.BlockSpec((1, S, D), lambda b: (b, 0, 0)),                 # emb
        pl.BlockSpec((S, D), lambda b: (0, 0)),                       # pe
        pl.BlockSpec((S, S), lambda b: (0, 0)),                       # amask
        pl.BlockSpec((NLAYERS, D, 3 * D), lambda b: (0, 0, 0)),       # wqkv
        pl.BlockSpec((NLAYERS, 1, 3 * D), lambda b: (0, 0, 0)),       # bqkv
        pl.BlockSpec((NLAYERS, D, D), lambda b: (0, 0, 0)),           # wo
        pl.BlockSpec((NLAYERS, 1, D), lambda b: (0, 0, 0)),           # bo
        pl.BlockSpec((NLAYERS, 4, D), lambda b: (0, 0, 0)),           # ln params
        pl.BlockSpec((NLAYERS, D, DFF), lambda b: (0, 0, 0)),         # w1
        pl.BlockSpec((NLAYERS, 1, DFF), lambda b: (0, 0, 0)),         # b1
        pl.BlockSpec((NLAYERS, DFF, D), lambda b: (0, 0, 0)),         # w2
        pl.BlockSpec((NLAYERS, 1, D), lambda b: (0, 0, 0)),           # b2
        pl.BlockSpec((2, D), lambda b: (0, 0)),                       # final LN
        pl.BlockSpec((D, VOCAB), lambda b: (0, 0)),                   # wp
        pl.BlockSpec((1, VOCAB), lambda b: (0, 0)),                   # bp
    ]

    out2d = pl.pallas_call(
        gpt_kernel,
        out_shape=jax.ShapeDtypeStruct((B * S, VOCAB), jnp.float32),
        grid=(B,),
        in_specs=in_specs,
        out_specs=pl.BlockSpec((S, VOCAB), lambda b: (b, 0)),
        compiler_params=pltpu.CompilerParams(
            dimension_semantics=("parallel",)),   # v7x: split batch across TCs
    )(*args)
    return out2d.reshape(B, S, VOCAB)


# ----------------------------------------------------------------------------
# Parameter construction (deterministic) — per-layer weights stacked along a
# leading NLAYERS axis, QKV fused, LN params packed.
# ----------------------------------------------------------------------------
def make_params(key):
    def normal(k, shape, scale):
        return (scale * jax.random.normal(k, shape)).astype(jnp.float32)

    keys = jax.random.split(key, 2 + NLAYERS)
    params = {
        'emb_table': normal(keys[0], (VOCAB, D), 1.0),
        'wp': normal(keys[1], (D, VOCAB), 1.0 / math.sqrt(D)),
        'bp': jnp.zeros((1, VOCAB), jnp.float32),
        'lnf': jnp.concatenate([jnp.ones((1, D), jnp.float32),
                                jnp.zeros((1, D), jnp.float32)], axis=0),
    }

    wqkv, bqkv, wo, bo, ln, w1, b1, w2, b2 = ([] for _ in range(9))
    for l in range(NLAYERS):
        kq, kk, kv, ko, k1, k2, _, _ = jax.random.split(keys[2 + l], 8)
        wq = normal(kq, (D, D), 1.0 / math.sqrt(D))
        wk = normal(kk, (D, D), 1.0 / math.sqrt(D))
        wv = normal(kv, (D, D), 1.0 / math.sqrt(D))
        wqkv.append(jnp.concatenate([wq, wk, wv], axis=1))          # (D, 3D)
        bqkv.append(jnp.zeros((1, 3 * D), jnp.float32))
        wo.append(normal(ko, (D, D), 1.0 / math.sqrt(D)))
        bo.append(jnp.zeros((1, D), jnp.float32))
        ln.append(jnp.concatenate([jnp.ones((1, D), jnp.float32),   # g1
                                   jnp.zeros((1, D), jnp.float32),  # be1
                                   jnp.ones((1, D), jnp.float32),   # g2
                                   jnp.zeros((1, D), jnp.float32)], # be2
                                  axis=0))                          # (4, D)
        w1.append(normal(k1, (D, DFF), 1.0 / math.sqrt(D)))
        b1.append(jnp.zeros((1, DFF), jnp.float32))
        w2.append(normal(k2, (DFF, D), 1.0 / math.sqrt(DFF)))
        b2.append(jnp.zeros((1, D), jnp.float32))

    params.update(
        wqkv=jnp.stack(wqkv), bqkv=jnp.stack(bqkv),
        wo=jnp.stack(wo), bo=jnp.stack(bo), ln=jnp.stack(ln),
        w1=jnp.stack(w1), b1=jnp.stack(b1),
        w2=jnp.stack(w2), b2=jnp.stack(b2),
    )
    return params


def sinusoidal_pe(seq_len, d_model):
    pos = jnp.arange(seq_len, dtype=jnp.float32)[:, None]
    i = jnp.arange(0, d_model, 2, dtype=jnp.float32)[None, :]
    div = jnp.exp(-math.log(10000.0) * i / d_model)
    pe = jnp.zeros((seq_len, d_model), jnp.float32)
    pe = pe.at[:, 0::2].set(jnp.sin(pos * div))
    pe = pe.at[:, 1::2].set(jnp.cos(pos * div))
    return pe


if __name__ == "__main__":
    key = jax.random.PRNGKey(0)
    k_tok, k_par = jax.random.split(key)

    tokens = jax.random.randint(k_tok, (B, S), 0, VOCAB, dtype=jnp.int32)
    causal_mask = jnp.tril(jnp.ones((S, S), jnp.int32))   # 1 = attend, 0 = mask
    params = make_params(k_par)

    out = gpt_forward(tokens, causal_mask, params)
    out = jax.block_until_ready(out)
    assert out.shape == (B, S, VOCAB) and out.dtype == jnp.float32
    print("KERNEL_OK")
</pallas_src>

<mosaic_0001>
module attributes {stable_mosaic.version = 11 : i64} {
  func.func @gpt_kernel(%arg0: i32, %arg1: memref<1x8x32xf32, #tpu.memory_space<vmem>>, %arg2: memref<8x32xf32, #tpu.memory_space<vmem>>, %arg3: memref<8x8xf32, #tpu.memory_space<vmem>>, %arg4: memref<2x32x96xf32, #tpu.memory_space<vmem>>, %arg5: memref<2x1x96xf32, #tpu.memory_space<vmem>>, %arg6: memref<2x32x32xf32, #tpu.memory_space<vmem>>, %arg7: memref<2x1x32xf32, #tpu.memory_space<vmem>>, %arg8: memref<2x4x32xf32, #tpu.memory_space<vmem>>, %arg9: memref<2x32x64xf32, #tpu.memory_space<vmem>>, %arg10: memref<2x1x64xf32, #tpu.memory_space<vmem>>, %arg11: memref<2x64x32xf32, #tpu.memory_space<vmem>>, %arg12: memref<2x1x32xf32, #tpu.memory_space<vmem>>, %arg13: memref<2x32xf32, #tpu.memory_space<vmem>>, %arg14: memref<32x64xf32, #tpu.memory_space<vmem>>, %arg15: memref<1x64xf32, #tpu.memory_space<vmem>>, %arg16: memref<8x64xf32, #tpu.memory_space<vmem>>) attributes {dimension_semantics = [#tpu.dimension_semantics<parallel>], iteration_bounds = array<i64: 2>, scalar_prefetch = 0 : i64, scratch_operands = 0 : i64, tpu.core_type = #tpu.core_type<tc>, window_params = [{transform_indices = @transform_0, window_bounds = array<i64: 1, 8, 32>}, {pipeline_mode = #tpu.pipeline_mode<synchronous>, transform_indices = @transform_1, window_bounds = array<i64: 8, 32>}, {pipeline_mode = #tpu.pipeline_mode<synchronous>, transform_indices = @transform_2, window_bounds = array<i64: 8, 8>}, {pipeline_mode = #tpu.pipeline_mode<synchronous>, transform_indices = @transform_3, window_bounds = array<i64: 2, 32, 96>}, {pipeline_mode = #tpu.pipeline_mode<synchronous>, transform_indices = @transform_4, window_bounds = array<i64: 2, 1, 96>}, {pipeline_mode = #tpu.pipeline_mode<synchronous>, transform_indices = @transform_5, window_bounds = array<i64: 2, 32, 32>}, {pipeline_mode = #tpu.pipeline_mode<synchronous>, transform_indices = @transform_6, window_bounds = array<i64: 2, 1, 32>}, {pipeline_mode = #tpu.pipeline_mode<synchronous>, transform_indices = @transform_7, window_bounds = array<i64: 2, 4, 32>}, {pipeline_mode = #tpu.pipeline_mode<synchronous>, transform_indices = @transform_8, window_bounds = array<i64: 2, 32, 64>}, {pipeline_mode = #tpu.pipeline_mode<synchronous>, transform_indices = @transform_9, window_bounds = array<i64: 2, 1, 64>}, {pipeline_mode = #tpu.pipeline_mode<synchronous>, transform_indices = @transform_10, window_bounds = array<i64: 2, 64, 32>}, {pipeline_mode = #tpu.pipeline_mode<synchronous>, transform_indices = @transform_11, window_bounds = array<i64: 2, 1, 32>}, {pipeline_mode = #tpu.pipeline_mode<synchronous>, transform_indices = @transform_12, window_bounds = array<i64: 2, 32>}, {pipeline_mode = #tpu.pipeline_mode<synchronous>, transform_indices = @transform_13, window_bounds = array<i64: 32, 64>}, {pipeline_mode = #tpu.pipeline_mode<synchronous>, transform_indices = @transform_14, window_bounds = array<i64: 1, 64>}, {transform_indices = @transform_15, window_bounds = array<i64: 8, 64>}]} {
    %c0 = arith.constant 0 : index
    %c0_0 = arith.constant 0 : index
    %c0_1 = arith.constant 0 : index
    %0 = vector.load %arg1[%c0, %c0_0, %c0_1] : memref<1x8x32xf32, #tpu.memory_space<vmem>>, vector<1x8x32xf32>
    %1 = vector.shape_cast %0 : vector<1x8x32xf32> to vector<8x32xf32>
    %cst = arith.constant 5.65685415 : f32
    %2 = vector.broadcast %cst : f32 to vector<8x32xf32>
    %3 = arith.mulf %1, %2 : vector<8x32xf32>
    %c0_2 = arith.constant 0 : index
    %c0_3 = arith.constant 0 : index
    %4 = vector.load %arg2[%c0_2, %c0_3] : memref<8x32xf32, #tpu.memory_space<vmem>>, vector<8x32xf32>
    %5 = arith.addf %3, %4 : vector<8x32xf32>
    %c0_4 = arith.constant 0 : index
    %c0_5 = arith.constant 0 : index
    %6 = vector.load %arg3[%c0_4, %c0_5] : memref<8x8xf32, #tpu.memory_space<vmem>>, vector<8x8xf32>
    %c0_6 = arith.constant 0 : index
    %c0_7 = arith.constant 0 : index
    %c0_8 = arith.constant 0 : index
    %7 = vector.load %arg8[%c0_6, %c0_7, %c0_8] : memref<2x4x32xf32, #tpu.memory_space<vmem>>, vector<1x4x32xf32>
    %8 = vector.shape_cast %7 : vector<1x4x32xf32> to vector<4x32xf32>
    %9 = vector.extract_strided_slice %8 {offsets = [0, 0], sizes = [1, 32], strides = [1, 1]} : vector<4x32xf32> to vector<1x32xf32>
    %10 = vector.extract_strided_slice %8 {offsets = [1, 0], sizes = [1, 32], strides = [1, 1]} : vector<4x32xf32> to vector<1x32xf32>
    %11 = vector.extract_strided_slice %8 {offsets = [2, 0], sizes = [1, 32], strides = [1, 1]} : vector<4x32xf32> to vector<1x32xf32>
    %12 = vector.extract_strided_slice %8 {offsets = [3, 0], sizes = [1, 32], strides = [1, 1]} : vector<4x32xf32> to vector<1x32xf32>
    %cst_9 = arith.constant dense<0.000000e+00> : vector<8xf32>
    %13 = vector.multi_reduction <add>, %5, %cst_9 [1] : vector<8x32xf32> to vector<8xf32>
    %14 = vector.shape_cast %13 : vector<8xf32> to vector<8x1xf32>
    %cst_10 = arith.constant 3.200000e+01 : f32
    %15 = vector.broadcast %cst_10 : f32 to vector<8x1xf32>
    %16 = arith.divf %14, %15 : vector<8x1xf32>
    %17 = vector.broadcast %16 : vector<8x1xf32> to vector<8x32xf32>
    %18 = arith.subf %5, %17 : vector<8x32xf32>
    %19 = arith.mulf %18, %18 : vector<8x32xf32>
    %cst_11 = arith.constant dense<0.000000e+00> : vector<8xf32>
    %20 = vector.multi_reduction <add>, %19, %cst_11 [1] : vector<8x32xf32> to vector<8xf32>
    %21 = vector.shape_cast %20 : vector<8xf32> to vector<8x1xf32>
    %cst_12 = arith.constant 3.200000e+01 : f32
    %22 = vector.broadcast %cst_12 : f32 to vector<8x1xf32>
    %23 = arith.divf %21, %22 : vector<8x1xf32>
    %24 = vector.broadcast %16 : vector<8x1xf32> to vector<8x32xf32>
    %25 = arith.subf %5, %24 : vector<8x32xf32>
    %26 = vector.broadcast %9 : vector<1x32xf32> to vector<8x32xf32>
    %27 = arith.mulf %26, %25 : vector<8x32xf32>
    %cst_13 = arith.constant 9.99999997E-7 : f32
    %28 = vector.broadcast %cst_13 : f32 to vector<8x1xf32>
    %29 = arith.addf %23, %28 : vector<8x1xf32>
    %30 = math.rsqrt %29 : vector<8x1xf32>
    %31 = vector.broadcast %30 : vector<8x1xf32> to vector<8x32xf32>
    %32 = arith.mulf %27, %31 : vector<8x32xf32>
    %33 = vector.broadcast %10 : vector<1x32xf32> to vector<8x32xf32>
    %34 = arith.addf %32, %33 : vector<8x32xf32>
    %c0_14 = arith.constant 0 : index
    %c0_15 = arith.constant 0 : index
    %c0_16 = arith.constant 0 : index
    %35 = vector.load %arg4[%c0_14, %c0_15, %c0_16] : memref<2x32x96xf32, #tpu.memory_space<vmem>>, vector<1x32x96xf32>
    %36 = vector.shape_cast %35 : vector<1x32x96xf32> to vector<32x96xf32>
    %cst_17 = arith.constant dense<0.000000e+00> : vector<8x96xf32>
    %37 = tpu.matmul %34, %36, %cst_17 {dimension_numbers = #tpu.dot_dimension_numbers<[1], [0], [0], [1], [0, 0, 1, 1], [], []>} : vector<8x32xf32>, vector<32x96xf32>, vector<8x96xf32> -> vector<8x96xf32>
    %c0_18 = arith.constant 0 : index
    %c0_19 = arith.constant 0 : index
    %c0_20 = arith.constant 0 : index
    %38 = vector.load %arg5[%c0_18, %c0_19, %c0_20] : memref<2x1x96xf32, #tpu.memory_space<vmem>>, vector<1x1x96xf32>
    %39 = vector.shape_cast %38 : vector<1x1x96xf32> to vector<1x96xf32>
    %40 = vector.broadcast %39 : vector<1x96xf32> to vector<8x96xf32>
    %41 = arith.addf %37, %40 : vector<8x96xf32>
    %42 = vector.extract_strided_slice %41 {offsets = [0, 0], sizes = [8, 32], strides = [1, 1]} : vector<8x96xf32> to vector<8x32xf32>
    %43 = vector.extract_strided_slice %41 {offsets = [0, 32], sizes = [8, 32], strides = [1, 1]} : vector<8x96xf32> to vector<8x32xf32>
    %44 = vector.extract_strided_slice %41 {offsets = [0, 64], sizes = [8, 32], strides = [1, 1]} : vector<8x96xf32> to vector<8x32xf32>
    %45 = vector.extract_strided_slice %42 {offsets = [0, 0], sizes = [8, 8], strides = [1, 1]} : vector<8x32xf32> to vector<8x8xf32>
    %46 = vector.extract_strided_slice %43 {offsets = [0, 0], sizes = [8, 8], strides = [1, 1]} : vector<8x32xf32> to vector<8x8xf32>
    %47 = vector.extract_strided_slice %44 {offsets = [0, 0], sizes = [8, 8], strides = [1, 1]} : vector<8x32xf32> to vector<8x8xf32>
    %cst_21 = arith.constant dense<0.000000e+00> : vector<8x8xf32>
    %48 = tpu.matmul %45, %46, %cst_21 {dimension_numbers = #tpu.dot_dimension_numbers<[1], [1], [0], [0], [0, 0, 1, 0], [], []>} : vector<8x8xf32>, vector<8x8xf32>, vector<8x8xf32> -> vector<8x8xf32>
    %cst_22 = arith.constant 0.353553385 : f32
    %49 = vector.broadcast %cst_22 : f32 to vector<8x8xf32>
    %50 = arith.mulf %48, %49 : vector<8x8xf32>
    %51 = arith.addf %50, %6 : vector<8x8xf32>
    %cst_23 = arith.constant dense<0xFF800000> : vector<8xf32>
    %52 = vector.multi_reduction <maximumf>, %51, %cst_23 [1] : vector<8x8xf32> to vector<8xf32>
    %53 = vector.shape_cast %52 : vector<8xf32> to vector<8x1xf32>
    %54 = vector.broadcast %53 : vector<8x1xf32> to vector<8x8xf32>
    %55 = arith.subf %51, %54 : vector<8x8xf32>
    %56 = math.exp %55 : vector<8x8xf32>
    %cst_24 = arith.constant dense<0.000000e+00> : vector<8xf32>
    %57 = vector.multi_reduction <add>, %56, %cst_24 [1] : vector<8x8xf32> to vector<8xf32>
    %58 = vector.shape_cast %57 : vector<8xf32> to vector<8x1xf32>
    %59 = tpu.reciprocal %58 {approx = true} : vector<8x1xf32> -> vector<8x1xf32>
    %60 = vector.broadcast %59 : vector<8x1xf32> to vector<8x8xf32>
    %61 = arith.mulf %56, %60 : vector<8x8xf32>
    %cst_25 = arith.constant dense<0.000000e+00> : vector<8x8xf32>
    %62 = tpu.matmul %61, %47, %cst_25 {dimension_numbers = #tpu.dot_dimension_numbers<[1], [0], [0], [1], [0, 0, 1, 1], [], []>} : vector<8x8xf32>, vector<8x8xf32>, vector<8x8xf32> -> vector<8x8xf32>
    %63 = vector.extract_strided_slice %42 {offsets = [0, 8], sizes = [8, 8], strides = [1, 1]} : vector<8x32xf32> to vector<8x8xf32>
    %64 = vector.extract_strided_slice %43 {offsets = [0, 8], sizes = [8, 8], strides = [1, 1]} : vector<8x32xf32> to vector<8x8xf32>
    %65 = vector.extract_strided_slice %44 {offsets = [0, 8], sizes = [8, 8], strides = [1, 1]} : vector<8x32xf32> to vector<8x8xf32>
    %cst_26 = arith.constant dense<0.000000e+00> : vector<8x8xf32>
    %66 = tpu.matmul %63, %64, %cst_26 {dimension_numbers = #tpu.dot_dimension_numbers<[1], [1], [0], [0], [0, 0, 1, 0], [], []>} : vector<8x8xf32>, vector<8x8xf32>, vector<8x8xf32> -> vector<8x8xf32>
    %cst_27 = arith.constant 0.353553385 : f32
    %67 = vector.broadcast %cst_27 : f32 to vector<8x8xf32>
    %68 = arith.mulf %66, %67 : vector<8x8xf32>
    %69 = arith.addf %68, %6 : vector<8x8xf32>
    %cst_28 = arith.constant dense<0xFF800000> : vector<8xf32>
    %70 = vector.multi_reduction <maximumf>, %69, %cst_28 [1] : vector<8x8xf32> to vector<8xf32>
    %71 = vector.shape_cast %70 : vector<8xf32> to vector<8x1xf32>
    %72 = vector.broadcast %71 : vector<8x1xf32> to vector<8x8xf32>
    %73 = arith.subf %69, %72 : vector<8x8xf32>
    %74 = math.exp %73 : vector<8x8xf32>
    %cst_29 = arith.constant dense<0.000000e+00> : vector<8xf32>
    %75 = vector.multi_reduction <add>, %74, %cst_29 [1] : vector<8x8xf32> to vector<8xf32>
    %76 = vector.shape_cast %75 : vector<8xf32> to vector<8x1xf32>
    %77 = tpu.reciprocal %76 {approx = true} : vector<8x1xf32> -> vector<8x1xf32>
    %78 = vector.broadcast %77 : vector<8x1xf32> to vector<8x8xf32>
    %79 = arith.mulf %74, %78 : vector<8x8xf32>
    %cst_30 = arith.constant dense<0.000000e+00> : vector<8x8xf32>
    %80 = tpu.matmul %79, %65, %cst_30 {dimension_numbers = #tpu.dot_dimension_numbers<[1], [0], [0], [1], [0, 0, 1, 1], [], []>} : vector<8x8xf32>, vector<8x8xf32>, vector<8x8xf32> -> vector<8x8xf32>
    %81 = vector.extract_strided_slice %42 {offsets = [0, 16], sizes = [8, 8], strides = [1, 1]} : vector<8x32xf32> to vector<8x8xf32>
    %82 = vector.extract_strided_slice %43 {offsets = [0, 16], sizes = [8, 8], strides = [1, 1]} : vector<8x32xf32> to vector<8x8xf32>
    %83 = vector.extract_strided_slice %44 {offsets = [0, 16], sizes = [8, 8], strides = [1, 1]} : vector<8x32xf32> to vector<8x8xf32>
    %cst_31 = arith.constant dense<0.000000e+00> : vector<8x8xf32>
    %84 = tpu.matmul %81, %82, %cst_31 {dimension_numbers = #tpu.dot_dimension_numbers<[1], [1], [0], [0], [0, 0, 1, 0], [], []>} : vector<8x8xf32>, vector<8x8xf32>, vector<8x8xf32> -> vector<8x8xf32>
    %cst_32 = arith.constant 0.353553385 : f32
    %85 = vector.broadcast %cst_32 : f32 to vector<8x8xf32>
    %86 = arith.mulf %84, %85 : vector<8x8xf32>
    %87 = arith.addf %86, %6 : vector<8x8xf32>
    %cst_33 = arith.constant dense<0xFF800000> : vector<8xf32>
    %88 = vector.multi_reduction <maximumf>, %87, %cst_33 [1] : vector<8x8xf32> to vector<8xf32>
    %89 = vector.shape_cast %88 : vector<8xf32> to vector<8x1xf32>
    %90 = vector.broadcast %89 : vector<8x1xf32> to vector<8x8xf32>
    %91 = arith.subf %87, %90 : vector<8x8xf32>
    %92 = math.exp %91 : vector<8x8xf32>
    %cst_34 = arith.constant dense<0.000000e+00> : vector<8xf32>
    %93 = vector.multi_reduction <add>, %92, %cst_34 [1] : vector<8x8xf32> to vector<8xf32>
    %94 = vector.shape_cast %93 : vector<8xf32> to vector<8x1xf32>
    %95 = tpu.reciprocal %94 {approx = true} : vector<8x1xf32> -> vector<8x1xf32>
    %96 = vector.broadcast %95 : vector<8x1xf32> to vector<8x8xf32>
    %97 = arith.mulf %92, %96 : vector<8x8xf32>
    %cst_35 = arith.constant dense<0.000000e+00> : vector<8x8xf32>
    %98 = tpu.matmul %97, %83, %cst_35 {dimension_numbers = #tpu.dot_dimension_numbers<[1], [0], [0], [1], [0, 0, 1, 1], [], []>} : vector<8x8xf32>, vector<8x8xf32>, vector<8x8xf32> -> vector<8x8xf32>
    %99 = vector.extract_strided_slice %42 {offsets = [0, 24], sizes = [8, 8], strides = [1, 1]} : vector<8x32xf32> to vector<8x8xf32>
    %100 = vector.extract_strided_slice %43 {offsets = [0, 24], sizes = [8, 8], strides = [1, 1]} : vector<8x32xf32> to vector<8x8xf32>
    %101 = vector.extract_strided_slice %44 {offsets = [0, 24], sizes = [8, 8], strides = [1, 1]} : vector<8x32xf32> to vector<8x8xf32>
    %cst_36 = arith.constant dense<0.000000e+00> : vector<8x8xf32>
    %102 = tpu.matmul %99, %100, %cst_36 {dimension_numbers = #tpu.dot_dimension_numbers<[1], [1], [0], [0], [0, 0, 1, 0], [], []>} : vector<8x8xf32>, vector<8x8xf32>, vector<8x8xf32> -> vector<8x8xf32>
    %cst_37 = arith.constant 0.353553385 : f32
    %103 = vector.broadcast %cst_37 : f32 to vector<8x8xf32>
    %104 = arith.mulf %102, %103 : vector<8x8xf32>
    %105 = arith.addf %104, %6 : vector<8x8xf32>
    %cst_38 = arith.constant dense<0xFF800000> : vector<8xf32>
    %106 = vector.multi_reduction <maximumf>, %105, %cst_38 [1] : vector<8x8xf32> to vector<8xf32>
    %107 = vector.shape_cast %106 : vector<8xf32> to vector<8x1xf32>
    %108 = vector.broadcast %107 : vector<8x1xf32> to vector<8x8xf32>
    %109 = arith.subf %105, %108 : vector<8x8xf32>
    %110 = math.exp %109 : vector<8x8xf32>
    %cst_39 = arith.constant dense<0.000000e+00> : vector<8xf32>
    %111 = vector.multi_reduction <add>, %110, %cst_39 [1] : vector<8x8xf32> to vector<8xf32>
    %112 = vector.shape_cast %111 : vector<8xf32> to vector<8x1xf32>
    %113 = tpu.reciprocal %112 {approx = true} : vector<8x1xf32> -> vector<8x1xf32>
    %114 = vector.broadcast %113 : vector<8x1xf32> to vector<8x8xf32>
    %115 = arith.mulf %110, %114 : vector<8x8xf32>
    %cst_40 = arith.constant dense<0.000000e+00> : vector<8x8xf32>
    %116 = tpu.matmul %115, %101, %cst_40 {dimension_numbers = #tpu.dot_dimension_numbers<[1], [0], [0], [1], [0, 0, 1, 1], [], []>} : vector<8x8xf32>, vector<8x8xf32>, vector<8x8xf32> -> vector<8x8xf32>
    %117 = tpu.concatenate %62, %80, %98, %116 in 1 : vector<8x8xf32>, vector<8x8xf32>, vector<8x8xf32>, vector<8x8xf32> -> vector<8x32xf32>
    %c0_41 = arith.constant 0 : index
    %c0_42 = arith.constant 0 : index
    %c0_43 = arith.constant 0 : index
    %118 = vector.load %arg6[%c0_41, %c0_42, %c0_43] : memref<2x32x32xf32, #tpu.memory_space<vmem>>, vector<1x32x32xf32>
    %119 = vector.shape_cast %118 : vector<1x32x32xf32> to vector<32x32xf32>
    %cst_44 = arith.constant dense<0.000000e+00> : vector<8x32xf32>
    %120 = tpu.matmul %117, %119, %cst_44 {dimension_numbers = #tpu.dot_dimension_numbers<[1], [0], [0], [1], [0, 0, 1, 1], [], []>} : vector<8x32xf32>, vector<32x32xf32>, vector<8x32xf32> -> vector<8x32xf32>
    %c0_45 = arith.constant 0 : index
    %c0_46 = arith.constant 0 : index
    %c0_47 = arith.constant 0 : index
    %121 = vector.load %arg7[%c0_45, %c0_46, %c0_47] : memref<2x1x32xf32, #tpu.memory_space<vmem>>, vector<1x1x32xf32>
    %122 = vector.shape_cast %121 : vector<1x1x32xf32> to vector<1x32xf32>
    %123 = vector.broadcast %122 : vector<1x32xf32> to vector<8x32xf32>
    %124 = arith.addf %120, %123 : vector<8x32xf32>
    %125 = arith.addf %5, %124 : vector<8x32xf32>
    %cst_48 = arith.constant dense<0.000000e+00> : vector<8xf32>
    %126 = vector.multi_reduction <add>, %125, %cst_48 [1] : vector<8x32xf32> to vector<8xf32>
    %127 = vector.shape_cast %126 : vector<8xf32> to vector<8x1xf32>
    %cst_49 = arith.constant 3.200000e+01 : f32
    %128 = vector.broadcast %cst_49 : f32 to vector<8x1xf32>
    %129 = arith.divf %127, %128 : vector<8x1xf32>
    %130 = vector.broadcast %129 : vector<8x1xf32> to vector<8x32xf32>
    %131 = arith.subf %125, %130 : vector<8x32xf32>
    %132 = arith.mulf %131, %131 : vector<8x32xf32>
    %cst_50 = arith.constant dense<0.000000e+00> : vector<8xf32>
    %133 = vector.multi_reduction <add>, %132, %cst_50 [1] : vector<8x32xf32> to vector<8xf32>
    %134 = vector.shape_cast %133 : vector<8xf32> to vector<8x1xf32>
    %cst_51 = arith.constant 3.200000e+01 : f32
    %135 = vector.broadcast %cst_51 : f32 to vector<8x1xf32>
    %136 = arith.divf %134, %135 : vector<8x1xf32>
    %137 = vector.broadcast %129 : vector<8x1xf32> to vector<8x32xf32>
    %138 = arith.subf %125, %137 : vector<8x32xf32>
    %139 = vector.broadcast %11 : vector<1x32xf32> to vector<8x32xf32>
    %140 = arith.mulf %139, %138 : vector<8x32xf32>
    %cst_52 = arith.constant 9.99999997E-7 : f32
    %141 = vector.broadcast %cst_52 : f32 to vector<8x1xf32>
    %142 = arith.addf %136, %141 : vector<8x1xf32>
    %143 = math.rsqrt %142 : vector<8x1xf32>
    %144 = vector.broadcast %143 : vector<8x1xf32> to vector<8x32xf32>
    %145 = arith.mulf %140, %144 : vector<8x32xf32>
    %146 = vector.broadcast %12 : vector<1x32xf32> to vector<8x32xf32>
    %147 = arith.addf %145, %146 : vector<8x32xf32>
    %c0_53 = arith.constant 0 : index
    %c0_54 = arith.constant 0 : index
    %c0_55 = arith.constant 0 : index
    %148 = vector.load %arg9[%c0_53, %c0_54, %c0_55] : memref<2x32x64xf32, #tpu.memory_space<vmem>>, vector<1x32x64xf32>
    %149 = vector.shape_cast %148 : vector<1x32x64xf32> to vector<32x64xf32>
    %cst_56 = arith.constant dense<0.000000e+00> : vector<8x64xf32>
    %150 = tpu.matmul %147, %149, %cst_56 {dimension_numbers = #tpu.dot_dimension_numbers<[1], [0], [0], [1], [0, 0, 1, 1], [], []>} : vector<8x32xf32>, vector<32x64xf32>, vector<8x64xf32> -> vector<8x64xf32>
    %c0_57 = arith.constant 0 : index
    %c0_58 = arith.constant 0 : index
    %c0_59 = arith.constant 0 : index
    %151 = vector.load %arg10[%c0_57, %c0_58, %c0_59] : memref<2x1x64xf32, #tpu.memory_space<vmem>>, vector<1x1x64xf32>
    %152 = vector.shape_cast %151 : vector<1x1x64xf32> to vector<1x64xf32>
    %153 = vector.broadcast %152 : vector<1x64xf32> to vector<8x64xf32>
    %154 = arith.addf %150, %153 : vector<8x64xf32>
    %cst_60 = arith.constant 0.000000e+00 : f32
    %155 = vector.broadcast %cst_60 : f32 to vector<8x64xf32>
    %156 = arith.maximumf %154, %155 : vector<8x64xf32>
    %c0_61 = arith.constant 0 : index
    %c0_62 = arith.constant 0 : index
    %c0_63 = arith.constant 0 : index
    %157 = vector.load %arg11[%c0_61, %c0_62, %c0_63] : memref<2x64x32xf32, #tpu.memory_space<vmem>>, vector<1x64x32xf32>
    %158 = vector.shape_cast %157 : vector<1x64x32xf32> to vector<64x32xf32>
    %cst_64 = arith.constant dense<0.000000e+00> : vector<8x32xf32>
    %159 = tpu.matmul %156, %158, %cst_64 {dimension_numbers = #tpu.dot_dimension_numbers<[1], [0], [0], [1], [0, 0, 1, 1], [], []>} : vector<8x64xf32>, vector<64x32xf32>, vector<8x32xf32> -> vector<8x32xf32>
    %c0_65 = arith.constant 0 : index
    %c0_66 = arith.constant 0 : index
    %c0_67 = arith.constant 0 : index
    %160 = vector.load %arg12[%c0_65, %c0_66, %c0_67] : memref<2x1x32xf32, #tpu.memory_space<vmem>>, vector<1x1x32xf32>
    %161 = vector.shape_cast %160 : vector<1x1x32xf32> to vector<1x32xf32>
    %162 = vector.broadcast %161 : vector<1x32xf32> to vector<8x32xf32>
    %163 = arith.addf %159, %162 : vector<8x32xf32>
    %164 = arith.addf %125, %163 : vector<8x32xf32>
    %c1 = arith.constant 1 : index
    %c0_68 = arith.constant 0 : index
    %c0_69 = arith.constant 0 : index
    %165 = vector.load %arg8[%c1, %c0_68, %c0_69] : memref<2x4x32xf32, #tpu.memory_space<vmem>>, vector<1x4x32xf32>
    %166 = vector.shape_cast %165 : vector<1x4x32xf32> to vector<4x32xf32>
    %167 = vector.extract_strided_slice %166 {offsets = [0, 0], sizes = [1, 32], strides = [1, 1]} : vector<4x32xf32> to vector<1x32xf32>
    %168 = vector.extract_strided_slice %166 {offsets = [1, 0], sizes = [1, 32], strides = [1, 1]} : vector<4x32xf32> to vector<1x32xf32>
    %169 = vector.extract_strided_slice %166 {offsets = [2, 0], sizes = [1, 32], strides = [1, 1]} : vector<4x32xf32> to vector<1x32xf32>
    %170 = vector.extract_strided_slice %166 {offsets = [3, 0], sizes = [1, 32], strides = [1, 1]} : vector<4x32xf32> to vector<1x32xf32>
    %cst_70 = arith.constant dense<0.000000e+00> : vector<8xf32>
    %171 = vector.multi_reduction <add>, %164, %cst_70 [1] : vector<8x32xf32> to vector<8xf32>
    %172 = vector.shape_cast %171 : vector<8xf32> to vector<8x1xf32>
    %cst_71 = arith.constant 3.200000e+01 : f32
    %173 = vector.broadcast %cst_71 : f32 to vector<8x1xf32>
    %174 = arith.divf %172, %173 : vector<8x1xf32>
    %175 = vector.broadcast %174 : vector<8x1xf32> to vector<8x32xf32>
    %176 = arith.subf %164, %175 : vector<8x32xf32>
    %177 = arith.mulf %176, %176 : vector<8x32xf32>
    %cst_72 = arith.constant dense<0.000000e+00> : vector<8xf32>
    %178 = vector.multi_reduction <add>, %177, %cst_72 [1] : vector<8x32xf32> to vector<8xf32>
    %179 = vector.shape_cast %178 : vector<8xf32> to vector<8x1xf32>
    %cst_73 = arith.constant 3.200000e+01 : f32
    %180 = vector.broadcast %cst_73 : f32 to vector<8x1xf32>
    %181 = arith.divf %179, %180 : vector<8x1xf32>
    %182 = vector.broadcast %174 : vector<8x1xf32> to vector<8x32xf32>
    %183 = arith.subf %164, %182 : vector<8x32xf32>
    %184 = vector.broadcast %167 : vector<1x32xf32> to vector<8x32xf32>
    %185 = arith.mulf %184, %183 : vector<8x32xf32>
    %cst_74 = arith.constant 9.99999997E-7 : f32
    %186 = vector.broadcast %cst_74 : f32 to vector<8x1xf32>
    %187 = arith.addf %181, %186 : vector<8x1xf32>
    %188 = math.rsqrt %187 : vector<8x1xf32>
    %189 = vector.broadcast %188 : vector<8x1xf32> to vector<8x32xf32>
    %190 = arith.mulf %185, %189 : vector<8x32xf32>
    %191 = vector.broadcast %168 : vector<1x32xf32> to vector<8x32xf32>
    %192 = arith.addf %190, %191 : vector<8x32xf32>
    %c1_75 = arith.constant 1 : index
    %c0_76 = arith.constant 0 : index
    %c0_77 = arith.constant 0 : index
    %193 = vector.load %arg4[%c1_75, %c0_76, %c0_77] : memref<2x32x96xf32, #tpu.memory_space<vmem>>, vector<1x32x96xf32>
    %194 = vector.shape_cast %193 : vector<1x32x96xf32> to vector<32x96xf32>
    %cst_78 = arith.constant dense<0.000000e+00> : vector<8x96xf32>
    %195 = tpu.matmul %192, %194, %cst_78 {dimension_numbers = #tpu.dot_dimension_numbers<[1], [0], [0], [1], [0, 0, 1, 1], [], []>} : vector<8x32xf32>, vector<32x96xf32>, vector<8x96xf32> -> vector<8x96xf32>
    %c1_79 = arith.constant 1 : index
    %c0_80 = arith.constant 0 : index
    %c0_81 = arith.constant 0 : index
    %196 = vector.load %arg5[%c1_79, %c0_80, %c0_81] : memref<2x1x96xf32, #tpu.memory_space<vmem>>, vector<1x1x96xf32>
    %197 = vector.shape_cast %196 : vector<1x1x96xf32> to vector<1x96xf32>
    %198 = vector.broadcast %197 : vector<1x96xf32> to vector<8x96xf32>
    %199 = arith.addf %195, %198 : vector<8x96xf32>
    %200 = vector.extract_strided_slice %199 {offsets = [0, 0], sizes = [8, 32], strides = [1, 1]} : vector<8x96xf32> to vector<8x32xf32>
    %201 = vector.extract_strided_slice %199 {offsets = [0, 32], sizes = [8, 32], strides = [1, 1]} : vector<8x96xf32> to vector<8x32xf32>
    %202 = vector.extract_strided_slice %199 {offsets = [0, 64], sizes = [8, 32], strides = [1, 1]} : vector<8x96xf32> to vector<8x32xf32>
    %203 = vector.extract_strided_slice %200 {offsets = [0, 0], sizes = [8, 8], strides = [1, 1]} : vector<8x32xf32> to vector<8x8xf32>
    %204 = vector.extract_strided_slice %201 {offsets = [0, 0], sizes = [8, 8], strides = [1, 1]} : vector<8x32xf32> to vector<8x8xf32>
    %205 = vector.extract_strided_slice %202 {offsets = [0, 0], sizes = [8, 8], strides = [1, 1]} : vector<8x32xf32> to vector<8x8xf32>
    %cst_82 = arith.constant dense<0.000000e+00> : vector<8x8xf32>
    %206 = tpu.matmul %203, %204, %cst_82 {dimension_numbers = #tpu.dot_dimension_numbers<[1], [1], [0], [0], [0, 0, 1, 0], [], []>} : vector<8x8xf32>, vector<8x8xf32>, vector<8x8xf32> -> vector<8x8xf32>
    %cst_83 = arith.constant 0.353553385 : f32
    %207 = vector.broadcast %cst_83 : f32 to vector<8x8xf32>
    %208 = arith.mulf %206, %207 : vector<8x8xf32>
    %209 = arith.addf %208, %6 : vector<8x8xf32>
    %cst_84 = arith.constant dense<0xFF800000> : vector<8xf32>
    %210 = vector.multi_reduction <maximumf>, %209, %cst_84 [1] : vector<8x8xf32> to vector<8xf32>
    %211 = vector.shape_cast %210 : vector<8xf32> to vector<8x1xf32>
    %212 = vector.broadcast %211 : vector<8x1xf32> to vector<8x8xf32>
    %213 = arith.subf %209, %212 : vector<8x8xf32>
    %214 = math.exp %213 : vector<8x8xf32>
    %cst_85 = arith.constant dense<0.000000e+00> : vector<8xf32>
    %215 = vector.multi_reduction <add>, %214, %cst_85 [1] : vector<8x8xf32> to vector<8xf32>
    %216 = vector.shape_cast %215 : vector<8xf32> to vector<8x1xf32>
    %217 = tpu.reciprocal %216 {approx = true} : vector<8x1xf32> -> vector<8x1xf32>
    %218 = vector.broadcast %217 : vector<8x1xf32> to vector<8x8xf32>
    %219 = arith.mulf %214, %218 : vector<8x8xf32>
    %cst_86 = arith.constant dense<0.000000e+00> : vector<8x8xf32>
    %220 = tpu.matmul %219, %205, %cst_86 {dimension_numbers = #tpu.dot_dimension_numbers<[1], [0], [0], [1], [0, 0, 1, 1], [], []>} : vector<8x8xf32>, vector<8x8xf32>, vector<8x8xf32> -> vector<8x8xf32>
    %221 = vector.extract_strided_slice %200 {offsets = [0, 8], sizes = [8, 8], strides = [1, 1]} : vector<8x32xf32> to vector<8x8xf32>
    %222 = vector.extract_strided_slice %201 {offsets = [0, 8], sizes = [8, 8], strides = [1, 1]} : vector<8x32xf32> to vector<8x8xf32>
    %223 = vector.extract_strided_slice %202 {offsets = [0, 8], sizes = [8, 8], strides = [1, 1]} : vector<8x32xf32> to vector<8x8xf32>
    %cst_87 = arith.constant dense<0.000000e+00> : vector<8x8xf32>
    %224 = tpu.matmul %221, %222, %cst_87 {dimension_numbers = #tpu.dot_dimension_numbers<[1], [1], [0], [0], [0, 0, 1, 0], [], []>} : vector<8x8xf32>, vector<8x8xf32>, vector<8x8xf32> -> vector<8x8xf32>
    %cst_88 = arith.constant 0.353553385 : f32
    %225 = vector.broadcast %cst_88 : f32 to vector<8x8xf32>
    %226 = arith.mulf %224, %225 : vector<8x8xf32>
    %227 = arith.addf %226, %6 : vector<8x8xf32>
    %cst_89 = arith.constant dense<0xFF800000> : vector<8xf32>
    %228 = vector.multi_reduction <maximumf>, %227, %cst_89 [1] : vector<8x8xf32> to vector<8xf32>
    %229 = vector.shape_cast %228 : vector<8xf32> to vector<8x1xf32>
    %230 = vector.broadcast %229 : vector<8x1xf32> to vector<8x8xf32>
    %231 = arith.subf %227, %230 : vector<8x8xf32>
    %232 = math.exp %231 : vector<8x8xf32>
    %cst_90 = arith.constant dense<0.000000e+00> : vector<8xf32>
    %233 = vector.multi_reduction <add>, %232, %cst_90 [1] : vector<8x8xf32> to vector<8xf32>
    %234 = vector.shape_cast %233 : vector<8xf32> to vector<8x1xf32>
    %235 = tpu.reciprocal %234 {approx = true} : vector<8x1xf32> -> vector<8x1xf32>
    %236 = vector.broadcast %235 : vector<8x1xf32> to vector<8x8xf32>
    %237 = arith.mulf %232, %236 : vector<8x8xf32>
    %cst_91 = arith.constant dense<0.000000e+00> : vector<8x8xf32>
    %238 = tpu.matmul %237, %223, %cst_91 {dimension_numbers = #tpu.dot_dimension_numbers<[1], [0], [0], [1], [0, 0, 1, 1], [], []>} : vector<8x8xf32>, vector<8x8xf32>, vector<8x8xf32> -> vector<8x8xf32>
    %239 = vector.extract_strided_slice %200 {offsets = [0, 16], sizes = [8, 8], strides = [1, 1]} : vector<8x32xf32> to vector<8x8xf32>
    %240 = vector.extract_strided_slice %201 {offsets = [0, 16], sizes = [8, 8], strides = [1, 1]} : vector<8x32xf32> to vector<8x8xf32>
    %241 = vector.extract_strided_slice %202 {offsets = [0, 16], sizes = [8, 8], strides = [1, 1]} : vector<8x32xf32> to vector<8x8xf32>
    %cst_92 = arith.constant dense<0.000000e+00> : vector<8x8xf32>
    %242 = tpu.matmul %239, %240, %cst_92 {dimension_numbers = #tpu.dot_dimension_numbers<[1], [1], [0], [0], [0, 0, 1, 0], [], []>} : vector<8x8xf32>, vector<8x8xf32>, vector<8x8xf32> -> vector<8x8xf32>
    %cst_93 = arith.constant 0.353553385 : f32
    %243 = vector.broadcast %cst_93 : f32 to vector<8x8xf32>
    %244 = arith.mulf %242, %243 : vector<8x8xf32>
    %245 = arith.addf %244, %6 : vector<8x8xf32>
    %cst_94 = arith.constant dense<0xFF800000> : vector<8xf32>
    %246 = vector.multi_reduction <maximumf>, %245, %cst_94 [1] : vector<8x8xf32> to vector<8xf32>
    %247 = vector.shape_cast %246 : vector<8xf32> to vector<8x1xf32>
    %248 = vector.broadcast %247 : vector<8x1xf32> to vector<8x8xf32>
    %249 = arith.subf %245, %248 : vector<8x8xf32>
    %250 = math.exp %249 : vector<8x8xf32>
    %cst_95 = arith.constant dense<0.000000e+00> : vector<8xf32>
    %251 = vector.multi_reduction <add>, %250, %cst_95 [1] : vector<8x8xf32> to vector<8xf32>
    %252 = vector.shape_cast %251 : vector<8xf32> to vector<8x1xf32>
    %253 = tpu.reciprocal %252 {approx = true} : vector<8x1xf32> -> vector<8x1xf32>
    %254 = vector.broadcast %253 : vector<8x1xf32> to vector<8x8xf32>
    %255 = arith.mulf %250, %254 : vector<8x8xf32>
    %cst_96 = arith.constant dense<0.000000e+00> : vector<8x8xf32>
    %256 = tpu.matmul %255, %241, %cst_96 {dimension_numbers = #tpu.dot_dimension_numbers<[1], [0], [0], [1], [0, 0, 1, 1], [], []>} : vector<8x8xf32>, vector<8x8xf32>, vector<8x8xf32> -> vector<8x8xf32>
    %257 = vector.extract_strided_slice %200 {offsets = [0, 24], sizes = [8, 8], strides = [1, 1]} : vector<8x32xf32> to vector<8x8xf32>
    %258 = vector.extract_strided_slice %201 {offsets = [0, 24], sizes = [8, 8], strides = [1, 1]} : vector<8x32xf32> to vector<8x8xf32>
    %259 = vector.extract_strided_slice %202 {offsets = [0, 24], sizes = [8, 8], strides = [1, 1]} : vector<8x32xf32> to vector<8x8xf32>
    %cst_97 = arith.constant dense<0.000000e+00> : vector<8x8xf32>
    %260 = tpu.matmul %257, %258, %cst_97 {dimension_numbers = #tpu.dot_dimension_numbers<[1], [1], [0], [0], [0, 0, 1, 0], [], []>} : vector<8x8xf32>, vector<8x8xf32>, vector<8x8xf32> -> vector<8x8xf32>
    %cst_98 = arith.constant 0.353553385 : f32
    %261 = vector.broadcast %cst_98 : f32 to vector<8x8xf32>
    %262 = arith.mulf %260, %261 : vector<8x8xf32>
    %263 = arith.addf %262, %6 : vector<8x8xf32>
    %cst_99 = arith.constant dense<0xFF800000> : vector<8xf32>
    %264 = vector.multi_reduction <maximumf>, %263, %cst_99 [1] : vector<8x8xf32> to vector<8xf32>
    %265 = vector.shape_cast %264 : vector<8xf32> to vector<8x1xf32>
    %266 = vector.broadcast %265 : vector<8x1xf32> to vector<8x8xf32>
    %267 = arith.subf %263, %266 : vector<8x8xf32>
    %268 = math.exp %267 : vector<8x8xf32>
    %cst_100 = arith.constant dense<0.000000e+00> : vector<8xf32>
    %269 = vector.multi_reduction <add>, %268, %cst_100 [1] : vector<8x8xf32> to vector<8xf32>
    %270 = vector.shape_cast %269 : vector<8xf32> to vector<8x1xf32>
    %271 = tpu.reciprocal %270 {approx = true} : vector<8x1xf32> -> vector<8x1xf32>
    %272 = vector.broadcast %271 : vector<8x1xf32> to vector<8x8xf32>
    %273 = arith.mulf %268, %272 : vector<8x8xf32>
    %cst_101 = arith.constant dense<0.000000e+00> : vector<8x8xf32>
    %274 = tpu.matmul %273, %259, %cst_101 {dimension_numbers = #tpu.dot_dimension_numbers<[1], [0], [0], [1], [0, 0, 1, 1], [], []>} : vector<8x8xf32>, vector<8x8xf32>, vector<8x8xf32> -> vector<8x8xf32>
    %275 = tpu.concatenate %220, %238, %256, %274 in 1 : vector<8x8xf32>, vector<8x8xf32>, vector<8x8xf32>, vector<8x8xf32> -> vector<8x32xf32>
    %c1_102 = arith.constant 1 : index
    %c0_103 = arith.constant 0 : index
    %c0_104 = arith.constant 0 : index
    %276 = vector.load %arg6[%c1_102, %c0_103, %c0_104] : memref<2x32x32xf32, #tpu.memory_space<vmem>>, vector<1x32x32xf32>
    %277 = vector.shape_cast %276 : vector<1x32x32xf32> to vector<32x32xf32>
    %cst_105 = arith.constant dense<0.000000e+00> : vector<8x32xf32>
    %278 = tpu.matmul %275, %277, %cst_105 {dimension_numbers = #tpu.dot_dimension_numbers<[1], [0], [0], [1], [0, 0, 1, 1], [], []>} : vector<8x32xf32>, vector<32x32xf32>, vector<8x32xf32> -> vector<8x32xf32>
    %c1_106 = arith.constant 1 : index
    %c0_107 = arith.constant 0 : index
    %c0_108 = arith.constant 0 : index
    %279 = vector.load %arg7[%c1_106, %c0_107, %c0_108] : memref<2x1x32xf32, #tpu.memory_space<vmem>>, vector<1x1x32xf32>
    %280 = vector.shape_cast %279 : vector<1x1x32xf32> to vector<1x32xf32>
    %281 = vector.broadcast %280 : vector<1x32xf32> to vector<8x32xf32>
    %282 = arith.addf %278, %281 : vector<8x32xf32>
    %283 = arith.addf %164, %282 : vector<8x32xf32>
    %cst_109 = arith.constant dense<0.000000e+00> : vector<8xf32>
    %284 = vector.multi_reduction <add>, %283, %cst_109 [1] : vector<8x32xf32> to vector<8xf32>
    %285 = vector.shape_cast %284 : vector<8xf32> to vector<8x1xf32>
    %cst_110 = arith.constant 3.200000e+01 : f32
    %286 = vector.broadcast %cst_110 : f32 to vector<8x1xf32>
    %287 = arith.divf %285, %286 : vector<8x1xf32>
    %288 = vector.broadcast %287 : vector<8x1xf32> to vector<8x32xf32>
    %289 = arith.subf %283, %288 : vector<8x32xf32>
    %290 = arith.mulf %289, %289 : vector<8x32xf32>
    %cst_111 = arith.constant dense<0.000000e+00> : vector<8xf32>
    %291 = vector.multi_reduction <add>, %290, %cst_111 [1] : vector<8x32xf32> to vector<8xf32>
    %292 = vector.shape_cast %291 : vector<8xf32> to vector<8x1xf32>
    %cst_112 = arith.constant 3.200000e+01 : f32
    %293 = vector.broadcast %cst_112 : f32 to vector<8x1xf32>
    %294 = arith.divf %292, %293 : vector<8x1xf32>
    %295 = vector.broadcast %287 : vector<8x1xf32> to vector<8x32xf32>
    %296 = arith.subf %283, %295 : vector<8x32xf32>
    %297 = vector.broadcast %169 : vector<1x32xf32> to vector<8x32xf32>
    %298 = arith.mulf %297, %296 : vector<8x32xf32>
    %cst_113 = arith.constant 9.99999997E-7 : f32
    %299 = vector.broadcast %cst_113 : f32 to vector<8x1xf32>
    %300 = arith.addf %294, %299 : vector<8x1xf32>
    %301 = math.rsqrt %300 : vector<8x1xf32>
    %302 = vector.broadcast %301 : vector<8x1xf32> to vector<8x32xf32>
    %303 = arith.mulf %298, %302 : vector<8x32xf32>
    %304 = vector.broadcast %170 : vector<1x32xf32> to vector<8x32xf32>
    %305 = arith.addf %303, %304 : vector<8x32xf32>
    %c1_114 = arith.constant 1 : index
    %c0_115 = arith.constant 0 : index
    %c0_116 = arith.constant 0 : index
    %306 = vector.load %arg9[%c1_114, %c0_115, %c0_116] : memref<2x32x64xf32, #tpu.memory_space<vmem>>, vector<1x32x64xf32>
    %307 = vector.shape_cast %306 : vector<1x32x64xf32> to vector<32x64xf32>
    %cst_117 = arith.constant dense<0.000000e+00> : vector<8x64xf32>
    %308 = tpu.matmul %305, %307, %cst_117 {dimension_numbers = #tpu.dot_dimension_numbers<[1], [0], [0], [1], [0, 0, 1, 1], [], []>} : vector<8x32xf32>, vector<32x64xf32>, vector<8x64xf32> -> vector<8x64xf32>
    %c1_118 = arith.constant 1 : index
    %c0_119 = arith.constant 0 : index
    %c0_120 = arith.constant 0 : index
    %309 = vector.load %arg10[%c1_118, %c0_119, %c0_120] : memref<2x1x64xf32, #tpu.memory_space<vmem>>, vector<1x1x64xf32>
    %310 = vector.shape_cast %309 : vector<1x1x64xf32> to vector<1x64xf32>
    %311 = vector.broadcast %310 : vector<1x64xf32> to vector<8x64xf32>
    %312 = arith.addf %308, %311 : vector<8x64xf32>
    %cst_121 = arith.constant 0.000000e+00 : f32
    %313 = vector.broadcast %cst_121 : f32 to vector<8x64xf32>
    %314 = arith.maximumf %312, %313 : vector<8x64xf32>
    %c1_122 = arith.constant 1 : index
    %c0_123 = arith.constant 0 : index
    %c0_124 = arith.constant 0 : index
    %315 = vector.load %arg11[%c1_122, %c0_123, %c0_124] : memref<2x64x32xf32, #tpu.memory_space<vmem>>, vector<1x64x32xf32>
    %316 = vector.shape_cast %315 : vector<1x64x32xf32> to vector<64x32xf32>
    %cst_125 = arith.constant dense<0.000000e+00> : vector<8x32xf32>
    %317 = tpu.matmul %314, %316, %cst_125 {dimension_numbers = #tpu.dot_dimension_numbers<[1], [0], [0], [1], [0, 0, 1, 1], [], []>} : vector<8x64xf32>, vector<64x32xf32>, vector<8x32xf32> -> vector<8x32xf32>
    %c1_126 = arith.constant 1 : index
    %c0_127 = arith.constant 0 : index
    %c0_128 = arith.constant 0 : index
    %318 = vector.load %arg12[%c1_126, %c0_127, %c0_128] : memref<2x1x32xf32, #tpu.memory_space<vmem>>, vector<1x1x32xf32>
    %319 = vector.shape_cast %318 : vector<1x1x32xf32> to vector<1x32xf32>
    %320 = vector.broadcast %319 : vector<1x32xf32> to vector<8x32xf32>
    %321 = arith.addf %317, %320 : vector<8x32xf32>
    %322 = arith.addf %283, %321 : vector<8x32xf32>
    %c0_129 = arith.constant 0 : index
    %c0_130 = arith.constant 0 : index
    %323 = vector.load %arg13[%c0_129, %c0_130] : memref<2x32xf32, #tpu.memory_space<vmem>>, vector<2x32xf32>
    %324 = vector.extract_strided_slice %323 {offsets = [0, 0], sizes = [1, 32], strides = [1, 1]} : vector<2x32xf32> to vector<1x32xf32>
    %325 = vector.extract_strided_slice %323 {offsets = [1, 0], sizes = [1, 32], strides = [1, 1]} : vector<2x32xf32> to vector<1x32xf32>
    %cst_131 = arith.constant dense<0.000000e+00> : vector<8xf32>
    %326 = vector.multi_reduction <add>, %322, %cst_131 [1] : vector<8x32xf32> to vector<8xf32>
    %327 = vector.shape_cast %326 : vector<8xf32> to vector<8x1xf32>
    %cst_132 = arith.constant 3.200000e+01 : f32
    %328 = vector.broadcast %cst_132 : f32 to vector<8x1xf32>
    %329 = arith.divf %327, %328 : vector<8x1xf32>
    %330 = vector.broadcast %329 : vector<8x1xf32> to vector<8x32xf32>
    %331 = arith.subf %322, %330 : vector<8x32xf32>
    %332 = arith.mulf %331, %331 : vector<8x32xf32>
    %cst_133 = arith.constant dense<0.000000e+00> : vector<8xf32>
    %333 = vector.multi_reduction <add>, %332, %cst_133 [1] : vector<8x32xf32> to vector<8xf32>
    %334 = vector.shape_cast %333 : vector<8xf32> to vector<8x1xf32>
    %cst_134 = arith.constant 3.200000e+01 : f32
    %335 = vector.broadcast %cst_134 : f32 to vector<8x1xf32>
    %336 = arith.divf %334, %335 : vector<8x1xf32>
    %337 = vector.broadcast %329 : vector<8x1xf32> to vector<8x32xf32>
    %338 = arith.subf %322, %337 : vector<8x32xf32>
    %339 = vector.broadcast %324 : vector<1x32xf32> to vector<8x32xf32>
    %340 = arith.mulf %339, %338 : vector<8x32xf32>
    %cst_135 = arith.constant 9.99999997E-7 : f32
    %341 = vector.broadcast %cst_135 : f32 to vector<8x1xf32>
    %342 = arith.addf %336, %341 : vector<8x1xf32>
    %343 = math.rsqrt %342 : vector<8x1xf32>
    %344 = vector.broadcast %343 : vector<8x1xf32> to vector<8x32xf32>
    %345 = arith.mulf %340, %344 : vector<8x32xf32>
    %346 = vector.broadcast %325 : vector<1x32xf32> to vector<8x32xf32>
    %347 = arith.addf %345, %346 : vector<8x32xf32>
    %c0_136 = arith.constant 0 : index
    %c0_137 = arith.constant 0 : index
    %348 = vector.load %arg14[%c0_136, %c0_137] : memref<32x64xf32, #tpu.memory_space<vmem>>, vector<32x64xf32>
    %cst_138 = arith.constant dense<0.000000e+00> : vector<8x64xf32>
    %349 = tpu.matmul %347, %348, %cst_138 {dimension_numbers = #tpu.dot_dimension_numbers<[1], [0], [0], [1], [0, 0, 1, 1], [], []>} : vector<8x32xf32>, vector<32x64xf32>, vector<8x64xf32> -> vector<8x64xf32>
    %c0_139 = arith.constant 0 : index
    %c0_140 = arith.constant 0 : index
    %350 = vector.load %arg15[%c0_139, %c0_140] : memref<1x64xf32, #tpu.memory_space<vmem>>, vector<1x64xf32>
    %351 = vector.broadcast %350 : vector<1x64xf32> to vector<8x64xf32>
    %352 = arith.addf %349, %351 : vector<8x64xf32>
    %cst_141 = arith.constant dense<0xFF800000> : vector<8xf32>
    %353 = vector.multi_reduction <maximumf>, %352, %cst_141 [1] : vector<8x64xf32> to vector<8xf32>
    %354 = vector.shape_cast %353 : vector<8xf32> to vector<8x1xf32>
    %355 = vector.broadcast %354 : vector<8x1xf32> to vector<8x64xf32>
    %356 = arith.subf %352, %355 : vector<8x64xf32>
    %357 = math.exp %356 : vector<8x64xf32>
    %cst_142 = arith.constant dense<0.000000e+00> : vector<8xf32>
    %358 = vector.multi_reduction <add>, %357, %cst_142 [1] : vector<8x64xf32> to vector<8xf32>
    %359 = vector.shape_cast %358 : vector<8xf32> to vector<8x1xf32>
    %360 = math.log %359 : vector<8x1xf32>
    %361 = vector.broadcast %360 : vector<8x1xf32> to vector<8x64xf32>
    %362 = arith.subf %356, %361 : vector<8x64xf32>
    %c0_143 = arith.constant 0 : index
    %c0_144 = arith.constant 0 : index
    %363 = vector.load %arg16[%c0_143, %c0_144] : memref<8x64xf32, #tpu.memory_space<vmem>>, vector<8x64xf32>
    tpu.vector_store %arg16[%c0_143, %c0_144], %362 {strides = array<i32>} : memref<8x64xf32, #tpu.memory_space<vmem>>, vector<8x64xf32>,
    return
  }
  func.func @transform_0(%arg0: i32) -> (i32, i32, i32) {
    %c0_i32 = arith.constant 0 : i32
    %c0_i32_0 = arith.constant 0 : i32
    %c0_i32_1 = arith.constant 0 : i32
    return %arg0, %c0_i32, %c0_i32_0 : i32, i32, i32
  }
  func.func @transform_1(%arg0: i32) -> (i32, i32) {
    %c0_i32 = arith.constant 0 : i32
    %c0_i32_0 = arith.constant 0 : i32
    %c0_i32_1 = arith.constant 0 : i32
    return %c0_i32, %c0_i32_0 : i32, i32
  }
  func.func @transform_2(%arg0: i32) -> (i32, i32) {
    %c0_i32 = arith.constant 0 : i32
    %c0_i32_0 = arith.constant 0 : i32
    %c0_i32_1 = arith.constant 0 : i32
    return %c0_i32, %c0_i32_0 : i32, i32
  }
  func.func @transform_3(%arg0: i32) -> (i32, i32, i32) {
    %c0_i32 = arith.constant 0 : i32
    %c0_i32_0 = arith.constant 0 : i32
    %c0_i32_1 = arith.constant 0 : i32
    %c0_i32_2 = arith.constant 0 : i32
    return %c0_i32, %c0_i32_0, %c0_i32_1 : i32, i32, i32
  }
  func.func @transform_4(%arg0: i32) -> (i32, i32, i32) {
    %c0_i32 = arith.constant 0 : i32
    %c0_i32_0 = arith.constant 0 : i32
    %c0_i32_1 = arith.constant 0 : i32
    %c0_i32_2 = arith.constant 0 : i32
    return %c0_i32, %c0_i32_0, %c0_i32_1 : i32, i32, i32
  }
  func.func @transform_5(%arg0: i32) -> (i32, i32, i32) {
    %c0_i32 = arith.constant 0 : i32
    %c0_i32_0 = arith.constant 0 : i32
    %c0_i32_1 = arith.constant 0 : i32
    %c0_i32_2 = arith.constant 0 : i32
    return %c0_i32, %c0_i32_0, %c0_i32_1 : i32, i32, i32
  }
  func.func @transform_6(%arg0: i32) -> (i32, i32, i32) {
    %c0_i32 = arith.constant 0 : i32
    %c0_i32_0 = arith.constant 0 : i32
    %c0_i32_1 = arith.constant 0 : i32
    %c0_i32_2 = arith.constant 0 : i32
    return %c0_i32, %c0_i32_0, %c0_i32_1 : i32, i32, i32
  }
  func.func @transform_7(%arg0: i32) -> (i32, i32, i32) {
    %c0_i32 = arith.constant 0 : i32
    %c0_i32_0 = arith.constant 0 : i32
    %c0_i32_1 = arith.constant 0 : i32
    %c0_i32_2 = arith.constant 0 : i32
    return %c0_i32, %c0_i32_0, %c0_i32_1 : i32, i32, i32
  }
  func.func @transform_8(%arg0: i32) -> (i32, i32, i32) {
    %c0_i32 = arith.constant 0 : i32
    %c0_i32_0 = arith.constant 0 : i32
    %c0_i32_1 = arith.constant 0 : i32
    %c0_i32_2 = arith.constant 0 : i32
    return %c0_i32, %c0_i32_0, %c0_i32_1 : i32, i32, i32
  }
  func.func @transform_9(%arg0: i32) -> (i32, i32, i32) {
    %c0_i32 = arith.constant 0 : i32
    %c0_i32_0 = arith.constant 0 : i32
    %c0_i32_1 = arith.constant 0 : i32
    %c0_i32_2 = arith.constant 0 : i32
    return %c0_i32, %c0_i32_0, %c0_i32_1 : i32, i32, i32
  }
  func.func @transform_10(%arg0: i32) -> (i32, i32, i32) {
    %c0_i32 = arith.constant 0 : i32
    %c0_i32_0 = arith.constant 0 : i32
    %c0_i32_1 = arith.constant 0 : i32
    %c0_i32_2 = arith.constant 0 : i32
    return %c0_i32, %c0_i32_0, %c0_i32_1 : i32, i32, i32
  }
  func.func @transform_11(%arg0: i32) -> (i32, i32, i32) {
    %c0_i32 = arith.constant 0 : i32
    %c0_i32_0 = arith.constant 0 : i32
    %c0_i32_1 = arith.constant 0 : i32
    %c0_i32_2 = arith.constant 0 : i32
    return %c0_i32, %c0_i32_0, %c0_i32_1 : i32, i32, i32
  }
  func.func @transform_12(%arg0: i32) -> (i32, i32) {
    %c0_i32 = arith.constant 0 : i32
    %c0_i32_0 = arith.constant 0 : i32
    %c0_i32_1 = arith.constant 0 : i32
    return %c0_i32, %c0_i32_0 : i32, i32
  }
  func.func @transform_13(%arg0: i32) -> (i32, i32) {
    %c0_i32 = arith.constant 0 : i32
    %c0_i32_0 = arith.constant 0 : i32
    %c0_i32_1 = arith.constant 0 : i32
    return %c0_i32, %c0_i32_0 : i32, i32
  }
  func.func @transform_14(%arg0: i32) -> (i32, i32) {
    %c0_i32 = arith.constant 0 : i32
    %c0_i32_0 = arith.constant 0 : i32
    %c0_i32_1 = arith.constant 0 : i32
    return %c0_i32, %c0_i32_0 : i32, i32
  }
  func.func @transform_15(%arg0: i32) -> (i32, i32) {
    %c0_i32 = arith.constant 0 : i32
    %c0_i32_0 = arith.constant 0 : i32
    return %arg0, %c0_i32 : i32, i32
  }
}

</mosaic_0001>

<llo_original>
// kernel: tpu_custom_call.1
$region0: #{tpu_custom_call.1}
  #allocation0 [shape = 'u32[]', space=smem, size = 0x4, offset = 0x4, fixed_abs, tag = 'smem constant byte address 0x4 - core index']
  #allocation1 [shape = 'u32[144,128]{1,0:T(1,128)}', space=vmem, size = 0x12000, scoped, tag = 'internal scratch']
  %s0 = inlined_call_operand.hbm [shape: f32[2,8,32], index: 0, kind: input, shape index: {}]
  %s1 = inlined_call_operand.hbm [shape: f32[8,32], index: 1, kind: input, shape index: {}]
  %s2 = inlined_call_operand.hbm [shape: f32[8,8], index: 2, kind: input, shape index: {}]
  %s3 = inlined_call_operand.vmem [shape: f32[2,32,96], index: 3, kind: input, shape index: {}]
  %s4 = inlined_call_operand.vmem [shape: f32[2,1,96], index: 4, kind: input, shape index: {}]
  %s5 = inlined_call_operand.vmem [shape: f32[2,32,32], index: 5, kind: input, shape index: {}]
  %s6 = inlined_call_operand.hbm [shape: f32[2,1,32], index: 6, kind: input, shape index: {}]
  %s7 = inlined_call_operand.vmem [shape: f32[2,4,32], index: 7, kind: input, shape index: {}]
  %s8 = inlined_call_operand.vmem [shape: f32[2,32,64], index: 8, kind: input, shape index: {}]
  %s9 = inlined_call_operand.vmem [shape: f32[2,1,64], index: 9, kind: input, shape index: {}]
  %s10 = inlined_call_operand.vmem [shape: f32[2,64,32], index: 10, kind: input, shape index: {}]
  %s11 = inlined_call_operand.vmem [shape: f32[2,1,32], index: 11, kind: input, shape index: {}]
  %s12 = inlined_call_operand.vmem [shape: f32[2,32], index: 12, kind: input, shape index: {}]
  %s13 = inlined_call_operand.hbm [shape: f32[32,64], index: 13, kind: input, shape index: {}]
  %s14 = inlined_call_operand.vmem [shape: f32[1,64], index: 14, kind: input, shape index: {}]
  %s15 = inlined_call_operand.hbm [shape: f32[16,64], index: 15, kind: output, shape index: {}]
  %s16 = sld [smem:[#allocation0]]
  $region113: #{tpu_custom_call.1} parent=0
    _
  %s18 = ssub.s32 1, %s16
  %s19 = scalar_select 0, %s18, %s16
  $region1: #{tpu_custom_call.1} parent=0
    #allocation2 [shape = 'u8[8192]{0}', space=vmem, size = 0x2000, scoped, tag = 'input window, operand 0']
    #allocation3 [shape = 's32[2]{0}', space=sflag, size = 0x8, scoped, tag = 'scoped memory for tpu_custom_call.1']
    #allocation4 [shape = 's32[2]{0}', space=sflag, size = 0x8, scoped, tag = 'scoped memory for tpu_custom_call.1']
    #allocation5 [shape = 'u8[4096]{0}', space=vmem, size = 0x1000, scoped, tag = 'input window, operand 1, single buffered']
    #allocation6 [shape = 's32[1]{0}', space=sflag, size = 0x4, scoped, tag = 'scoped memory for tpu_custom_call.1']
    #allocation7 [shape = 'u8[4096]{0}', space=vmem, size = 0x1000, scoped, tag = 'input window, operand 2, single buffered']
    #allocation8 [shape = 'u8[1024]{0}', space=vmem, size = 0x400, scoped, tag = 'input window, operand 6, single buffered']
    #allocation9 [shape = 's32[1]{0}', space=sflag, size = 0x4, scoped, tag = 'scoped memory for tpu_custom_call.1']
    #allocation10 [shape = 'u8[16384]{0}', space=vmem, size = 0x4000, scoped, tag = 'input window, operand 13, single buffered']
    #allocation11 [shape = 'u8[8192]{0}', space=vmem, size = 0x2000, scoped, tag = 'output window, operand 0']
    %20 = vsyncpa [#allocation3], 0
    %s21 = scalar_lea.sflag [#allocation3], 1
    %22 = vsyncpa %s21, 0
    %23 = vsyncpa [#allocation6], 0
    %24 = vsyncpa [#allocation9], 0
    %25 = vsyncpa [#allocation4], 0
    %s26 = scalar_lea.sflag [#allocation4], 1
    %27 = vsyncpa %s26, 0
    loop: start=0, step=1, limit=4
    $region2: #{tpu_custom_call.1} parent=1 // loop_pre_header
      _
    $region3: #{tpu_custom_call.1} parent=1 // loop_header
      %s29 = sphi 0, %s33
      %p30 = scmp.ge.s32.totalorder %s29, 4
      %s39 = sphi 0, %s41
      %s42 = sphi 0, %s39
      %s43 = sphi 0, %s42
      %s59 = sphi 0, %s43
      %s63 = sphi 0, %s63
      %s65 = sphi 0, %s63
      %s66 = sphi 0, %s65
      %s80 = sphi 0, %s66
      %s84 = sphi 0, %s84
      %s86 = sphi 0, %s84
      %s87 = sphi 0, %s86
      %s101 = sphi 0, %s87
      %s105 = sphi 0, %s105
      %s107 = sphi 0, %s105
      %s108 = sphi 0, %s107
      %s122 = sphi 0, %s108
      %s126 = sphi 0, %s126
      %s128 = sphi 0, %s126
      %s129 = sphi 0, %s128
      %s143 = sphi 0, %s129
      %s147 = sphi 0, %s147
      %s149 = sphi 0, %s147
      %s150 = sphi 0, %s149
      %s164 = sphi 0, %s150
      %s168 = sphi 0, %s168
      %s170 = sphi 0, %s168
      %s171 = sphi 0, %s170
      %s185 = sphi 0, %s171
      %s189 = sphi 0, %s189
      %s191 = sphi 0, %s189
      %s192 = sphi 0, %s191
      %s206 = sphi 0, %s192
      %s210 = sphi 0, %s210
      %s212 = sphi 0, %s210
      %s213 = sphi 0, %s212
      %s227 = sphi 0, %s213
      %s231 = sphi 0, %s231
      %s233 = sphi 0, %s231
      %s234 = sphi 0, %s233
      %s248 = sphi 0, %s234
      %s252 = sphi 0, %s252
      %s254 = sphi 0, %s252
      %s255 = sphi 0, %s254
      %s269 = sphi 0, %s255
      %s273 = sphi 0, %s273
      %s275 = sphi 0, %s273
      %s276 = sphi 0, %s275
      %s290 = sphi 0, %s276
      %s294 = sphi 0, %s294
      %s296 = sphi 0, %s294
      %s297 = sphi 0, %s296
      %s311 = sphi 0, %s297
      %s315 = sphi 0, %s315
      %s317 = sphi 0, %s315
      %s318 = sphi 0, %s317
      %s332 = sphi 0, %s318
      %s336 = sphi 0, %s336
      %s338 = sphi 0, %s336
      %s339 = sphi 0, %s338
      %s353 = sphi 0, %s339
      %s359 = sphi 0, %s361
      %s362 = sphi 0, %s359
      %s363 = sphi 0, %s362
      %s379 = sphi 0, %s363
    $region4: #{tpu_custom_call.1} parent=1 // loop_header_branch
      %32 = sbr.rel (%p30) target = $region8
    $region5: #{tpu_custom_call.1} parent=1 // loop_body
      %s34 = ssub.s32 %s29, 1
      %s35 = ssub.s32 %s29, 2
      %s36 = sadd.s32 %s29, 1
      %s37 = ssub.s32 %s29, %s36
      %p38 = scmp.eq.s32.totalorder %s37, 0
      %s40 = sadd.s32 %s39, 1
      %s41 = scalar_select %p38, %s39, %s40
      %p44 = pneg %p38
      %p45 = scmp.eq.s32.totalorder %s29, 1
      %p46 = por %p44, %p45
      %p47 = scmp.ne.s32.totalorder %s39, %s42
      %p48 = scmp.eq.s32.totalorder %s29, 0
      %p49 = por %p47, %p48
      %p50 = scmp.ne.s32.totalorder %s39, %s42
      %p51 = scmp.eq.s32.totalorder %s34, 1
      %p52 = por %p50, %p51
      %p53 = scmp.ne.s32.totalorder %s42, %s43
      %p54 = scmp.eq.s32.totalorder %s34, 0
      %p55 = por %p53, %p54
      %p56 = scmp.ne.s32.totalorder %s42, %s43
      %p57 = scmp.eq.s32.totalorder %s35, 1
      %p58 = por %p56, %p57
      %p60 = scmp.ne.s32.totalorder %s43, %s59
      %p61 = scmp.eq.s32.totalorder %s35, 0
      %p62 = por %p60, %p61
      %s64 = sadd.s32 %s63, 1
      %p67 = scmp.eq.s32.totalorder %s29, 1
      %p68 = scmp.ne.s32.totalorder %s63, %s65
      %p69 = scmp.eq.s32.totalorder %s29, 0
      %p70 = por %p68, %p69
      %p71 = scmp.ne.s32.totalorder %s63, %s65
      %p72 = scmp.eq.s32.totalorder %s34, 1
      %p73 = por %p71, %p72
      %p74 = scmp.ne.s32.totalorder %s65, %s66
      %p75 = scmp.eq.s32.totalorder %s34, 0
      %p76 = por %p74, %p75
      %p77 = scmp.ne.s32.totalorder %s65, %s66
      %p78 = scmp.eq.s32.totalorder %s35, 1
      %p79 = por %p77, %p78
      %p81 = scmp.ne.s32.totalorder %s66, %s80
      %p82 = scmp.eq.s32.totalorder %s35, 0
      %p83 = por %p81, %p82
      %s85 = sadd.s32 %s84, 1
      %p88 = scmp.eq.s32.totalorder %s29, 1
      %p89 = scmp.ne.s32.totalorder %s84, %s86
      %p90 = scmp.eq.s32.totalorder %s29, 0
      %p91 = por %p89, %p90
      %p92 = scmp.ne.s32.totalorder %s84, %s86
      %p93 = scmp.eq.s32.totalorder %s34, 1
      %p94 = por %p92, %p93
      %p95 = scmp.ne.s32.totalorder %s86, %s87
      %p96 = scmp.eq.s32.totalorder %s34, 0
      %p97 = por %p95, %p96
      %p98 = scmp.ne.s32.totalorder %s86, %s87
      %p99 = scmp.eq.s32.totalorder %s35, 1
      %p100 = por %p98, %p99
      %p102 = scmp.ne.s32.totalorder %s87, %s101
      %p103 = scmp.eq.s32.totalorder %s35, 0
      %p104 = por %p102, %p103
      %s106 = sadd.s32 %s105, 1
      %p109 = scmp.eq.s32.totalorder %s29, 1
      %p110 = scmp.ne.s32.totalorder %s105, %s107
      %p111 = scmp.eq.s32.totalorder %s29, 0
      %p112 = por %p110, %p111
      %p113 = scmp.ne.s32.totalorder %s105, %s107
      %p114 = scmp.eq.s32.totalorder %s34, 1
      %p115 = por %p113, %p114
      %p116 = scmp.ne.s32.totalorder %s107, %s108
      %p117 = scmp.eq.s32.totalorder %s34, 0
      %p118 = por %p116, %p117
      %p119 = scmp.ne.s32.totalorder %s107, %s108
      %p120 = scmp.eq.s32.totalorder %s35, 1
      %p121 = por %p119, %p120
      %p123 = scmp.ne.s32.totalorder %s108, %s122
      %p124 = scmp.eq.s32.totalorder %s35, 0
      %p125 = por %p123, %p124
      %s127 = sadd.s32 %s126, 1
      %p130 = scmp.eq.s32.totalorder %s29, 1
      %p131 = scmp.ne.s32.totalorder %s126, %s128
      %p132 = scmp.eq.s32.totalorder %s29, 0
      %p133 = por %p131, %p132
      %p134 = scmp.ne.s32.totalorder %s126, %s128
      %p135 = scmp.eq.s32.totalorder %s34, 1
      %p136 = por %p134, %p135
      %p137 = scmp.ne.s32.totalorder %s128, %s129
      %p138 = scmp.eq.s32.totalorder %s34, 0
      %p139 = por %p137, %p138
      %p140 = scmp.ne.s32.totalorder %s128, %s129
      %p141 = scmp.eq.s32.totalorder %s35, 1
      %p142 = por %p140, %p141
      %p144 = scmp.ne.s32.totalorder %s129, %s143
      %p145 = scmp.eq.s32.totalorder %s35, 0
      %p146 = por %p144, %p145
      %s148 = sadd.s32 %s147, 1
      %p151 = scmp.eq.s32.totalorder %s29, 1
      %p152 = scmp.ne.s32.totalorder %s147, %s149
      %p153 = scmp.eq.s32.totalorder %s29, 0
      %p154 = por %p152, %p153
      %p155 = scmp.ne.s32.totalorder %s147, %s149
      %p156 = scmp.eq.s32.totalorder %s34, 1
      %p157 = por %p155, %p156
      %p158 = scmp.ne.s32.totalorder %s149, %s150
      %p159 = scmp.eq.s32.totalorder %s34, 0
      %p160 = por %p158, %p159
      %p161 = scmp.ne.s32.totalorder %s149, %s150
      %p162 = scmp.eq.s32.totalorder %s35, 1
      %p163 = por %p161, %p162
      %p165 = scmp.ne.s32.totalorder %s150, %s164
      %p166 = scmp.eq.s32.totalorder %s35, 0
      %p167 = por %p165, %p166
      %s169 = sadd.s32 %s168, 1
      %p172 = scmp.eq.s32.totalorder %s29, 1
      %p173 = scmp.ne.s32.totalorder %s168, %s170
      %p174 = scmp.eq.s32.totalorder %s29, 0
      %p175 = por %p173, %p174
      %p176 = scmp.ne.s32.totalorder %s168, %s170
      %p177 = scmp.eq.s32.totalorder %s34, 1
      %p178 = por %p176, %p177
      %p179 = scmp.ne.s32.totalorder %s170, %s171
      %p180 = scmp.eq.s32.totalorder %s34, 0
      %p181 = por %p179, %p180
      %p182 = scmp.ne.s32.totalorder %s170, %s171
      %p183 = scmp.eq.s32.totalorder %s35, 1
      %p184 = por %p182, %p183
      %p186 = scmp.ne.s32.totalorder %s171, %s185
      %p187 = scmp.eq.s32.totalorder %s35, 0
      %p188 = por %p186, %p187
      %s190 = sadd.s32 %s189, 1
      %p193 = scmp.eq.s32.totalorder %s29, 1
      %p194 = scmp.ne.s32.totalorder %s189, %s191
      %p195 = scmp.eq.s32.totalorder %s29, 0
      %p196 = por %p194, %p195
      %p197 = scmp.ne.s32.totalorder %s189, %s191
      %p198 = scmp.eq.s32.totalorder %s34, 1
      %p199 = por %p197, %p198
      %p200 = scmp.ne.s32.totalorder %s191, %s192
      %p201 = scmp.eq.s32.totalorder %s34, 0
      %p202 = por %p200, %p201
      %p203 = scmp.ne.s32.totalorder %s191, %s192
      %p204 = scmp.eq.s32.totalorder %s35, 1
      %p205 = por %p203, %p204
      %p207 = scmp.ne.s32.totalorder %s192, %s206
      %p208 = scmp.eq.s32.totalorder %s35, 0
      %p209 = por %p207, %p208
      %s211 = sadd.s32 %s210, 1
      %p214 = scmp.eq.s32.totalorder %s29, 1
      %p215 = scmp.ne.s32.totalorder %s210, %s212
      %p216 = scmp.eq.s32.totalorder %s29, 0
      %p217 = por %p215, %p216
      %p218 = scmp.ne.s32.totalorder %s210, %s212
      %p219 = scmp.eq.s32.totalorder %s34, 1
      %p220 = por %p218, %p219
      %p221 = scmp.ne.s32.totalorder %s212, %s213
      %p222 = scmp.eq.s32.totalorder %s34, 0
      %p223 = por %p221, %p222
      %p224 = scmp.ne.s32.totalorder %s212, %s213
      %p225 = scmp.eq.s32.totalorder %s35, 1
      %p226 = por %p224, %p225
      %p228 = scmp.ne.s32.totalorder %s213, %s227
      %p229 = scmp.eq.s32.totalorder %s35, 0
      %p230 = por %p228, %p229
      %s232 = sadd.s32 %s231, 1
      %p235 = scmp.eq.s32.totalorder %s29, 1
      %p236 = scmp.ne.s32.totalorder %s231, %s233
      %p237 = scmp.eq.s32.totalorder %s29, 0
      %p238 = por %p236, %p237
      %p239 = scmp.ne.s32.totalorder %s231, %s233
      %p240 = scmp.eq.s32.totalorder %s34, 1
      %p241 = por %p239, %p240
      %p242 = scmp.ne.s32.totalorder %s233, %s234
      %p243 = scmp.eq.s32.totalorder %s34, 0
      %p244 = por %p242, %p243
      %p245 = scmp.ne.s32.totalorder %s233, %s234
      %p246 = scmp.eq.s32.totalorder %s35, 1
      %p247 = por %p245, %p246
      %p249 = scmp.ne.s32.totalorder %s234, %s248
      %p250 = scmp.eq.s32.totalorder %s35, 0
      %p251 = por %p249, %p250
      %s253 = sadd.s32 %s252, 1
      %p256 = scmp.eq.s32.totalorder %s29, 1
      %p257 = scmp.ne.s32.totalorder %s252, %s254
      %p258 = scmp.eq.s32.totalorder %s29, 0
      %p259 = por %p257, %p258
      %p260 = scmp.ne.s32.totalorder %s252, %s254
      %p261 = scmp.eq.s32.totalorder %s34, 1
      %p262 = por %p260, %p261
      %p263 = scmp.ne.s32.totalorder %s254, %s255
      %p264 = scmp.eq.s32.totalorder %s34, 0
      %p265 = por %p263, %p264
      %p266 = scmp.ne.s32.totalorder %s254, %s255
      %p267 = scmp.eq.s32.totalorder %s35, 1
      %p268 = por %p266, %p267
      %p270 = scmp.ne.s32.totalorder %s255, %s269
      %p271 = scmp.eq.s32.totalorder %s35, 0
      %p272 = por %p270, %p271
      %s274 = sadd.s32 %s273, 1
      %p277 = scmp.eq.s32.totalorder %s29, 1
      %p278 = scmp.ne.s32.totalorder %s273, %s275
      %p279 = scmp.eq.s32.totalorder %s29, 0
      %p280 = por %p278, %p279
      %p281 = scmp.ne.s32.totalorder %s273, %s275
      %p282 = scmp.eq.s32.totalorder %s34, 1
      %p283 = por %p281, %p282
      %p284 = scmp.ne.s32.totalorder %s275, %s276
      %p285 = scmp.eq.s32.totalorder %s34, 0
      %p286 = por %p284, %p285
      %p287 = scmp.ne.s32.totalorder %s275, %s276
      %p288 = scmp.eq.s32.totalorder %s35, 1
      %p289 = por %p287, %p288
      %p291 = scmp.ne.s32.totalorder %s276, %s290
      %p292 = scmp.eq.s32.totalorder %s35, 0
      %p293 = por %p291, %p292
      %s295 = sadd.s32 %s294, 1
      %p298 = scmp.eq.s32.totalorder %s29, 1
      %p299 = scmp.ne.s32.totalorder %s294, %s296
      %p300 = scmp.eq.s32.totalorder %s29, 0
      %p301 = por %p299, %p300
      %p302 = scmp.ne.s32.totalorder %s294, %s296
      %p303 = scmp.eq.s32.totalorder %s34, 1
      %p304 = por %p302, %p303
      %p305 = scmp.ne.s32.totalorder %s296, %s297
      %p306 = scmp.eq.s32.totalorder %s34, 0
      %p307 = por %p305, %p306
      %p308 = scmp.ne.s32.totalorder %s296, %s297
      %p309 = scmp.eq.s32.totalorder %s35, 1
      %p310 = por %p308, %p309
      %p312 = scmp.ne.s32.totalorder %s297, %s311
      %p313 = scmp.eq.s32.totalorder %s35, 0
      %p314 = por %p312, %p313
      %s316 = sadd.s32 %s315, 1
      %p319 = scmp.eq.s32.totalorder %s29, 1
      %p320 = scmp.ne.s32.totalorder %s315, %s317
      %p321 = scmp.eq.s32.totalorder %s29, 0
      %p322 = por %p320, %p321
      %p323 = scmp.ne.s32.totalorder %s315, %s317
      %p324 = scmp.eq.s32.totalorder %s34, 1
      %p325 = por %p323, %p324
      %p326 = scmp.ne.s32.totalorder %s317, %s318
      %p327 = scmp.eq.s32.totalorder %s34, 0
      %p328 = por %p326, %p327
      %p329 = scmp.ne.s32.totalorder %s317, %s318
      %p330 = scmp.eq.s32.totalorder %s35, 1
      %p331 = por %p329, %p330
      %p333 = scmp.ne.s32.totalorder %s318, %s332
      %p334 = scmp.eq.s32.totalorder %s35, 0
      %p335 = por %p333, %p334
      %s337 = sadd.s32 %s336, 1
      %p340 = scmp.eq.s32.totalorder %s29, 1
      %p341 = scmp.ne.s32.totalorder %s336, %s338
      %p342 = scmp.eq.s32.totalorder %s29, 0
      %p343 = por %p341, %p342
      %p344 = scmp.ne.s32.totalorder %s336, %s338
      %p345 = scmp.eq.s32.totalorder %s34, 1
      %p346 = por %p344, %p345
      %p347 = scmp.ne.s32.totalorder %s338, %s339
      %p348 = scmp.eq.s32.totalorder %s34, 0
      %p349 = por %p347, %p348
      %p350 = scmp.ne.s32.totalorder %s338, %s339
      %p351 = scmp.eq.s32.totalorder %s35, 1
      %p352 = por %p350, %p351
      %p354 = scmp.ne.s32.totalorder %s339, %s353
      %p355 = scmp.eq.s32.totalorder %s35, 0
      %p356 = por %p354, %p355
      %s357 = ssub.s32 %s29, %s36
      %p358 = scmp.eq.s32.totalorder %s357, 0
      %s360 = sadd.s32 %s359, 1
      %s361 = scalar_select %p358, %s359, %s360
      %p364 = pneg %p358
      %p365 = scmp.eq.s32.totalorder %s29, 1
      %p366 = por %p364, %p365
      %p367 = scmp.ne.s32.totalorder %s359, %s362
      %p368 = scmp.eq.s32.totalorder %s29, 0
      %p369 = por %p367, %p368
      %p370 = scmp.ne.s32.totalorder %s359, %s362
      %p371 = scmp.eq.s32.totalorder %s34, 1
      %p372 = por %p370, %p371
      %p373 = scmp.ne.s32.totalorder %s362, %s363
      %p374 = scmp.eq.s32.totalorder %s34, 0
      %p375 = por %p373, %p374
      %p376 = scmp.ne.s32.totalorder %s362, %s363
      %p377 = scmp.eq.s32.totalorder %s35, 1
      %p378 = por %p376, %p377
      %p380 = scmp.ne.s32.totalorder %s363, %s379
      %p381 = scmp.eq.s32.totalorder %s35, 0
      %p382 = por %p380, %p381
      %p383 = scmp.le.s32.totalorder 1, %s29
      %p384 = scmp.lt.s32.totalorder %s29, 3
      %p385 = pnand %p383, %p384
      %p386 = pneg %p385
      // Predicated region
      $region9: #{tpu_custom_call.1} parent=5 // pred_check
        _
      $region10: #{tpu_custom_call.1} parent=5 // pred_check_branch
        %388 = sbr.rel (%p385) target = $region12
      $region11: #{tpu_custom_call.1} parent=5 // pred_region
        %s389 = ssub.s32 %s29, 1
        // Predicated region
        $region13: #{tpu_custom_call.1} parent=11 // pred_check
          %p390 = pneg %p76
        $region14: #{tpu_custom_call.1} parent=11 // pred_check_branch
          %392 = sbr.rel (%p390) target = $region16
        $region15: #{tpu_custom_call.1} parent=11 // pred_region
          %s394 = ssub.s32 128, 128
          %395 = vsyncadd [#allocation6], %s394
          %s397 = sshll.u32 [#allocation5], 4
          %s398 = int_to_ptr.vmem [resolvable:$true] %s397
          %400 = dma.hbm_to_vmem [thread:$0]  %s1, 128, %s398, [#allocation6]
        $region16: #{tpu_custom_call.1} parent=11 // pred_fallthru
          _
        // Predicated region
        $region17: #{tpu_custom_call.1} parent=11 // pred_check
          %p401 = pneg %p97
        $region18: #{tpu_custom_call.1} parent=11 // pred_check_branch
          %403 = sbr.rel (%p401) target = $region20
        $region19: #{tpu_custom_call.1} parent=11 // pred_region
          %s405 = ssub.s32 128, 128
          %406 = vsyncadd [#allocation6], %s405
          %s408 = sshll.u32 [#allocation7], 4
          %s409 = int_to_ptr.vmem [resolvable:$true] %s408
          %411 = dma.hbm_to_vmem [thread:$0]  %s2, 128, %s409, [#allocation6]
        $region20: #{tpu_custom_call.1} parent=11 // pred_fallthru
          _
        // Predicated region
        $region21: #{tpu_custom_call.1} parent=11 // pred_check
          %p412 = pneg %p118
        $region22: #{tpu_custom_call.1} parent=11 // pred_check_branch
          %414 = sbr.rel (%p412) target = $region24
        $region23: #{tpu_custom_call.1} parent=11 // pred_region
          _
        $region24: #{tpu_custom_call.1} parent=11 // pred_fallthru
          _
        // Predicated region
        $region25: #{tpu_custom_call.1} parent=11 // pred_check
          %p415 = pneg %p139
        $region26: #{tpu_custom_call.1} parent=11 // pred_check_branch
          %417 = sbr.rel (%p415) target = $region28
        $region27: #{tpu_custom_call.1} parent=11 // pred_region
          _
        $region28: #{tpu_custom_call.1} parent=11 // pred_fallthru
          _
        // Predicated region
        $region29: #{tpu_custom_call.1} parent=11 // pred_check
          %p418 = pneg %p160
        $region30: #{tpu_custom_call.1} parent=11 // pred_check_branch
          %420 = sbr.rel (%p418) target = $region32
        $region31: #{tpu_custom_call.1} parent=11 // pred_region
          _
        $region32: #{tpu_custom_call.1} parent=11 // pred_fallthru
          _
        // Predicated region
        $region33: #{tpu_custom_call.1} parent=11 // pred_check
          %p421 = pneg %p181
        $region34: #{tpu_custom_call.1} parent=11 // pred_check_branch
          %423 = sbr.rel (%p421) target = $region36
        $region35: #{tpu_custom_call.1} parent=11 // pred_region
          %s425 = ssub.s32 32, 32
          %426 = vsyncadd [#allocation9], %s425
          %s427 = sshll.u32 [#allocation8], 4
          %s428 = int_to_ptr.vmem [resolvable:$true] %s427
          %433 = dma.hbm_to_vmem [thread:$0]  %s6, 32, %s428, [#allocation9], 16, 16, 1
        $region36: #{tpu_custom_call.1} parent=11 // pred_fallthru
          _
        // Predicated region
        $region37: #{tpu_custom_call.1} parent=11 // pred_check
          %p434 = pneg %p202
        $region38: #{tpu_custom_call.1} parent=11 // pred_check_branch
          %436 = sbr.rel (%p434) target = $region40
        $region39: #{tpu_custom_call.1} parent=11 // pred_region
          _
        $region40: #{tpu_custom_call.1} parent=11 // pred_fallthru
          _
        // Predicated region
        $region41: #{tpu_custom_call.1} parent=11 // pred_check
          %p437 = pneg %p223
        $region42: #{tpu_custom_call.1} parent=11 // pred_check_branch
          %439 = sbr.rel (%p437) target = $region44
        $region43: #{tpu_custom_call.1} parent=11 // pred_region
          _
        $region44: #{tpu_custom_call.1} parent=11 // pred_fallthru
          _
        // Predicated region
        $region45: #{tpu_custom_call.1} parent=11 // pred_check
          %p440 = pneg %p244
        $region46: #{tpu_custom_call.1} parent=11 // pred_check_branch
          %442 = sbr.rel (%p440) target = $region48
        $region47: #{tpu_custom_call.1} parent=11 // pred_region
          _
        $region48: #{tpu_custom_call.1} parent=11 // pred_fallthru
          _
        // Predicated region
        $region49: #{tpu_custom_call.1} parent=11 // pred_check
          %p443 = pneg %p265
        $region50: #{tpu_custom_call.1} parent=11 // pred_check_branch
          %445 = sbr.rel (%p443) target = $region52
        $region51: #{tpu_custom_call.1} parent=11 // pred_region
          _
        $region52: #{tpu_custom_call.1} parent=11 // pred_fallthru
          _
        // Predicated region
        $region53: #{tpu_custom_call.1} parent=11 // pred_check
          %p446 = pneg %p286
        $region54: #{tpu_custom_call.1} parent=11 // pred_check_branch
          %448 = sbr.rel (%p446) target = $region56
        $region55: #{tpu_custom_call.1} parent=11 // pred_region
          _
        $region56: #{tpu_custom_call.1} parent=11 // pred_fallthru
          _
        // Predicated region
        $region57: #{tpu_custom_call.1} parent=11 // pred_check
          %p449 = pneg %p307
        $region58: #{tpu_custom_call.1} parent=11 // pred_check_branch
          %451 = sbr.rel (%p449) target = $region60
        $region59: #{tpu_custom_call.1} parent=11 // pred_region
          _
        $region60: #{tpu_custom_call.1} parent=11 // pred_fallthru
          _
        // Predicated region
        $region61: #{tpu_custom_call.1} parent=11 // pred_check
          %p452 = pneg %p328
        $region62: #{tpu_custom_call.1} parent=11 // pred_check_branch
          %454 = sbr.rel (%p452) target = $region64
        $region63: #{tpu_custom_call.1} parent=11 // pred_region
          %s456 = ssub.s32 512, 512
          %457 = vsyncadd [#allocation9], %s456
          %s458 = sshll.u32 [#allocation10], 4
          %s459 = int_to_ptr.vmem [resolvable:$true] %s458
          %464 = dma.hbm_to_vmem [thread:$0]  %s13, 512, %s459, [#allocation9], 128, 128, 8
        $region64: #{tpu_custom_call.1} parent=11 // pred_fallthru
          _
        // Predicated region
        $region65: #{tpu_custom_call.1} parent=11 // pred_check
          %p465 = pneg %p349
        $region66: #{tpu_custom_call.1} parent=11 // pred_check_branch
          %467 = sbr.rel (%p465) target = $region68
        $region67: #{tpu_custom_call.1} parent=11 // pred_region
          _
        $region68: #{tpu_custom_call.1} parent=11 // pred_fallthru
          _
      $region12: #{tpu_custom_call.1} parent=5 // pred_fallthru
        _
      %p468 = scmp.lt.s32.totalorder %s29, 2
      // Predicated region
      $region69: #{tpu_custom_call.1} parent=5 // pred_check
        %p469 = pneg %p468
      $region70: #{tpu_custom_call.1} parent=5 // pred_check_branch
        %471 = sbr.rel (%p469) target = $region72
      $region71: #{tpu_custom_call.1} parent=5 // pred_region
        // Predicated region
        $region73: #{tpu_custom_call.1} parent=71 // pred_check
          %p472 = pneg %p49
        $region74: #{tpu_custom_call.1} parent=71 // pred_check_branch
          %474 = sbr.rel (%p472) target = $region76
        $region75: #{tpu_custom_call.1} parent=71 // pred_region
          %s475 = sand.u32 %s39, 1
          %s476 = scalar_lea.sflag [#allocation3], %s475
          %s477 = sand.u32 %s39, 1
          %s478 = smul.addr %s477, 8
          %s479 = scalar_lea.vmem [#allocation2], %s478
          %s481 = ssub.s32 128, 128
          %482 = vsyncadd %s476, %s481
          %s483 = smul.addr %s29, 128
          %s484 = scalar_lea.hbm %s0, %s483
          %s486 = sshll.u32 %s479, 4
          %s487 = int_to_ptr.vmem [resolvable:$true] %s486
          %489 = dma.hbm_to_vmem [thread:$0]  %s484, 128, %s487, %s476
        $region76: #{tpu_custom_call.1} parent=71 // pred_fallthru
          _
      $region72: #{tpu_custom_call.1} parent=5 // pred_fallthru
        _
      %p490 = scmp.le.s32.totalorder 1, %s29
      %p491 = scmp.lt.s32.totalorder %s29, 3
      %p492 = pnand %p490, %p491
      %p493 = pneg %p492
      // Predicated region
      $region77: #{tpu_custom_call.1} parent=5 // pred_check
        _
      $region78: #{tpu_custom_call.1} parent=5 // pred_check_branch
        %495 = sbr.rel (%p492) target = $region80
      $region79: #{tpu_custom_call.1} parent=5 // pred_region
        %s496 = ssub.s32 %s29, 1
        %s497 = sand.u32 %s42, 1
        %s498 = scalar_lea.sflag [#allocation3], %s497
        %s499 = sand.u32 %s42, 1
        %s500 = smul.addr %s499, 8
        %s501 = scalar_lea.vmem [#allocation2], %s500
        // Predicated region
        $region81: #{tpu_custom_call.1} parent=79 // pred_check
          %p502 = pneg %p55
        $region82: #{tpu_custom_call.1} parent=79 // pred_check_branch
          %504 = sbr.rel (%p502) target = $region84
        $region83: #{tpu_custom_call.1} parent=79 // pred_region
          %505 = dma.done %s498, 128
        $region84: #{tpu_custom_call.1} parent=79 // pred_fallthru
          _
        // Predicated region
        $region85: #{tpu_custom_call.1} parent=79 // pred_check
          %p506 = pneg %p76
        $region86: #{tpu_custom_call.1} parent=79 // pred_check_branch
          %508 = sbr.rel (%p506) target = $region88
        $region87: #{tpu_custom_call.1} parent=79 // pred_region
          %509 = dma.done [#allocation6], 128
        $region88: #{tpu_custom_call.1} parent=79 // pred_fallthru
          _
        // Predicated region
        $region89: #{tpu_custom_call.1} parent=79 // pred_check
          %p510 = pneg %p97
        $region90: #{tpu_custom_call.1} parent=79 // pred_check_branch
          %512 = sbr.rel (%p510) target = $region92
        $region91: #{tpu_custom_call.1} parent=79 // pred_region
          %513 = dma.done [#allocation6], 128
        $region92: #{tpu_custom_call.1} parent=79 // pred_fallthru
          _
        // Predicated region
        $region93: #{tpu_custom_call.1} parent=79 // pred_check
          %p514 = pneg %p181
        $region94: #{tpu_custom_call.1} parent=79 // pred_check_branch
          %516 = sbr.rel (%p514) target = $region96
        $region95: #{tpu_custom_call.1} parent=79 // pred_region
          %517 = dma.done [#allocation9], 32
        $region96: #{tpu_custom_call.1} parent=79 // pred_fallthru
          _
        // Predicated region
        $region97: #{tpu_custom_call.1} parent=79 // pred_check
          %p518 = pneg %p328
        $region98: #{tpu_custom_call.1} parent=79 // pred_check_branch
          %520 = sbr.rel (%p518) target = $region100
        $region99: #{tpu_custom_call.1} parent=79 // pred_region
          %521 = dma.done [#allocation9], 512
        $region100: #{tpu_custom_call.1} parent=79 // pred_fallthru
          _
        %s522 = sand.u32 %s42, 1
        %s523 = scalar_lea.sflag [#allocation3], %s522
        %s524 = sand.u32 %s42, 1
        %s525 = smul.addr %s524, 8
        %s526 = scalar_lea.vmem [#allocation2], %s525
        %p527 = pneg %p55
        %p528 = pneg %p52
        %p529 = pneg %p76
        %p530 = pneg %p73
        %p531 = pneg %p97
        %p532 = pneg %p94
        %p533 = pneg %p118
        %p534 = pneg %p115
        %p535 = pneg %p139
        %p536 = pneg %p136
        %p537 = pneg %p160
        %p538 = pneg %p157
        %p539 = pneg %p181
        %p540 = pneg %p178
        %p541 = pneg %p202
        %p542 = pneg %p199
        %p543 = pneg %p223
        %p544 = pneg %p220
        %p545 = pneg %p244
        %p546 = pneg %p241
        %p547 = pneg %p265
        %p548 = pneg %p262
        %p549 = pneg %p286
        %p550 = pneg %p283
        %p551 = pneg %p307
        %p552 = pneg %p304
        %p553 = pneg %p328
        %p554 = pneg %p325
        %p555 = pneg %p349
        %p556 = pneg %p346
        %p557 = pneg %p375
        %p558 = pneg %p372
        %s559 = sand.u32 %s362, 1
        %s560 = scalar_lea.sflag [#allocation4], %s559
        %s561 = sand.u32 %s362, 1
        %s562 = smul.addr %s561, 8
        %s563 = scalar_lea.vmem [#allocation11], %s562
        %v564 = vld [vmem:[%s501] sm:$0xff]
        %v565 = vmul.f32 %v564, 5.656854
        %v566 = vld [vmem:[#allocation5] sm:$0xff]
        %v567 = vadd.f32 %v565, %v566
        %v568 = vld [vmem:[#allocation7] sm:$0xff]
        %v569 = vld [vmem:[%s7] sm:$0xf]
        %vm570 = vcmask 261120
        %v571 = vsel %vm570, %v567, 0.0
        %572 = vadd.xlane.f32.xlu0 %v571
        %v573 = vpop.xlane.xlu0 %572
        %v574 = vrcp.pop 32.0
        %v575 = vmul.f32 %v573, %v574
        %v576 = vsub.f32 %v567, %v575
        %v577 = vmul.f32 %v576, %v576
        %v578 = vsel %vm570, %v577, 0.0
        %579 = vadd.xlane.f32.xlu0 %v578
        %v580 = vpop.xlane.xlu0 %579
        %v581 = vmul.f32 %v580, %v574
        %v582 = vlaneseq
        %v583 = vshrl.u32 %v582, 7
        %v584 = vsub.s32 0, %v583
        %v585 = vrot.slane %v569, %v584
        %v586 = vmul.f32 %v585, %v576
        %v587 = vadd.f32 %v581, 1e-06
        %v588 = vrsqrt.pop %v587
        %v589 = vmul.f32 %v586, %v588
        %v590 = vlaneseq
        %v591 = vshrl.u32 %v590, 7
        %v592 = vsub.s32 1, %v591
        %v593 = vrot.slane %v569, %v592
        %v594 = vadd.f32 %v589, %v593
        %v595 = vld [vmem:[%s3] sm:$0xff]
        %v596 = vld [vmem:[%s3 + $0x8] sm:$0xff]
        %v597 = vld [vmem:[%s3 + $0x10] sm:$0xff]
        %v598 = vld [vmem:[%s3 + $0x18] sm:$0xff]
        %v599 = vld [vmem:[%s4] sm:$0x1]
        %v601 = vlaneseq
        %v602 = vshrl.u32 %v601, 7
        %v603 = vsub.s32 0, %v602
        %v604 = vrot.slane %v599, %v603
        %v607 = vsel %vm570, %v594, 0
        %609 = vmatprep.subr.mxu0 0.0
        %610 = vmatpush1.msra.mxu0 0.0
        %611 = vmatprep.subr.mxu0 0.0
        %612 = vmatpush1.msra.mxu0 0.0
        %613 = vmatprep.subr.mxu0 0.0
        %614 = vmatpush1.msra.mxu0 0.0
        %615 = vmatprep.subr.mxu0 0.0
        %616 = vmatpush1.msra.mxu0 0.0
        %617 = vmatprep.subr.mxu0 0.0
        %618 = vmatpush1.msra.mxu0 0.0
        %619 = vmatprep.subr.mxu0 0.0
        %620 = vmatpush1.msra.mxu0 0.0
        %621 = vmatprep.subr.mxu0 0.0
        %622 = vmatpush1.msra.mxu0 0.0
        %623 = vmatprep.subr.mxu0 0.0
        %624 = vmatpush1.msra.mxu0 0.0
        %625 = vmatprep.subr.mxu0 0.0
        %626 = vmatpush1.msra.mxu0 0.0
        %627 = vmatprep.subr.mxu0 0.0
        %628 = vmatpush1.msra.mxu0 0.0
        %629 = vmatprep.subr.mxu0 0.0
        %630 = vmatpush1.msra.mxu0 0.0
        %631 = vmatprep.subr.mxu0 0.0
        %632 = vmatpush1.msra.mxu0 0.0
        %633 = vmatprep.subr.mxu0 0.0
        %634 = vmatpush1.msra.mxu0 %v598
        %635 = vmatprep.subr.mxu0 0.0
        %636 = vmatpush1.msra.mxu0 %v597
        %637 = vmatprep.subr.mxu0 0.0
        %638 = vmatpush1.msra.mxu0 %v596
        %639 = vmatprep.subr.mxu0 0.0
        %640 = vmatpush1.msra.mxu0 %v595
        %641 = vmatprep.subr.mxu0 0.0
        %642 = vmatpush2.msra.mxu0 0.0
        %643 = vmatprep.subr.mxu0 0.0
        %644 = vmatpush2.msra.mxu0 0.0
        %645 = vmatprep.subr.mxu0 0.0
        %646 = vmatpush2.msra.mxu0 0.0
        %647 = vmatprep.subr.mxu0 0.0
        %648 = vmatpush2.msra.mxu0 0.0
        %649 = vmatprep.subr.mxu0 0.0
        %650 = vmatpush2.msra.mxu0 0.0
        %651 = vmatprep.subr.mxu0 0.0
        %652 = vmatpush2.msra.mxu0 0.0
        %653 = vmatprep.subr.mxu0 0.0
        %654 = vmatpush2.msra.mxu0 0.0
        %655 = vmatprep.subr.mxu0 0.0
        %656 = vmatpush2.msra.mxu0 0.0
        %657 = vmatprep.subr.mxu0 0.0
        %658 = vmatpush2.msra.mxu0 0.0
        %659 = vmatprep.subr.mxu0 0.0
        %660 = vmatpush2.msra.mxu0 0.0
        %661 = vmatprep.subr.mxu0 0.0
        %662 = vmatpush2.msra.mxu0 0.0
        %663 = vmatprep.subr.mxu0 0.0
        %664 = vmatpush2.msra.mxu0 0.0
        %665 = vmatprep.subr.mxu0 0.0
        %666 = vmatpush2.msra.mxu0 0.0
        %667 = vmatprep.subr.mxu0 0.0
        %668 = vmatpush2.msra.mxu0 0.0
        %669 = vmatprep.subr.mxu0 0.0
        %670 = vmatpush2.msra.mxu0 0.0
        %671 = vmatprep.subr.mxu0 0.0
        %672 = vmatpush2.msra.mxu0 0.0
        %673 = vmatprep.mubr.f32.mxu0 0.0
        %674 = vmatmul.mubr.f32.gmra.mxu0 %v607
        %v675 = vpop.f32.mrf.mxu0
        %v676 = vadd.f32 %v604, %v675
        %v677 = vpop.f32.mrf.mxu0
        %678 = vdwg.mxu0
        %680 = vrot.lane.b32.xlu0 %v676, 96
        %v681 = vpop.permute.xlu0 %680
        %vm682 = vcmask 64512
        %v683 = vsel %vm682, %v676, 0
        %v685 = vsel %vm682, %v681, 0
        %687 = vmatprep.subr.mxu0 0.0
        %688 = vmatpush1.xpose.msra.mxu0 0.0
        %689 = vmatprep.subr.mxu0 0.0
        %690 = vmatpush1.xpose.msra.mxu0 0.0
        %691 = vmatprep.subr.mxu0 0.0
        %692 = vmatpush1.xpose.msra.mxu0 0.0
        %693 = vmatprep.subr.mxu0 0.0
        %694 = vmatpush1.xpose.msra.mxu0 0.0
        %695 = vmatprep.subr.mxu0 0.0
        %696 = vmatpush1.xpose.msra.mxu0 0.0
        %697 = vmatprep.subr.mxu0 0.0
        %698 = vmatpush1.xpose.msra.mxu0 0.0
        %699 = vmatprep.subr.mxu0 0.0
        %700 = vmatpush1.xpose.msra.mxu0 0.0
        %701 = vmatprep.subr.mxu0 0.0
        %702 = vmatpush1.xpose.msra.mxu0 0.0
        %703 = vmatprep.subr.mxu0 0.0
        %704 = vmatpush1.xpose.msra.mxu0 0.0
        %705 = vmatprep.subr.mxu0 0.0
        %706 = vmatpush1.xpose.msra.mxu0 0.0
        %707 = vmatprep.subr.mxu0 0.0
        %708 = vmatpush1.xpose.msra.mxu0 0.0
        %709 = vmatprep.subr.mxu0 0.0
        %710 = vmatpush1.xpose.msra.mxu0 0.0
        %711 = vmatprep.subr.mxu0 0.0
        %712 = vmatpush1.xpose.msra.mxu0 0.0
        %713 = vmatprep.subr.mxu0 0.0
        %714 = vmatpush1.xpose.msra.mxu0 0.0
        %715 = vmatprep.subr.mxu0 0.0
        %716 = vmatpush1.xpose.msra.mxu0 0.0
        %717 = vmatprep.subr.mxu0 0.0
        %718 = vmatpush1.xpose.msra.mxu0 %v685
        %719 = vmatprep.subr.mxu0 0.0
        %720 = vmatpush2.xpose.msra.mxu0 0.0
        %721 = vmatprep.subr.mxu0 0.0
        %722 = vmatpush2.xpose.msra.mxu0 0.0
        %723 = vmatprep.subr.mxu0 0.0
        %724 = vmatpush2.xpose.msra.mxu0 0.0
        %725 = vmatprep.subr.mxu0 0.0
        %726 = vmatpush2.xpose.msra.mxu0 0.0
        %727 = vmatprep.subr.mxu0 0.0
        %728 = vmatpush2.xpose.msra.mxu0 0.0
        %729 = vmatprep.subr.mxu0 0.0
        %730 = vmatpush2.xpose.msra.mxu0 0.0
        %731 = vmatprep.subr.mxu0 0.0
        %732 = vmatpush2.xpose.msra.mxu0 0.0
        %733 = vmatprep.subr.mxu0 0.0
        %734 = vmatpush2.xpose.msra.mxu0 0.0
        %735 = vmatprep.subr.mxu0 0.0
        %736 = vmatpush2.xpose.msra.mxu0 0.0
        %737 = vmatprep.subr.mxu0 0.0
        %738 = vmatpush2.xpose.msra.mxu0 0.0
        %739 = vmatprep.subr.mxu0 0.0
        %740 = vmatpush2.xpose.msra.mxu0 0.0
        %741 = vmatprep.subr.mxu0 0.0
        %742 = vmatpush2.xpose.msra.mxu0 0.0
        %743 = vmatprep.subr.mxu0 0.0
        %744 = vmatpush2.xpose.msra.mxu0 0.0
        %745 = vmatprep.subr.mxu0 0.0
        %746 = vmatpush2.xpose.msra.mxu0 0.0
        %747 = vmatprep.subr.mxu0 0.0
        %748 = vmatpush2.xpose.msra.mxu0 0.0
        %749 = vmatprep.subr.mxu0 0.0
        %750 = vmatpush2.xpose.msra.mxu0 0.0
        %751 = vmatprep.mubr.f32.mxu0 0.0
        %752 = vmatmul.mubr.f32.gmra.mxu0 %v683
        %v753 = vpop.f32.mrf.mxu0
        %v754 = vadd.f32 0.0, %v753
        %v755 = vpop.f32.mrf.mxu0
        %756 = vdwg.mxu0
        %v757 = vmul.f32 %v754, 0.35355338
        %v758 = vadd.f32 %v757, %v568
        %v759 = vsel %vm682, %v758, -inf
        %760 = vmax.xlane.f32.xlu0 %v759
        %v761 = vpop.xlane.xlu0 %760
        %v762 = vsub.f32 %v758, %v761
        %v763 = vmul.f32 %v762, 1.442695
        %v764 = vpow.pop %v763
        %v765 = vsel %vm682, %v764, 0.0
        %766 = vadd.xlane.f32.xlu0 %v765
        %v767 = vpop.xlane.xlu0 %766
        %v768 = vrcp.pop %v767
        %v769 = vmul.f32 %v764, %v768
        %770 = vrot.lane.b32.xlu0 %v676, 64
        %v771 = vpop.permute.xlu0 %770
        %v774 = vsel %vm682, %v769, 0
        %776 = vmatprep.subr.mxu0 0.0
        %777 = vmatpush1.msra.mxu0 0.0
        %778 = vmatprep.subr.mxu0 0.0
        %779 = vmatpush1.msra.mxu0 0.0
        %780 = vmatprep.subr.mxu0 0.0
        %781 = vmatpush1.msra.mxu0 0.0
        %782 = vmatprep.subr.mxu0 0.0
        %783 = vmatpush1.msra.mxu0 0.0
        %784 = vmatprep.subr.mxu0 0.0
        %785 = vmatpush1.msra.mxu0 0.0
        %786 = vmatprep.subr.mxu0 0.0
        %787 = vmatpush1.msra.mxu0 0.0
        %788 = vmatprep.subr.mxu0 0.0
        %789 = vmatpush1.msra.mxu0 0.0
        %790 = vmatprep.subr.mxu0 0.0
        %791 = vmatpush1.msra.mxu0 0.0
        %792 = vmatprep.subr.mxu0 0.0
        %793 = vmatpush1.msra.mxu0 0.0
        %794 = vmatprep.subr.mxu0 0.0
        %795 = vmatpush1.msra.mxu0 0.0
        %796 = vmatprep.subr.mxu0 0.0
        %797 = vmatpush1.msra.mxu0 0.0
        %798 = vmatprep.subr.mxu0 0.0
        %799 = vmatpush1.msra.mxu0 0.0
        %800 = vmatprep.subr.mxu0 0.0
        %801 = vmatpush1.msra.mxu0 0.0
        %802 = vmatprep.subr.mxu0 0.0
        %803 = vmatpush1.msra.mxu0 0.0
        %804 = vmatprep.subr.mxu0 0.0
        %805 = vmatpush1.msra.mxu0 0.0
        %806 = vmatprep.subr.mxu0 0.0
        %807 = vmatpush1.msra.mxu0 %v771
        %808 = vmatprep.subr.mxu0 0.0
        %809 = vmatpush2.msra.mxu0 0.0
        %810 = vmatprep.subr.mxu0 0.0
        %811 = vmatpush2.msra.mxu0 0.0
        %812 = vmatprep.subr.mxu0 0.0
        %813 = vmatpush2.msra.mxu0 0.0
        %814 = vmatprep.subr.mxu0 0.0
        %815 = vmatpush2.msra.mxu0 0.0
        %816 = vmatprep.subr.mxu0 0.0
        %817 = vmatpush2.msra.mxu0 0.0
        %818 = vmatprep.subr.mxu0 0.0
        %819 = vmatpush2.msra.mxu0 0.0
        %820 = vmatprep.subr.mxu0 0.0
        %821 = vmatpush2.msra.mxu0 0.0
        %822 = vmatprep.subr.mxu0 0.0
        %823 = vmatpush2.msra.mxu0 0.0
        %824 = vmatprep.subr.mxu0 0.0
        %825 = vmatpush2.msra.mxu0 0.0
        %826 = vmatprep.subr.mxu0 0.0
        %827 = vmatpush2.msra.mxu0 0.0
        %828 = vmatprep.subr.mxu0 0.0
        %829 = vmatpush2.msra.mxu0 0.0
        %830 = vmatprep.subr.mxu0 0.0
        %831 = vmatpush2.msra.mxu0 0.0
        %832 = vmatprep.subr.mxu0 0.0
        %833 = vmatpush2.msra.mxu0 0.0
        %834 = vmatprep.subr.mxu0 0.0
        %835 = vmatpush2.msra.mxu0 0.0
        %836 = vmatprep.subr.mxu0 0.0
        %837 = vmatpush2.msra.mxu0 0.0
        %838 = vmatprep.subr.mxu0 0.0
        %839 = vmatpush2.msra.mxu0 0.0
        %840 = vmatprep.mubr.f32.mxu0 0.0
        %841 = vmatmul.mubr.f32.gmra.mxu0 %v774
        %v842 = vpop.f32.mrf.mxu0
        %v843 = vadd.f32 0.0, %v842
        %v844 = vpop.f32.mrf.mxu0
        %845 = vdwg.mxu0
        %846 = vrot.lane.b32.xlu0 %v676, 120
        %v847 = vpop.permute.xlu0 %846
        %848 = vrot.lane.b32.xlu0 %v676, 88
        %v849 = vpop.permute.xlu0 %848
        %v850 = vsel %vm682, %v847, 0
        %v852 = vsel %vm682, %v849, 0
        %854 = vmatprep.subr.mxu0 0.0
        %855 = vmatpush1.xpose.msra.mxu0 0.0
        %856 = vmatprep.subr.mxu0 0.0
        %857 = vmatpush1.xpose.msra.mxu0 0.0
        %858 = vmatprep.subr.mxu0 0.0
        %859 = vmatpush1.xpose.msra.mxu0 0.0
        %860 = vmatprep.subr.mxu0 0.0
        %861 = vmatpush1.xpose.msra.mxu0 0.0
        %862 = vmatprep.subr.mxu0 0.0
        %863 = vmatpush1.xpose.msra.mxu0 0.0
        %864 = vmatprep.subr.mxu0 0.0
        %865 = vmatpush1.xpose.msra.mxu0 0.0
        %866 = vmatprep.subr.mxu0 0.0
        %867 = vmatpush1.xpose.msra.mxu0 0.0
        %868 = vmatprep.subr.mxu0 0.0
        %869 = vmatpush1.xpose.msra.mxu0 0.0
        %870 = vmatprep.subr.mxu0 0.0
        %871 = vmatpush1.xpose.msra.mxu0 0.0
        %872 = vmatprep.subr.mxu0 0.0
        %873 = vmatpush1.xpose.msra.mxu0 0.0
        %874 = vmatprep.subr.mxu0 0.0
        %875 = vmatpush1.xpose.msra.mxu0 0.0
        %876 = vmatprep.subr.mxu0 0.0
        %877 = vmatpush1.xpose.msra.mxu0 0.0
        %878 = vmatprep.subr.mxu0 0.0
        %879 = vmatpush1.xpose.msra.mxu0 0.0
        %880 = vmatprep.subr.mxu0 0.0
        %881 = vmatpush1.xpose.msra.mxu0 0.0
        %882 = vmatprep.subr.mxu0 0.0
        %883 = vmatpush1.xpose.msra.mxu0 0.0
        %884 = vmatprep.subr.mxu0 0.0
        %885 = vmatpush1.xpose.msra.mxu0 %v852
        %886 = vmatprep.subr.mxu0 0.0
        %887 = vmatpush2.xpose.msra.mxu0 0.0
        %888 = vmatprep.subr.mxu0 0.0
        %889 = vmatpush2.xpose.msra.mxu0 0.0
        %890 = vmatprep.subr.mxu0 0.0
        %891 = vmatpush2.xpose.msra.mxu0 0.0
        %892 = vmatprep.subr.mxu0 0.0
        %893 = vmatpush2.xpose.msra.mxu0 0.0
        %894 = vmatprep.subr.mxu0 0.0
        %895 = vmatpush2.xpose.msra.mxu0 0.0
        %896 = vmatprep.subr.mxu0 0.0
        %897 = vmatpush2.xpose.msra.mxu0 0.0
        %898 = vmatprep.subr.mxu0 0.0
        %899 = vmatpush2.xpose.msra.mxu0 0.0
        %900 = vmatprep.subr.mxu0 0.0
        %901 = vmatpush2.xpose.msra.mxu0 0.0
        %902 = vmatprep.subr.mxu0 0.0
        %903 = vmatpush2.xpose.msra.mxu0 0.0
        %904 = vmatprep.subr.mxu0 0.0
        %905 = vmatpush2.xpose.msra.mxu0 0.0
        %906 = vmatprep.subr.mxu0 0.0
        %907 = vmatpush2.xpose.msra.mxu0 0.0
        %908 = vmatprep.subr.mxu0 0.0
        %909 = vmatpush2.xpose.msra.mxu0 0.0
        %910 = vmatprep.subr.mxu0 0.0
        %911 = vmatpush2.xpose.msra.mxu0 0.0
        %912 = vmatprep.subr.mxu0 0.0
        %913 = vmatpush2.xpose.msra.mxu0 0.0
        %914 = vmatprep.subr.mxu0 0.0
        %915 = vmatpush2.xpose.msra.mxu0 0.0
        %916 = vmatprep.subr.mxu0 0.0
        %917 = vmatpush2.xpose.msra.mxu0 0.0
        %918 = vmatprep.mubr.f32.mxu0 0.0
        %919 = vmatmul.mubr.f32.gmra.mxu0 %v850
        %v920 = vpop.f32.mrf.mxu0
        %v921 = vadd.f32 0.0, %v920
        %v922 = vpop.f32.mrf.mxu0
        %923 = vdwg.mxu0
        %v924 = vmul.f32 %v921, 0.35355338
        %v925 = vadd.f32 %v924, %v568
        %v926 = vsel %vm682, %v925, -inf
        %927 = vmax.xlane.f32.xlu0 %v926
        %v928 = vpop.xlane.xlu0 %927
        %v929 = vsub.f32 %v925, %v928
        %v930 = vmul.f32 %v929, 1.442695
        %v931 = vpow.pop %v930
        %v932 = vsel %vm682, %v931, 0.0
        %933 = vadd.xlane.f32.xlu0 %v932
        %v934 = vpop.xlane.xlu0 %933
        %v935 = vrcp.pop %v934
        %v936 = vmul.f32 %v931, %v935
        %937 = vrot.lane.b32.xlu0 %v676, 56
        %v938 = vpop.permute.xlu0 %937
        %v941 = vsel %vm682, %v936, 0
        %943 = vmatprep.subr.mxu0 0.0
        %944 = vmatpush1.msra.mxu0 0.0
        %945 = vmatprep.subr.mxu0 0.0
        %946 = vmatpush1.msra.mxu0 0.0
        %947 = vmatprep.subr.mxu0 0.0
        %948 = vmatpush1.msra.mxu0 0.0
        %949 = vmatprep.subr.mxu0 0.0
        %950 = vmatpush1.msra.mxu0 0.0
        %951 = vmatprep.subr.mxu0 0.0
        %952 = vmatpush1.msra.mxu0 0.0
        %953 = vmatprep.subr.mxu0 0.0
        %954 = vmatpush1.msra.mxu0 0.0
        %955 = vmatprep.subr.mxu0 0.0
        %956 = vmatpush1.msra.mxu0 0.0
        %957 = vmatprep.subr.mxu0 0.0
        %958 = vmatpush1.msra.mxu0 0.0
        %959 = vmatprep.subr.mxu0 0.0
        %960 = vmatpush1.msra.mxu0 0.0
        %961 = vmatprep.subr.mxu0 0.0
        %962 = vmatpush1.msra.mxu0 0.0
        %963 = vmatprep.subr.mxu0 0.0
        %964 = vmatpush1.msra.mxu0 0.0
        %965 = vmatprep.subr.mxu0 0.0
        %966 = vmatpush1.msra.mxu0 0.0
        %967 = vmatprep.subr.mxu0 0.0
        %968 = vmatpush1.msra.mxu0 0.0
        %969 = vmatprep.subr.mxu0 0.0
        %970 = vmatpush1.msra.mxu0 0.0
        %971 = vmatprep.subr.mxu0 0.0
        %972 = vmatpush1.msra.mxu0 0.0
        %973 = vmatprep.subr.mxu0 0.0
        %974 = vmatpush1.msra.mxu0 %v938
        %975 = vmatprep.subr.mxu0 0.0
        %976 = vmatpush2.msra.mxu0 0.0
        %977 = vmatprep.subr.mxu0 0.0
        %978 = vmatpush2.msra.mxu0 0.0
        %979 = vmatprep.subr.mxu0 0.0
        %980 = vmatpush2.msra.mxu0 0.0
        %981 = vmatprep.subr.mxu0 0.0
        %982 = vmatpush2.msra.mxu0 0.0
        %983 = vmatprep.subr.mxu0 0.0
        %984 = vmatpush2.msra.mxu0 0.0
        %985 = vmatprep.subr.mxu0 0.0
        %986 = vmatpush2.msra.mxu0 0.0
        %987 = vmatprep.subr.mxu0 0.0
        %988 = vmatpush2.msra.mxu0 0.0
        %989 = vmatprep.subr.mxu0 0.0
        %990 = vmatpush2.msra.mxu0 0.0
        %991 = vmatprep.subr.mxu0 0.0
        %992 = vmatpush2.msra.mxu0 0.0
        %993 = vmatprep.subr.mxu0 0.0
        %994 = vmatpush2.msra.mxu0 0.0
        %995 = vmatprep.subr.mxu0 0.0
        %996 = vmatpush2.msra.mxu0 0.0
        %997 = vmatprep.subr.mxu0 0.0
        %998 = vmatpush2.msra.mxu0 0.0
        %999 = vmatprep.subr.mxu0 0.0
        %1000 = vmatpush2.msra.mxu0 0.0
        %1001 = vmatprep.subr.mxu0 0.0
        %1002 = vmatpush2.msra.mxu0 0.0
        %1003 = vmatprep.subr.mxu0 0.0
        %1004 = vmatpush2.msra.mxu0 0.0
        %1005 = vmatprep.subr.mxu0 0.0
        %1006 = vmatpush2.msra.mxu0 0.0
        %1007 = vmatprep.mubr.f32.mxu0 0.0
        %1008 = vmatmul.mubr.f32.gmra.mxu0 %v941
        %v1009 = vpop.f32.mrf.mxu0
        %v1010 = vadd.f32 0.0, %v1009
        %v1011 = vpop.f32.mrf.mxu0
        %1012 = vdwg.mxu0
        %1013 = vrot.lane.b32.xlu0 %v676, 112
        %v1014 = vpop.permute.xlu0 %1013
        %1015 = vrot.lane.b32.xlu0 %v676, 80
        %v1016 = vpop.permute.xlu0 %1015
        %v1017 = vsel %vm682, %v1014, 0
        %v1019 = vsel %vm682, %v1016, 0
        %1021 = vmatprep.subr.mxu0 0.0
        %1022 = vmatpush1.xpose.msra.mxu0 0.0
        %1023 = vmatprep.subr.mxu0 0.0
        %1024 = vmatpush1.xpose.msra.mxu0 0.0
        %1025 = vmatprep.subr.mxu0 0.0
        %1026 = vmatpush1.xpose.msra.mxu0 0.0
        %1027 = vmatprep.subr.mxu0 0.0
        %1028 = vmatpush1.xpose.msra.mxu0 0.0
        %1029 = vmatprep.subr.mxu0 0.0
        %1030 = vmatpush1.xpose.msra.mxu0 0.0
        %1031 = vmatprep.subr.mxu0 0.0
        %1032 = vmatpush1.xpose.msra.mxu0 0.0
        %1033 = vmatprep.subr.mxu0 0.0
        %1034 = vmatpush1.xpose.msra.mxu0 0.0
        %1035 = vmatprep.subr.mxu0 0.0
        %1036 = vmatpush1.xpose.msra.mxu0 0.0
        %1037 = vmatprep.subr.mxu0 0.0
        %1038 = vmatpush1.xpose.msra.mxu0 0.0
        %1039 = vmatprep.subr.mxu0 0.0
        %1040 = vmatpush1.xpose.msra.mxu0 0.0
        %1041 = vmatprep.subr.mxu0 0.0
        %1042 = vmatpush1.xpose.msra.mxu0 0.0
        %1043 = vmatprep.subr.mxu0 0.0
        %1044 = vmatpush1.xpose.msra.mxu0 0.0
        %1045 = vmatprep.subr.mxu0 0.0
        %1046 = vmatpush1.xpose.msra.mxu0 0.0
        %1047 = vmatprep.subr.mxu0 0.0
        %1048 = vmatpush1.xpose.msra.mxu0 0.0
        %1049 = vmatprep.subr.mxu0 0.0
        %1050 = vmatpush1.xpose.msra.mxu0 0.0
        %1051 = vmatprep.subr.mxu0 0.0
        %1052 = vmatpush1.xpose.msra.mxu0 %v1019
        %1053 = vmatprep.subr.mxu0 0.0
        %1054 = vmatpush2.xpose.msra.mxu0 0.0
        %1055 = vmatprep.subr.mxu0 0.0
        %1056 = vmatpush2.xpose.msra.mxu0 0.0
        %1057 = vmatprep.subr.mxu0 0.0
        %1058 = vmatpush2.xpose.msra.mxu0 0.0
        %1059 = vmatprep.subr.mxu0 0.0
        %1060 = vmatpush2.xpose.msra.mxu0 0.0
        %1061 = vmatprep.subr.mxu0 0.0
        %1062 = vmatpush2.xpose.msra.mxu0 0.0
        %1063 = vmatprep.subr.mxu0 0.0
        %1064 = vmatpush2.xpose.msra.mxu0 0.0
        %1065 = vmatprep.subr.mxu0 0.0
        %1066 = vmatpush2.xpose.msra.mxu0 0.0
        %1067 = vmatprep.subr.mxu0 0.0
        %1068 = vmatpush2.xpose.msra.mxu0 0.0
        %1069 = vmatprep.subr.mxu0 0.0
        %1070 = vmatpush2.xpose.msra.mxu0 0.0
        %1071 = vmatprep.subr.mxu0 0.0
        %1072 = vmatpush2.xpose.msra.mxu0 0.0
        %1073 = vmatprep.subr.mxu0 0.0
        %1074 = vmatpush2.xpose.msra.mxu0 0.0
        %1075 = vmatprep.subr.mxu0 0.0
        %1076 = vmatpush2.xpose.msra.mxu0 0.0
        %1077 = vmatprep.subr.mxu0 0.0
        %1078 = vmatpush2.xpose.msra.mxu0 0.0
        %1079 = vmatprep.subr.mxu0 0.0
        %1080 = vmatpush2.xpose.msra.mxu0 0.0
        %1081 = vmatprep.subr.mxu0 0.0
        %1082 = vmatpush2.xpose.msra.mxu0 0.0
        %1083 = vmatprep.subr.mxu0 0.0
        %1084 = vmatpush2.xpose.msra.mxu0 0.0
        %1085 = vmatprep.mubr.f32.mxu0 0.0
        %1086 = vmatmul.mubr.f32.gmra.mxu0 %v1017
        %v1087 = vpop.f32.mrf.mxu0
        %v1088 = vadd.f32 0.0, %v1087
        %v1089 = vpop.f32.mrf.mxu0
        %1090 = vdwg.mxu0
        %v1091 = vmul.f32 %v1088, 0.35355338
        %v1092 = vadd.f32 %v1091, %v568
        %v1093 = vsel %vm682, %v1092, -inf
        %1094 = vmax.xlane.f32.xlu0 %v1093
        %v1095 = vpop.xlane.xlu0 %1094
        %v1096 = vsub.f32 %v1092, %v1095
        %v1097 = vmul.f32 %v1096, 1.442695
        %v1098 = vpow.pop %v1097
        %v1099 = vsel %vm682, %v1098, 0.0
        %1100 = vadd.xlane.f32.xlu0 %v1099
        %v1101 = vpop.xlane.xlu0 %1100
        %v1102 = vrcp.pop %v1101
        %v1103 = vmul.f32 %v1098, %v1102
        %1104 = vrot.lane.b32.xlu0 %v676, 48
        %v1105 = vpop.permute.xlu0 %1104
        %v1108 = vsel %vm682, %v1103, 0
        %1110 = vmatprep.subr.mxu0 0.0
        %1111 = vmatpush1.msra.mxu0 0.0
        %1112 = vmatprep.subr.mxu0 0.0
        %1113 = vmatpush1.msra.mxu0 0.0
        %1114 = vmatprep.subr.mxu0 0.0
        %1115 = vmatpush1.msra.mxu0 0.0
        %1116 = vmatprep.subr.mxu0 0.0
        %1117 = vmatpush1.msra.mxu0 0.0
        %1118 = vmatprep.subr.mxu0 0.0
        %1119 = vmatpush1.msra.mxu0 0.0
        %1120 = vmatprep.subr.mxu0 0.0
        %1121 = vmatpush1.msra.mxu0 0.0
        %1122 = vmatprep.subr.mxu0 0.0
        %1123 = vmatpush1.msra.mxu0 0.0
        %1124 = vmatprep.subr.mxu0 0.0
        %1125 = vmatpush1.msra.mxu0 0.0
        %1126 = vmatprep.subr.mxu0 0.0
        %1127 = vmatpush1.msra.mxu0 0.0
        %1128 = vmatprep.subr.mxu0 0.0
        %1129 = vmatpush1.msra.mxu0 0.0
        %1130 = vmatprep.subr.mxu0 0.0
        %1131 = vmatpush1.msra.mxu0 0.0
        %1132 = vmatprep.subr.mxu0 0.0
        %1133 = vmatpush1.msra.mxu0 0.0
        %1134 = vmatprep.subr.mxu0 0.0
        %1135 = vmatpush1.msra.mxu0 0.0
        %1136 = vmatprep.subr.mxu0 0.0
        %1137 = vmatpush1.msra.mxu0 0.0
        %1138 = vmatprep.subr.mxu0 0.0
        %1139 = vmatpush1.msra.mxu0 0.0
        %1140 = vmatprep.subr.mxu0 0.0
        %1141 = vmatpush1.msra.mxu0 %v1105
        %1142 = vmatprep.subr.mxu0 0.0
        %1143 = vmatpush2.msra.mxu0 0.0
        %1144 = vmatprep.subr.mxu0 0.0
        %1145 = vmatpush2.msra.mxu0 0.0
        %1146 = vmatprep.subr.mxu0 0.0
        %1147 = vmatpush2.msra.mxu0 0.0
        %1148 = vmatprep.subr.mxu0 0.0
        %1149 = vmatpush2.msra.mxu0 0.0
        %1150 = vmatprep.subr.mxu0 0.0
        %1151 = vmatpush2.msra.mxu0 0.0
        %1152 = vmatprep.subr.mxu0 0.0
        %1153 = vmatpush2.msra.mxu0 0.0
        %1154 = vmatprep.subr.mxu0 0.0
        %1155 = vmatpush2.msra.mxu0 0.0
        %1156 = vmatprep.subr.mxu0 0.0
        %1157 = vmatpush2.msra.mxu0 0.0
        %1158 = vmatprep.subr.mxu0 0.0
        %1159 = vmatpush2.msra.mxu0 0.0
        %1160 = vmatprep.subr.mxu0 0.0
        %1161 = vmatpush2.msra.mxu0 0.0
        %1162 = vmatprep.subr.mxu0 0.0
        %1163 = vmatpush2.msra.mxu0 0.0
        %1164 = vmatprep.subr.mxu0 0.0
        %1165 = vmatpush2.msra.mxu0 0.0
        %1166 = vmatprep.subr.mxu0 0.0
        %1167 = vmatpush2.msra.mxu0 0.0
        %1168 = vmatprep.subr.mxu0 0.0
        %1169 = vmatpush2.msra.mxu0 0.0
        %1170 = vmatprep.subr.mxu0 0.0
        %1171 = vmatpush2.msra.mxu0 0.0
        %1172 = vmatprep.subr.mxu0 0.0
        %1173 = vmatpush2.msra.mxu0 0.0
        %1174 = vmatprep.mubr.f32.mxu0 0.0
        %1175 = vmatmul.mubr.f32.gmra.mxu0 %v1108
        %v1176 = vpop.f32.mrf.mxu0
        %v1177 = vadd.f32 0.0, %v1176
        %v1178 = vpop.f32.mrf.mxu0
        %1179 = vdwg.mxu0
        %1180 = vrot.lane.b32.xlu0 %v676, 104
        %v1181 = vpop.permute.xlu0 %1180
        %1182 = vrot.lane.b32.xlu0 %v676, 72
        %v1183 = vpop.permute.xlu0 %1182
        %v1184 = vsel %vm682, %v1181, 0
        %v1186 = vsel %vm682, %v1183, 0
        %1188 = vmatprep.subr.mxu0 0.0
        %1189 = vmatpush1.xpose.msra.mxu0 0.0
        %1190 = vmatprep.subr.mxu0 0.0
        %1191 = vmatpush1.xpose.msra.mxu0 0.0
        %1192 = vmatprep.subr.mxu0 0.0
        %1193 = vmatpush1.xpose.msra.mxu0 0.0
        %1194 = vmatprep.subr.mxu0 0.0
        %1195 = vmatpush1.xpose.msra.mxu0 0.0
        %1196 = vmatprep.subr.mxu0 0.0
        %1197 = vmatpush1.xpose.msra.mxu0 0.0
        %1198 = vmatprep.subr.mxu0 0.0
        %1199 = vmatpush1.xpose.msra.mxu0 0.0
        %1200 = vmatprep.subr.mxu0 0.0
        %1201 = vmatpush1.xpose.msra.mxu0 0.0
        %1202 = vmatprep.subr.mxu0 0.0
        %1203 = vmatpush1.xpose.msra.mxu0 0.0
        %1204 = vmatprep.subr.mxu0 0.0
        %1205 = vmatpush1.xpose.msra.mxu0 0.0
        %1206 = vmatprep.subr.mxu0 0.0
        %1207 = vmatpush1.xpose.msra.mxu0 0.0
        %1208 = vmatprep.subr.mxu0 0.0
        %1209 = vmatpush1.xpose.msra.mxu0 0.0
        %1210 = vmatprep.subr.mxu0 0.0
        %1211 = vmatpush1.xpose.msra.mxu0 0.0
        %1212 = vmatprep.subr.mxu0 0.0
        %1213 = vmatpush1.xpose.msra.mxu0 0.0
        %1214 = vmatprep.subr.mxu0 0.0
        %1215 = vmatpush1.xpose.msra.mxu0 0.0
        %1216 = vmatprep.subr.mxu0 0.0
        %1217 = vmatpush1.xpose.msra.mxu0 0.0
        %1218 = vmatprep.subr.mxu0 0.0
        %1219 = vmatpush1.xpose.msra.mxu0 %v1186
        %1220 = vmatprep.subr.mxu0 0.0
        %1221 = vmatpush2.xpose.msra.mxu0 0.0
        %1222 = vmatprep.subr.mxu0 0.0
        %1223 = vmatpush2.xpose.msra.mxu0 0.0
        %1224 = vmatprep.subr.mxu0 0.0
        %1225 = vmatpush2.xpose.msra.mxu0 0.0
        %1226 = vmatprep.subr.mxu0 0.0
        %1227 = vmatpush2.xpose.msra.mxu0 0.0
        %1228 = vmatprep.subr.mxu0 0.0
        %1229 = vmatpush2.xpose.msra.mxu0 0.0
        %1230 = vmatprep.subr.mxu0 0.0
        %1231 = vmatpush2.xpose.msra.mxu0 0.0
        %1232 = vmatprep.subr.mxu0 0.0
        %1233 = vmatpush2.xpose.msra.mxu0 0.0
        %1234 = vmatprep.subr.mxu0 0.0
        %1235 = vmatpush2.xpose.msra.mxu0 0.0
        %1236 = vmatprep.subr.mxu0 0.0
        %1237 = vmatpush2.xpose.msra.mxu0 0.0
        %1238 = vmatprep.subr.mxu0 0.0
        %1239 = vmatpush2.xpose.msra.mxu0 0.0
        %1240 = vmatprep.subr.mxu0 0.0
        %1241 = vmatpush2.xpose.msra.mxu0 0.0
        %1242 = vmatprep.subr.mxu0 0.0
        %1243 = vmatpush2.xpose.msra.mxu0 0.0
        %1244 = vmatprep.subr.mxu0 0.0
        %1245 = vmatpush2.xpose.msra.mxu0 0.0
        %1246 = vmatprep.subr.mxu0 0.0
        %1247 = vmatpush2.xpose.msra.mxu0 0.0
        %1248 = vmatprep.subr.mxu0 0.0
        %1249 = vmatpush2.xpose.msra.mxu0 0.0
        %1250 = vmatprep.subr.mxu0 0.0
        %1251 = vmatpush2.xpose.msra.mxu0 0.0
        %1252 = vmatprep.mubr.f32.mxu0 0.0
        %1253 = vmatmul.mubr.f32.gmra.mxu0 %v1184
        %v1254 = vpop.f32.mrf.mxu0
        %v1255 = vadd.f32 0.0, %v1254
        %v1256 = vpop.f32.mrf.mxu0
        %1257 = vdwg.mxu0
        %v1258 = vmul.f32 %v1255, 0.35355338
        %v1259 = vadd.f32 %v1258, %v568
        %v1260 = vsel %vm682, %v1259, -inf
        %1261 = vmax.xlane.f32.xlu0 %v1260
        %v1262 = vpop.xlane.xlu0 %1261
        %v1263 = vsub.f32 %v1259, %v1262
        %v1264 = vmul.f32 %v1263, 1.442695
        %v1265 = vpow.pop %v1264
        %v1266 = vsel %vm682, %v1265, 0.0
        %1267 = vadd.xlane.f32.xlu0 %v1266
        %v1268 = vpop.xlane.xlu0 %1267
        %v1269 = vrcp.pop %v1268
        %v1270 = vmul.f32 %v1265, %v1269
        %1271 = vrot.lane.b32.xlu0 %v676, 40
        %v1272 = vpop.permute.xlu0 %1271
        %v1275 = vsel %vm682, %v1270, 0
        %1277 = vmatprep.subr.mxu0 0.0
        %1278 = vmatpush1.msra.mxu0 0.0
        %1279 = vmatprep.subr.mxu0 0.0
        %1280 = vmatpush1.msra.mxu0 0.0
        %1281 = vmatprep.subr.mxu0 0.0
        %1282 = vmatpush1.msra.mxu0 0.0
        %1283 = vmatprep.subr.mxu0 0.0
        %1284 = vmatpush1.msra.mxu0 0.0
        %1285 = vmatprep.subr.mxu0 0.0
        %1286 = vmatpush1.msra.mxu0 0.0
        %1287 = vmatprep.subr.mxu0 0.0
        %1288 = vmatpush1.msra.mxu0 0.0
        %1289 = vmatprep.subr.mxu0 0.0
        %1290 = vmatpush1.msra.mxu0 0.0
        %1291 = vmatprep.subr.mxu0 0.0
        %1292 = vmatpush1.msra.mxu0 0.0
        %1293 = vmatprep.subr.mxu0 0.0
        %1294 = vmatpush1.msra.mxu0 0.0
        %1295 = vmatprep.subr.mxu0 0.0
        %1296 = vmatpush1.msra.mxu0 0.0
        %1297 = vmatprep.subr.mxu0 0.0
        %1298 = vmatpush1.msra.mxu0 0.0
        %1299 = vmatprep.subr.mxu0 0.0
        %1300 = vmatpush1.msra.mxu0 0.0
        %1301 = vmatprep.subr.mxu0 0.0
        %1302 = vmatpush1.msra.mxu0 0.0
        %1303 = vmatprep.subr.mxu0 0.0
        %1304 = vmatpush1.msra.mxu0 0.0
        %1305 = vmatprep.subr.mxu0 0.0
        %1306 = vmatpush1.msra.mxu0 0.0
        %1307 = vmatprep.subr.mxu0 0.0
        %1308 = vmatpush1.msra.mxu0 %v1272
        %1309 = vmatprep.subr.mxu0 0.0
        %1310 = vmatpush2.msra.mxu0 0.0
        %1311 = vmatprep.subr.mxu0 0.0
        %1312 = vmatpush2.msra.mxu0 0.0
        %1313 = vmatprep.subr.mxu0 0.0
        %1314 = vmatpush2.msra.mxu0 0.0
        %1315 = vmatprep.subr.mxu0 0.0
        %1316 = vmatpush2.msra.mxu0 0.0
        %1317 = vmatprep.subr.mxu0 0.0
        %1318 = vmatpush2.msra.mxu0 0.0
        %1319 = vmatprep.subr.mxu0 0.0
        %1320 = vmatpush2.msra.mxu0 0.0
        %1321 = vmatprep.subr.mxu0 0.0
        %1322 = vmatpush2.msra.mxu0 0.0
        %1323 = vmatprep.subr.mxu0 0.0
        %1324 = vmatpush2.msra.mxu0 0.0
        %1325 = vmatprep.subr.mxu0 0.0
        %1326 = vmatpush2.msra.mxu0 0.0
        %1327 = vmatprep.subr.mxu0 0.0
        %1328 = vmatpush2.msra.mxu0 0.0
        %1329 = vmatprep.subr.mxu0 0.0
        %1330 = vmatpush2.msra.mxu0 0.0
        %1331 = vmatprep.subr.mxu0 0.0
        %1332 = vmatpush2.msra.mxu0 0.0
        %1333 = vmatprep.subr.mxu0 0.0
        %1334 = vmatpush2.msra.mxu0 0.0
        %1335 = vmatprep.subr.mxu0 0.0
        %1336 = vmatpush2.msra.mxu0 0.0
        %1337 = vmatprep.subr.mxu0 0.0
        %1338 = vmatpush2.msra.mxu0 0.0
        %1339 = vmatprep.subr.mxu0 0.0
        %1340 = vmatpush2.msra.mxu0 0.0
        %1341 = vmatprep.mubr.f32.mxu0 0.0
        %1342 = vmatmul.mubr.f32.gmra.mxu0 %v1275
        %v1343 = vpop.f32.mrf.mxu0
        %v1344 = vadd.f32 0.0, %v1343
        %v1345 = vpop.f32.mrf.mxu0
        %1346 = vdwg.mxu0
        %1348 = vrot.lane.b32.xlu0 %v1010, 8
        %v1349 = vpop.permute.xlu0 %1348
        %1352 = vrot.lane.b32.xlu0 %v1177, 16
        %v1353 = vpop.permute.xlu0 %1352
        %1356 = vrot.lane.b32.xlu0 %v1344, 24
        %v1357 = vpop.permute.xlu0 %1356
        %v1359 = vsel %vm682, %v843, %v1349
        %vm1360 = vcmask 130048
        %v1361 = vsel %vm1360, %v1359, %v1353
        %vm1362 = vcmask 195584
        %v1363 = vsel %vm1362, %v1361, %v1357
        %v1364 = vld [vmem:[%s5] sm:$0xff]
        %v1365 = vld [vmem:[%s5 + $0x8] sm:$0xff]
        %v1366 = vld [vmem:[%s5 + $0x10] sm:$0xff]
        %v1367 = vld [vmem:[%s5 + $0x18] sm:$0xff]
        %v1368 = vld [vmem:[#allocation8] sm:$0x1]
        %v1370 = vlaneseq
        %v1371 = vshrl.u32 %v1370, 7
        %v1372 = vsub.s32 0, %v1371
        %v1373 = vrot.slane %v1368, %v1372
        %v1376 = vsel %vm570, %v1363, 0
        %1378 = vmatprep.subr.mxu0 0.0
        %1379 = vmatpush1.msra.mxu0 0.0
        %1380 = vmatprep.subr.mxu0 0.0
        %1381 = vmatpush1.msra.mxu0 0.0
        %1382 = vmatprep.subr.mxu0 0.0
        %1383 = vmatpush1.msra.mxu0 0.0
        %1384 = vmatprep.subr.mxu0 0.0
        %1385 = vmatpush1.msra.mxu0 0.0
        %1386 = vmatprep.subr.mxu0 0.0
        %1387 = vmatpush1.msra.mxu0 0.0
        %1388 = vmatprep.subr.mxu0 0.0
        %1389 = vmatpush1.msra.mxu0 0.0
        %1390 = vmatprep.subr.mxu0 0.0
        %1391 = vmatpush1.msra.mxu0 0.0
        %1392 = vmatprep.subr.mxu0 0.0
        %1393 = vmatpush1.msra.mxu0 0.0
        %1394 = vmatprep.subr.mxu0 0.0
        %1395 = vmatpush1.msra.mxu0 0.0
        %1396 = vmatprep.subr.mxu0 0.0
        %1397 = vmatpush1.msra.mxu0 0.0
        %1398 = vmatprep.subr.mxu0 0.0
        %1399 = vmatpush1.msra.mxu0 0.0
        %1400 = vmatprep.subr.mxu0 0.0
        %1401 = vmatpush1.msra.mxu0 0.0
        %1402 = vmatprep.subr.mxu0 0.0
        %1403 = vmatpush1.msra.mxu0 %v1367
        %1404 = vmatprep.subr.mxu0 0.0
        %1405 = vmatpush1.msra.mxu0 %v1366
        %1406 = vmatprep.subr.mxu0 0.0
        %1407 = vmatpush1.msra.mxu0 %v1365
        %1408 = vmatprep.subr.mxu0 0.0
        %1409 = vmatpush1.msra.mxu0 %v1364
        %1410 = vmatprep.subr.mxu0 0.0
        %1411 = vmatpush2.msra.mxu0 0.0
        %1412 = vmatprep.subr.mxu0 0.0
        %1413 = vmatpush2.msra.mxu0 0.0
        %1414 = vmatprep.subr.mxu0 0.0
        %1415 = vmatpush2.msra.mxu0 0.0
        %1416 = vmatprep.subr.mxu0 0.0
        %1417 = vmatpush2.msra.mxu0 0.0
        %1418 = vmatprep.subr.mxu0 0.0
        %1419 = vmatpush2.msra.mxu0 0.0
        %1420 = vmatprep.subr.mxu0 0.0
        %1421 = vmatpush2.msra.mxu0 0.0
        %1422 = vmatprep.subr.mxu0 0.0
        %1423 = vmatpush2.msra.mxu0 0.0
        %1424 = vmatprep.subr.mxu0 0.0
        %1425 = vmatpush2.msra.mxu0 0.0
        %1426 = vmatprep.subr.mxu0 0.0
        %1427 = vmatpush2.msra.mxu0 0.0
        %1428 = vmatprep.subr.mxu0 0.0
        %1429 = vmatpush2.msra.mxu0 0.0
        %1430 = vmatprep.subr.mxu0 0.0
        %1431 = vmatpush2.msra.mxu0 0.0
        %1432 = vmatprep.subr.mxu0 0.0
        %1433 = vmatpush2.msra.mxu0 0.0
        %1434 = vmatprep.subr.mxu0 0.0
        %1435 = vmatpush2.msra.mxu0 0.0
        %1436 = vmatprep.subr.mxu0 0.0
        %1437 = vmatpush2.msra.mxu0 0.0
        %1438 = vmatprep.subr.mxu0 0.0
        %1439 = vmatpush2.msra.mxu0 0.0
        %1440 = vmatprep.subr.mxu0 0.0
        %1441 = vmatpush2.msra.mxu0 0.0
        %1442 = vmatprep.mubr.f32.mxu0 0.0
        %1443 = vmatmul.mubr.f32.gmra.mxu0 %v1376
        %v1444 = vpop.f32.mrf.mxu0
        %v1445 = vadd.f32 %v1373, %v1444
        %v1446 = vpop.f32.mrf.mxu0
        %1447 = vdwg.mxu0
        %v1448 = vadd.f32 %v567, %v1445
        %v1449 = vsel %vm570, %v1448, 0.0
        %1450 = vadd.xlane.f32.xlu0 %v1449
        %v1451 = vpop.xlane.xlu0 %1450
        %v1452 = vmul.f32 %v1451, %v574
        %v1453 = vsub.f32 %v1448, %v1452
        %v1454 = vmul.f32 %v1453, %v1453
        %v1455 = vsel %vm570, %v1454, 0.0
        %1456 = vadd.xlane.f32.xlu0 %v1455
        %v1457 = vpop.xlane.xlu0 %1456
        %v1458 = vmul.f32 %v1457, %v574
        %v1459 = vlaneseq
        %v1460 = vshrl.u32 %v1459, 7
        %v1461 = vsub.s32 2, %v1460
        %v1462 = vrot.slane %v569, %v1461
        %v1463 = vmul.f32 %v1462, %v1453
        %v1464 = vadd.f32 %v1458, 1e-06
        %v1465 = vrsqrt.pop %v1464
        %v1466 = vmul.f32 %v1463, %v1465
        %v1467 = vlaneseq
        %v1468 = vshrl.u32 %v1467, 7
        %v1469 = vsub.s32 3, %v1468
        %v1470 = vrot.slane %v569, %v1469
        %v1471 = vadd.f32 %v1466, %v1470
        %v1472 = vld [vmem:[%s8] sm:$0xff]
        %v1473 = vld [vmem:[%s8 + $0x8] sm:$0xff]
        %v1474 = vld [vmem:[%s8 + $0x10] sm:$0xff]
        %v1475 = vld [vmem:[%s8 + $0x18] sm:$0xff]
        %v1476 = vld [vmem:[%s9] sm:$0x1]
        %v1478 = vlaneseq
        %v1479 = vshrl.u32 %v1478, 7
        %v1480 = vsub.s32 0, %v1479
        %v1481 = vrot.slane %v1476, %v1480
        %v1484 = vsel %vm570, %v1471, 0
        %1486 = vmatprep.subr.mxu0 0.0
        %1487 = vmatpush1.msra.mxu0 0.0
        %1488 = vmatprep.subr.mxu0 0.0
        %1489 = vmatpush1.msra.mxu0 0.0
        %1490 = vmatprep.subr.mxu0 0.0
        %1491 = vmatpush1.msra.mxu0 0.0
        %1492 = vmatprep.subr.mxu0 0.0
        %1493 = vmatpush1.msra.mxu0 0.0
        %1494 = vmatprep.subr.mxu0 0.0
        %1495 = vmatpush1.msra.mxu0 0.0
        %1496 = vmatprep.subr.mxu0 0.0
        %1497 = vmatpush1.msra.mxu0 0.0
        %1498 = vmatprep.subr.mxu0 0.0
        %1499 = vmatpush1.msra.mxu0 0.0
        %1500 = vmatprep.subr.mxu0 0.0
        %1501 = vmatpush1.msra.mxu0 0.0
        %1502 = vmatprep.subr.mxu0 0.0
        %1503 = vmatpush1.msra.mxu0 0.0
        %1504 = vmatprep.subr.mxu0 0.0
        %1505 = vmatpush1.msra.mxu0 0.0
        %1506 = vmatprep.subr.mxu0 0.0
        %1507 = vmatpush1.msra.mxu0 0.0
        %1508 = vmatprep.subr.mxu0 0.0
        %1509 = vmatpush1.msra.mxu0 0.0
        %1510 = vmatprep.subr.mxu0 0.0
        %1511 = vmatpush1.msra.mxu0 %v1475
        %1512 = vmatprep.subr.mxu0 0.0
        %1513 = vmatpush1.msra.mxu0 %v1474
        %1514 = vmatprep.subr.mxu0 0.0
        %1515 = vmatpush1.msra.mxu0 %v1473
        %1516 = vmatprep.subr.mxu0 0.0
        %1517 = vmatpush1.msra.mxu0 %v1472
        %1518 = vmatprep.subr.mxu0 0.0
        %1519 = vmatpush2.msra.mxu0 0.0
        %1520 = vmatprep.subr.mxu0 0.0
        %1521 = vmatpush2.msra.mxu0 0.0
        %1522 = vmatprep.subr.mxu0 0.0
        %1523 = vmatpush2.msra.mxu0 0.0
        %1524 = vmatprep.subr.mxu0 0.0
        %1525 = vmatpush2.msra.mxu0 0.0
        %1526 = vmatprep.subr.mxu0 0.0
        %1527 = vmatpush2.msra.mxu0 0.0
        %1528 = vmatprep.subr.mxu0 0.0
        %1529 = vmatpush2.msra.mxu0 0.0
        %1530 = vmatprep.subr.mxu0 0.0
        %1531 = vmatpush2.msra.mxu0 0.0
        %1532 = vmatprep.subr.mxu0 0.0
        %1533 = vmatpush2.msra.mxu0 0.0
        %1534 = vmatprep.subr.mxu0 0.0
        %1535 = vmatpush2.msra.mxu0 0.0
        %1536 = vmatprep.subr.mxu0 0.0
        %1537 = vmatpush2.msra.mxu0 0.0
        %1538 = vmatprep.subr.mxu0 0.0
        %1539 = vmatpush2.msra.mxu0 0.0
        %1540 = vmatprep.subr.mxu0 0.0
        %1541 = vmatpush2.msra.mxu0 0.0
        %1542 = vmatprep.subr.mxu0 0.0
        %1543 = vmatpush2.msra.mxu0 0.0
        %1544 = vmatprep.subr.mxu0 0.0
        %1545 = vmatpush2.msra.mxu0 0.0
        %1546 = vmatprep.subr.mxu0 0.0
        %1547 = vmatpush2.msra.mxu0 0.0
        %1548 = vmatprep.subr.mxu0 0.0
        %1549 = vmatpush2.msra.mxu0 0.0
        %1550 = vmatprep.mubr.f32.mxu0 0.0
        %1551 = vmatmul.mubr.f32.gmra.mxu0 %v1484
        %v1552 = vpop.f32.mrf.mxu0
        %v1553 = vadd.f32 %v1481, %v1552
        %v1554 = vpop.f32.mrf.mxu0
        %1555 = vdwg.mxu0
        %v1556 = vmax.f32 %v1553, 0.0
        %v1557 = vld [vmem:[%s10] sm:$0xff]
        %v1558 = vld [vmem:[%s10 + $0x8] sm:$0xff]
        %v1559 = vld [vmem:[%s10 + $0x10] sm:$0xff]
        %v1560 = vld [vmem:[%s10 + $0x18] sm:$0xff]
        %v1561 = vld [vmem:[%s10 + $0x20] sm:$0xff]
        %v1562 = vld [vmem:[%s10 + $0x28] sm:$0xff]
        %v1563 = vld [vmem:[%s10 + $0x30] sm:$0xff]
        %v1564 = vld [vmem:[%s10 + $0x38] sm:$0xff]
        %v1565 = vld [vmem:[%s11] sm:$0x1]
        %v1567 = vlaneseq
        %v1568 = vshrl.u32 %v1567, 7
        %v1569 = vsub.s32 0, %v1568
        %v1570 = vrot.slane %v1565, %v1569
        %vm1572 = vcmask 523264
        %v1574 = vsel %vm1572, %v1556, 0
        %1576 = vmatprep.subr.mxu0 0.0
        %1577 = vmatpush1.msra.mxu0 0.0
        %1578 = vmatprep.subr.mxu0 0.0
        %1579 = vmatpush1.msra.mxu0 0.0
        %1580 = vmatprep.subr.mxu0 0.0
        %1581 = vmatpush1.msra.mxu0 0.0
        %1582 = vmatprep.subr.mxu0 0.0
        %1583 = vmatpush1.msra.mxu0 0.0
        %1584 = vmatprep.subr.mxu0 0.0
        %1585 = vmatpush1.msra.mxu0 0.0
        %1586 = vmatprep.subr.mxu0 0.0
        %1587 = vmatpush1.msra.mxu0 0.0
        %1588 = vmatprep.subr.mxu0 0.0
        %1589 = vmatpush1.msra.mxu0 0.0
        %1590 = vmatprep.subr.mxu0 0.0
        %1591 = vmatpush1.msra.mxu0 0.0
        %1592 = vmatprep.subr.mxu0 0.0
        %1593 = vmatpush1.msra.mxu0 %v1564
        %1594 = vmatprep.subr.mxu0 0.0
        %1595 = vmatpush1.msra.mxu0 %v1563
        %1596 = vmatprep.subr.mxu0 0.0
        %1597 = vmatpush1.msra.mxu0 %v1562
        %1598 = vmatprep.subr.mxu0 0.0
        %1599 = vmatpush1.msra.mxu0 %v1561
        %1600 = vmatprep.subr.mxu0 0.0
        %1601 = vmatpush1.msra.mxu0 %v1560
        %1602 = vmatprep.subr.mxu0 0.0
        %1603 = vmatpush1.msra.mxu0 %v1559
        %1604 = vmatprep.subr.mxu0 0.0
        %1605 = vmatpush1.msra.mxu0 %v1558
        %1606 = vmatprep.subr.mxu0 0.0
        %1607 = vmatpush1.msra.mxu0 %v1557
        %1608 = vmatprep.subr.mxu0 0.0
        %1609 = vmatpush2.msra.mxu0 0.0
        %1610 = vmatprep.subr.mxu0 0.0
        %1611 = vmatpush2.msra.mxu0 0.0
        %1612 = vmatprep.subr.mxu0 0.0
        %1613 = vmatpush2.msra.mxu0 0.0
        %1614 = vmatprep.subr.mxu0 0.0
        %1615 = vmatpush2.msra.mxu0 0.0
        %1616 = vmatprep.subr.mxu0 0.0
        %1617 = vmatpush2.msra.mxu0 0.0
        %1618 = vmatprep.subr.mxu0 0.0
        %1619 = vmatpush2.msra.mxu0 0.0
        %1620 = vmatprep.subr.mxu0 0.0
        %1621 = vmatpush2.msra.mxu0 0.0
        %1622 = vmatprep.subr.mxu0 0.0
        %1623 = vmatpush2.msra.mxu0 0.0
        %1624 = vmatprep.subr.mxu0 0.0
        %1625 = vmatpush2.msra.mxu0 0.0
        %1626 = vmatprep.subr.mxu0 0.0
        %1627 = vmatpush2.msra.mxu0 0.0
        %1628 = vmatprep.subr.mxu0 0.0
        %1629 = vmatpush2.msra.mxu0 0.0
        %1630 = vmatprep.subr.mxu0 0.0
        %1631 = vmatpush2.msra.mxu0 0.0
        %1632 = vmatprep.subr.mxu0 0.0
        %1633 = vmatpush2.msra.mxu0 0.0
        %1634 = vmatprep.subr.mxu0 0.0
        %1635 = vmatpush2.msra.mxu0 0.0
        %1636 = vmatprep.subr.mxu0 0.0
        %1637 = vmatpush2.msra.mxu0 0.0
        %1638 = vmatprep.subr.mxu0 0.0
        %1639 = vmatpush2.msra.mxu0 0.0
        %1640 = vmatprep.mubr.f32.mxu0 0.0
        %1641 = vmatmul.mubr.f32.gmra.mxu0 %v1574
        %v1642 = vpop.f32.mrf.mxu0
        %v1643 = vadd.f32 %v1570, %v1642
        %v1644 = vpop.f32.mrf.mxu0
        %1645 = vdwg.mxu0
        %v1646 = vadd.f32 %v1448, %v1643
        %s1647 = scalar_lea.vmem %s7, 4
        %v1648 = vld [vmem:[%s1647] sm:$0xf]
        %v1649 = vsel %vm570, %v1646, 0.0
        %1650 = vadd.xlane.f32.xlu0 %v1649
        %v1651 = vpop.xlane.xlu0 %1650
        %v1652 = vmul.f32 %v1651, %v574
        %v1653 = vsub.f32 %v1646, %v1652
        %v1654 = vmul.f32 %v1653, %v1653
        %v1655 = vsel %vm570, %v1654, 0.0
        %1656 = vadd.xlane.f32.xlu0 %v1655
        %v1657 = vpop.xlane.xlu0 %1656
        %v1658 = vmul.f32 %v1657, %v574
        %v1659 = vlaneseq
        %v1660 = vshrl.u32 %v1659, 7
        %v1661 = vsub.s32 0, %v1660
        %v1662 = vrot.slane %v1648, %v1661
        %v1663 = vmul.f32 %v1662, %v1653
        %v1664 = vadd.f32 %v1658, 1e-06
        %v1665 = vrsqrt.pop %v1664
        %v1666 = vmul.f32 %v1663, %v1665
        %v1667 = vlaneseq
        %v1668 = vshrl.u32 %v1667, 7
        %v1669 = vsub.s32 1, %v1668
        %v1670 = vrot.slane %v1648, %v1669
        %v1671 = vadd.f32 %v1666, %v1670
        %s1672 = scalar_lea.vmem %s3, 32
        %v1673 = vld [vmem:[%s1672] sm:$0xff]
        %v1674 = vld [vmem:[%s1672 + $0x8] sm:$0xff]
        %v1675 = vld [vmem:[%s1672 + $0x10] sm:$0xff]
        %v1676 = vld [vmem:[%s1672 + $0x18] sm:$0xff]
        %s1677 = scalar_lea.vmem %s4, 1
        %v1678 = vld [vmem:[%s1677] sm:$0x1]
        %v1680 = vlaneseq
        %v1681 = vshrl.u32 %v1680, 7
        %v1682 = vsub.s32 0, %v1681
        %v1683 = vrot.slane %v1678, %v1682
        %v1686 = vsel %vm570, %v1671, 0
        %1688 = vmatprep.subr.mxu0 0.0
        %1689 = vmatpush1.msra.mxu0 0.0
        %1690 = vmatprep.subr.mxu0 0.0
        %1691 = vmatpush1.msra.mxu0 0.0
        %1692 = vmatprep.subr.mxu0 0.0
        %1693 = vmatpush1.msra.mxu0 0.0
        %1694 = vmatprep.subr.mxu0 0.0
        %1695 = vmatpush1.msra.mxu0 0.0
        %1696 = vmatprep.subr.mxu0 0.0
        %1697 = vmatpush1.msra.mxu0 0.0
        %1698 = vmatprep.subr.mxu0 0.0
        %1699 = vmatpush1.msra.mxu0 0.0
        %1700 = vmatprep.subr.mxu0 0.0
        %1701 = vmatpush1.msra.mxu0 0.0
        %1702 = vmatprep.subr.mxu0 0.0
        %1703 = vmatpush1.msra.mxu0 0.0
        %1704 = vmatprep.subr.mxu0 0.0
        %1705 = vmatpush1.msra.mxu0 0.0
        %1706 = vmatprep.subr.mxu0 0.0
        %1707 = vmatpush1.msra.mxu0 0.0
        %1708 = vmatprep.subr.mxu0 0.0
        %1709 = vmatpush1.msra.mxu0 0.0
        %1710 = vmatprep.subr.mxu0 0.0
        %1711 = vmatpush1.msra.mxu0 0.0
        %1712 = vmatprep.subr.mxu0 0.0
        %1713 = vmatpush1.msra.mxu0 %v1676
        %1714 = vmatprep.subr.mxu0 0.0
        %1715 = vmatpush1.msra.mxu0 %v1675
        %1716 = vmatprep.subr.mxu0 0.0
        %1717 = vmatpush1.msra.mxu0 %v1674
        %1718 = vmatprep.subr.mxu0 0.0
        %1719 = vmatpush1.msra.mxu0 %v1673
        %1720 = vmatprep.subr.mxu0 0.0
        %1721 = vmatpush2.msra.mxu0 0.0
        %1722 = vmatprep.subr.mxu0 0.0
        %1723 = vmatpush2.msra.mxu0 0.0
        %1724 = vmatprep.subr.mxu0 0.0
        %1725 = vmatpush2.msra.mxu0 0.0
        %1726 = vmatprep.subr.mxu0 0.0
        %1727 = vmatpush2.msra.mxu0 0.0
        %1728 = vmatprep.subr.mxu0 0.0
        %1729 = vmatpush2.msra.mxu0 0.0
        %1730 = vmatprep.subr.mxu0 0.0
        %1731 = vmatpush2.msra.mxu0 0.0
        %1732 = vmatprep.subr.mxu0 0.0
        %1733 = vmatpush2.msra.mxu0 0.0
        %1734 = vmatprep.subr.mxu0 0.0
        %1735 = vmatpush2.msra.mxu0 0.0
        %1736 = vmatprep.subr.mxu0 0.0
        %1737 = vmatpush2.msra.mxu0 0.0
        %1738 = vmatprep.subr.mxu0 0.0
        %1739 = vmatpush2.msra.mxu0 0.0
        %1740 = vmatprep.subr.mxu0 0.0
        %1741 = vmatpush2.msra.mxu0 0.0
        %1742 = vmatprep.subr.mxu0 0.0
        %1743 = vmatpush2.msra.mxu0 0.0
        %1744 = vmatprep.subr.mxu0 0.0
        %1745 = vmatpush2.msra.mxu0 0.0
        %1746 = vmatprep.subr.mxu0 0.0
        %1747 = vmatpush2.msra.mxu0 0.0
        %1748 = vmatprep.subr.mxu0 0.0
        %1749 = vmatpush2.msra.mxu0 0.0
        %1750 = vmatprep.subr.mxu0 0.0
        %1751 = vmatpush2.msra.mxu0 0.0
        %1752 = vmatprep.mubr.f32.mxu0 0.0
        %1753 = vmatmul.mubr.f32.gmra.mxu0 %v1686
        %v1754 = vpop.f32.mrf.mxu0
        %v1755 = vadd.f32 %v1683, %v1754
        %v1756 = vpop.f32.mrf.mxu0
        %1757 = vdwg.mxu0
        %1759 = vrot.lane.b32.xlu0 %v1755, 96
        %v1760 = vpop.permute.xlu0 %1759
        %v1761 = vsel %vm682, %v1755, 0
        %v1763 = vsel %vm682, %v1760, 0
        %1765 = vmatprep.subr.mxu0 0.0
        %1766 = vmatpush1.xpose.msra.mxu0 0.0
        %1767 = vmatprep.subr.mxu0 0.0
        %1768 = vmatpush1.xpose.msra.mxu0 0.0
        %1769 = vmatprep.subr.mxu0 0.0
        %1770 = vmatpush1.xpose.msra.mxu0 0.0
        %1771 = vmatprep.subr.mxu0 0.0
        %1772 = vmatpush1.xpose.msra.mxu0 0.0
        %1773 = vmatprep.subr.mxu0 0.0
        %1774 = vmatpush1.xpose.msra.mxu0 0.0
        %1775 = vmatprep.subr.mxu0 0.0
        %1776 = vmatpush1.xpose.msra.mxu0 0.0
        %1777 = vmatprep.subr.mxu0 0.0
        %1778 = vmatpush1.xpose.msra.mxu0 0.0
        %1779 = vmatprep.subr.mxu0 0.0
        %1780 = vmatpush1.xpose.msra.mxu0 0.0
        %1781 = vmatprep.subr.mxu0 0.0
        %1782 = vmatpush1.xpose.msra.mxu0 0.0
        %1783 = vmatprep.subr.mxu0 0.0
        %1784 = vmatpush1.xpose.msra.mxu0 0.0
        %1785 = vmatprep.subr.mxu0 0.0
        %1786 = vmatpush1.xpose.msra.mxu0 0.0
        %1787 = vmatprep.subr.mxu0 0.0
        %1788 = vmatpush1.xpose.msra.mxu0 0.0
        %1789 = vmatprep.subr.mxu0 0.0
        %1790 = vmatpush1.xpose.msra.mxu0 0.0
        %1791 = vmatprep.subr.mxu0 0.0
        %1792 = vmatpush1.xpose.msra.mxu0 0.0
        %1793 = vmatprep.subr.mxu0 0.0
        %1794 = vmatpush1.xpose.msra.mxu0 0.0
        %1795 = vmatprep.subr.mxu0 0.0
        %1796 = vmatpush1.xpose.msra.mxu0 %v1763
        %1797 = vmatprep.subr.mxu0 0.0
        %1798 = vmatpush2.xpose.msra.mxu0 0.0
        %1799 = vmatprep.subr.mxu0 0.0
        %1800 = vmatpush2.xpose.msra.mxu0 0.0
        %1801 = vmatprep.subr.mxu0 0.0
        %1802 = vmatpush2.xpose.msra.mxu0 0.0
        %1803 = vmatprep.subr.mxu0 0.0
        %1804 = vmatpush2.xpose.msra.mxu0 0.0
        %1805 = vmatprep.subr.mxu0 0.0
        %1806 = vmatpush2.xpose.msra.mxu0 0.0
        %1807 = vmatprep.subr.mxu0 0.0
        %1808 = vmatpush2.xpose.msra.mxu0 0.0
        %1809 = vmatprep.subr.mxu0 0.0
        %1810 = vmatpush2.xpose.msra.mxu0 0.0
        %1811 = vmatprep.subr.mxu0 0.0
        %1812 = vmatpush2.xpose.msra.mxu0 0.0
        %1813 = vmatprep.subr.mxu0 0.0
        %1814 = vmatpush2.xpose.msra.mxu0 0.0
        %1815 = vmatprep.subr.mxu0 0.0
        %1816 = vmatpush2.xpose.msra.mxu0 0.0
        %1817 = vmatprep.subr.mxu0 0.0
        %1818 = vmatpush2.xpose.msra.mxu0 0.0
        %1819 = vmatprep.subr.mxu0 0.0
        %1820 = vmatpush2.xpose.msra.mxu0 0.0
        %1821 = vmatprep.subr.mxu0 0.0
        %1822 = vmatpush2.xpose.msra.mxu0 0.0
        %1823 = vmatprep.subr.mxu0 0.0
        %1824 = vmatpush2.xpose.msra.mxu0 0.0
        %1825 = vmatprep.subr.mxu0 0.0
        %1826 = vmatpush2.xpose.msra.mxu0 0.0
        %1827 = vmatprep.subr.mxu0 0.0
        %1828 = vmatpush2.xpose.msra.mxu0 0.0
        %1829 = vmatprep.mubr.f32.mxu0 0.0
        %1830 = vmatmul.mubr.f32.gmra.mxu0 %v1761
        %v1831 = vpop.f32.mrf.mxu0
        %v1832 = vadd.f32 0.0, %v1831
        %v1833 = vpop.f32.mrf.mxu0
        %1834 = vdwg.mxu0
        %v1835 = vmul.f32 %v1832, 0.35355338
        %v1836 = vadd.f32 %v1835, %v568
        %v1837 = vsel %vm682, %v1836, -inf
        %1838 = vmax.xlane.f32.xlu0 %v1837
        %v1839 = vpop.xlane.xlu0 %1838
        %v1840 = vsub.f32 %v1836, %v1839
        %v1841 = vmul.f32 %v1840, 1.442695
        %v1842 = vpow.pop %v1841
        %v1843 = vsel %vm682, %v1842, 0.0
        %1844 = vadd.xlane.f32.xlu0 %v1843
        %v1845 = vpop.xlane.xlu0 %1844
        %v1846 = vrcp.pop %v1845
        %v1847 = vmul.f32 %v1842, %v1846
        %1848 = vrot.lane.b32.xlu0 %v1755, 64
        %v1849 = vpop.permute.xlu0 %1848
        %v1852 = vsel %vm682, %v1847, 0
        %1854 = vmatprep.subr.mxu0 0.0
        %1855 = vmatpush1.msra.mxu0 0.0
        %1856 = vmatprep.subr.mxu0 0.0
        %1857 = vmatpush1.msra.mxu0 0.0
        %1858 = vmatprep.subr.mxu0 0.0
        %1859 = vmatpush1.msra.mxu0 0.0
        %1860 = vmatprep.subr.mxu0 0.0
        %1861 = vmatpush1.msra.mxu0 0.0
        %1862 = vmatprep.subr.mxu0 0.0
        %1863 = vmatpush1.msra.mxu0 0.0
        %1864 = vmatprep.subr.mxu0 0.0
        %1865 = vmatpush1.msra.mxu0 0.0
        %1866 = vmatprep.subr.mxu0 0.0
        %1867 = vmatpush1.msra.mxu0 0.0
        %1868 = vmatprep.subr.mxu0 0.0
        %1869 = vmatpush1.msra.mxu0 0.0
        %1870 = vmatprep.subr.mxu0 0.0
        %1871 = vmatpush1.msra.mxu0 0.0
        %1872 = vmatprep.subr.mxu0 0.0
        %1873 = vmatpush1.msra.mxu0 0.0
        %1874 = vmatprep.subr.mxu0 0.0
        %1875 = vmatpush1.msra.mxu0 0.0
        %1876 = vmatprep.subr.mxu0 0.0
        %1877 = vmatpush1.msra.mxu0 0.0
        %1878 = vmatprep.subr.mxu0 0.0
        %1879 = vmatpush1.msra.mxu0 0.0
        %1880 = vmatprep.subr.mxu0 0.0
        %1881 = vmatpush1.msra.mxu0 0.0
        %1882 = vmatprep.subr.mxu0 0.0
        %1883 = vmatpush1.msra.mxu0 0.0
        %1884 = vmatprep.subr.mxu0 0.0
        %1885 = vmatpush1.msra.mxu0 %v1849
        %1886 = vmatprep.subr.mxu0 0.0
        %1887 = vmatpush2.msra.mxu0 0.0
        %1888 = vmatprep.subr.mxu0 0.0
        %1889 = vmatpush2.msra.mxu0 0.0
        %1890 = vmatprep.subr.mxu0 0.0
        %1891 = vmatpush2.msra.mxu0 0.0
        %1892 = vmatprep.subr.mxu0 0.0
        %1893 = vmatpush2.msra.mxu0 0.0
        %1894 = vmatprep.subr.mxu0 0.0
        %1895 = vmatpush2.msra.mxu0 0.0
        %1896 = vmatprep.subr.mxu0 0.0
        %1897 = vmatpush2.msra.mxu0 0.0
        %1898 = vmatprep.subr.mxu0 0.0
        %1899 = vmatpush2.msra.mxu0 0.0
        %1900 = vmatprep.subr.mxu0 0.0
        %1901 = vmatpush2.msra.mxu0 0.0
        %1902 = vmatprep.subr.mxu0 0.0
        %1903 = vmatpush2.msra.mxu0 0.0
        %1904 = vmatprep.subr.mxu0 0.0
        %1905 = vmatpush2.msra.mxu0 0.0
        %1906 = vmatprep.subr.mxu0 0.0
        %1907 = vmatpush2.msra.mxu0 0.0
        %1908 = vmatprep.subr.mxu0 0.0
        %1909 = vmatpush2.msra.mxu0 0.0
        %1910 = vmatprep.subr.mxu0 0.0
        %1911 = vmatpush2.msra.mxu0 0.0
        %1912 = vmatprep.subr.mxu0 0.0
        %1913 = vmatpush2.msra.mxu0 0.0
        %1914 = vmatprep.subr.mxu0 0.0
        %1915 = vmatpush2.msra.mxu0 0.0
        %1916 = vmatprep.subr.mxu0 0.0
        %1917 = vmatpush2.msra.mxu0 0.0
        %1918 = vmatprep.mubr.f32.mxu0 0.0
        %1919 = vmatmul.mubr.f32.gmra.mxu0 %v1852
        %v1920 = vpop.f32.mrf.mxu0
        %v1921 = vadd.f32 0.0, %v1920
        %v1922 = vpop.f32.mrf.mxu0
        %1923 = vdwg.mxu0
        %1924 = vrot.lane.b32.xlu0 %v1755, 120
        %v1925 = vpop.permute.xlu0 %1924
        %1926 = vrot.lane.b32.xlu0 %v1755, 88
        %v1927 = vpop.permute.xlu0 %1926
        %v1928 = vsel %vm682, %v1925, 0
        %v1930 = vsel %vm682, %v1927, 0
        %1932 = vmatprep.subr.mxu0 0.0
        %1933 = vmatpush1.xpose.msra.mxu0 0.0
        %1934 = vmatprep.subr.mxu0 0.0
        %1935 = vmatpush1.xpose.msra.mxu0 0.0
        %1936 = vmatprep.subr.mxu0 0.0
        %1937 = vmatpush1.xpose.msra.mxu0 0.0
        %1938 = vmatprep.subr.mxu0 0.0
        %1939 = vmatpush1.xpose.msra.mxu0 0.0
        %1940 = vmatprep.subr.mxu0 0.0
        %1941 = vmatpush1.xpose.msra.mxu0 0.0
        %1942 = vmatprep.subr.mxu0 0.0
        %1943 = vmatpush1.xpose.msra.mxu0 0.0
        %1944 = vmatprep.subr.mxu0 0.0
        %1945 = vmatpush1.xpose.msra.mxu0 0.0
        %1946 = vmatprep.subr.mxu0 0.0
        %1947 = vmatpush1.xpose.msra.mxu0 0.0
        %1948 = vmatprep.subr.mxu0 0.0
        %1949 = vmatpush1.xpose.msra.mxu0 0.0
        %1950 = vmatprep.subr.mxu0 0.0
        %1951 = vmatpush1.xpose.msra.mxu0 0.0
        %1952 = vmatprep.subr.mxu0 0.0
        %1953 = vmatpush1.xpose.msra.mxu0 0.0
        %1954 = vmatprep.subr.mxu0 0.0
        %1955 = vmatpush1.xpose.msra.mxu0 0.0
        %1956 = vmatprep.subr.mxu0 0.0
        %1957 = vmatpush1.xpose.msra.mxu0 0.0
        %1958 = vmatprep.subr.mxu0 0.0
        %1959 = vmatpush1.xpose.msra.mxu0 0.0
        %1960 = vmatprep.subr.mxu0 0.0
        %1961 = vmatpush1.xpose.msra.mxu0 0.0
        %1962 = vmatprep.subr.mxu0 0.0
        %1963 = vmatpush1.xpose.msra.mxu0 %v1930
        %1964 = vmatprep.subr.mxu0 0.0
        %1965 = vmatpush2.xpose.msra.mxu0 0.0
        %1966 = vmatprep.subr.mxu0 0.0
        %1967 = vmatpush2.xpose.msra.mxu0 0.0
        %1968 = vmatprep.subr.mxu0 0.0
        %1969 = vmatpush2.xpose.msra.mxu0 0.0
        %1970 = vmatprep.subr.mxu0 0.0
        %1971 = vmatpush2.xpose.msra.mxu0 0.0
        %1972 = vmatprep.subr.mxu0 0.0
        %1973 = vmatpush2.xpose.msra.mxu0 0.0
        %1974 = vmatprep.subr.mxu0 0.0
        %1975 = vmatpush2.xpose.msra.mxu0 0.0
        %1976 = vmatprep.subr.mxu0 0.0
        %1977 = vmatpush2.xpose.msra.mxu0 0.0
        %1978 = vmatprep.subr.mxu0 0.0
        %1979 = vmatpush2.xpose.msra.mxu0 0.0
        %1980 = vmatprep.subr.mxu0 0.0
        %1981 = vmatpush2.xpose.msra.mxu0 0.0
        %1982 = vmatprep.subr.mxu0 0.0
        %1983 = vmatpush2.xpose.msra.mxu0 0.0
        %1984 = vmatprep.subr.mxu0 0.0
        %1985 = vmatpush2.xpose.msra.mxu0 0.0
        %1986 = vmatprep.subr.mxu0 0.0
        %1987 = vmatpush2.xpose.msra.mxu0 0.0
        %1988 = vmatprep.subr.mxu0 0.0
        %1989 = vmatpush2.xpose.msra.mxu0 0.0
        %1990 = vmatprep.subr.mxu0 0.0
        %1991 = vmatpush2.xpose.msra.mxu0 0.0
        %1992 = vmatprep.subr.mxu0 0.0
        %1993 = vmatpush2.xpose.msra.mxu0 0.0
        %1994 = vmatprep.subr.mxu0 0.0
        %1995 = vmatpush2.xpose.msra.mxu0 0.0
        %1996 = vmatprep.mubr.f32.mxu0 0.0
        %1997 = vmatmul.mubr.f32.gmra.mxu0 %v1928
        %v1998 = vpop.f32.mrf.mxu0
        %v1999 = vadd.f32 0.0, %v1998
        %v2000 = vpop.f32.mrf.mxu0
        %2001 = vdwg.mxu0
        %v2002 = vmul.f32 %v1999, 0.35355338
        %v2003 = vadd.f32 %v2002, %v568
        %v2004 = vsel %vm682, %v2003, -inf
        %2005 = vmax.xlane.f32.xlu0 %v2004
        %v2006 = vpop.xlane.xlu0 %2005
        %v2007 = vsub.f32 %v2003, %v2006
        %v2008 = vmul.f32 %v2007, 1.442695
        %v2009 = vpow.pop %v2008
        %v2010 = vsel %vm682, %v2009, 0.0
        %2011 = vadd.xlane.f32.xlu0 %v2010
        %v2012 = vpop.xlane.xlu0 %2011
        %v2013 = vrcp.pop %v2012
        %v2014 = vmul.f32 %v2009, %v2013
        %2015 = vrot.lane.b32.xlu0 %v1755, 56
        %v2016 = vpop.permute.xlu0 %2015
        %v2019 = vsel %vm682, %v2014, 0
        %2021 = vmatprep.subr.mxu0 0.0
        %2022 = vmatpush1.msra.mxu0 0.0
        %2023 = vmatprep.subr.mxu0 0.0
        %2024 = vmatpush1.msra.mxu0 0.0
        %2025 = vmatprep.subr.mxu0 0.0
        %2026 = vmatpush1.msra.mxu0 0.0
        %2027 = vmatprep.subr.mxu0 0.0
        %2028 = vmatpush1.msra.mxu0 0.0
        %2029 = vmatprep.subr.mxu0 0.0
        %2030 = vmatpush1.msra.mxu0 0.0
        %2031 = vmatprep.subr.mxu0 0.0
        %2032 = vmatpush1.msra.mxu0 0.0
        %2033 = vmatprep.subr.mxu0 0.0
        %2034 = vmatpush1.msra.mxu0 0.0
        %2035 = vmatprep.subr.mxu0 0.0
        %2036 = vmatpush1.msra.mxu0 0.0
        %2037 = vmatprep.subr.mxu0 0.0
        %2038 = vmatpush1.msra.mxu0 0.0
        %2039 = vmatprep.subr.mxu0 0.0
        %2040 = vmatpush1.msra.mxu0 0.0
        %2041 = vmatprep.subr.mxu0 0.0
        %2042 = vmatpush1.msra.mxu0 0.0
        %2043 = vmatprep.subr.mxu0 0.0
        %2044 = vmatpush1.msra.mxu0 0.0
        %2045 = vmatprep.subr.mxu0 0.0
        %2046 = vmatpush1.msra.mxu0 0.0
        %2047 = vmatprep.subr.mxu0 0.0
        %2048 = vmatpush1.msra.mxu0 0.0
        %2049 = vmatprep.subr.mxu0 0.0
        %2050 = vmatpush1.msra.mxu0 0.0
        %2051 = vmatprep.subr.mxu0 0.0
        %2052 = vmatpush1.msra.mxu0 %v2016
        %2053 = vmatprep.subr.mxu0 0.0
        %2054 = vmatpush2.msra.mxu0 0.0
        %2055 = vmatprep.subr.mxu0 0.0
        %2056 = vmatpush2.msra.mxu0 0.0
        %2057 = vmatprep.subr.mxu0 0.0
        %2058 = vmatpush2.msra.mxu0 0.0
        %2059 = vmatprep.subr.mxu0 0.0
        %2060 = vmatpush2.msra.mxu0 0.0
        %2061 = vmatprep.subr.mxu0 0.0
        %2062 = vmatpush2.msra.mxu0 0.0
        %2063 = vmatprep.subr.mxu0 0.0
        %2064 = vmatpush2.msra.mxu0 0.0
        %2065 = vmatprep.subr.mxu0 0.0
        %2066 = vmatpush2.msra.mxu0 0.0
        %2067 = vmatprep.subr.mxu0 0.0
        %2068 = vmatpush2.msra.mxu0 0.0
        %2069 = vmatprep.subr.mxu0 0.0
        %2070 = vmatpush2.msra.mxu0 0.0
        %2071 = vmatprep.subr.mxu0 0.0
        %2072 = vmatpush2.msra.mxu0 0.0
        %2073 = vmatprep.subr.mxu0 0.0
        %2074 = vmatpush2.msra.mxu0 0.0
        %2075 = vmatprep.subr.mxu0 0.0
        %2076 = vmatpush2.msra.mxu0 0.0
        %2077 = vmatprep.subr.mxu0 0.0
        %2078 = vmatpush2.msra.mxu0 0.0
        %2079 = vmatprep.subr.mxu0 0.0
        %2080 = vmatpush2.msra.mxu0 0.0
        %2081 = vmatprep.subr.mxu0 0.0
        %2082 = vmatpush2.msra.mxu0 0.0
        %2083 = vmatprep.subr.mxu0 0.0
        %2084 = vmatpush2.msra.mxu0 0.0
        %2085 = vmatprep.mubr.f32.mxu0 0.0
        %2086 = vmatmul.mubr.f32.gmra.mxu0 %v2019
        %v2087 = vpop.f32.mrf.mxu0
        %v2088 = vadd.f32 0.0, %v2087
        %v2089 = vpop.f32.mrf.mxu0
        %2090 = vdwg.mxu0
        %2091 = vrot.lane.b32.xlu0 %v1755, 112
        %v2092 = vpop.permute.xlu0 %2091
        %2093 = vrot.lane.b32.xlu0 %v1755, 80
        %v2094 = vpop.permute.xlu0 %2093
        %v2095 = vsel %vm682, %v2092, 0
        %v2097 = vsel %vm682, %v2094, 0
        %2099 = vmatprep.subr.mxu0 0.0
        %2100 = vmatpush1.xpose.msra.mxu0 0.0
        %2101 = vmatprep.subr.mxu0 0.0
        %2102 = vmatpush1.xpose.msra.mxu0 0.0
        %2103 = vmatprep.subr.mxu0 0.0
        %2104 = vmatpush1.xpose.msra.mxu0 0.0
        %2105 = vmatprep.subr.mxu0 0.0
        %2106 = vmatpush1.xpose.msra.mxu0 0.0
        %2107 = vmatprep.subr.mxu0 0.0
        %2108 = vmatpush1.xpose.msra.mxu0 0.0
        %2109 = vmatprep.subr.mxu0 0.0
        %2110 = vmatpush1.xpose.msra.mxu0 0.0
        %2111 = vmatprep.subr.mxu0 0.0
        %2112 = vmatpush1.xpose.msra.mxu0 0.0
        %2113 = vmatprep.subr.mxu0 0.0
        %2114 = vmatpush1.xpose.msra.mxu0 0.0
        %2115 = vmatprep.subr.mxu0 0.0
        %2116 = vmatpush1.xpose.msra.mxu0 0.0
        %2117 = vmatprep.subr.mxu0 0.0
        %2118 = vmatpush1.xpose.msra.mxu0 0.0
        %2119 = vmatprep.subr.mxu0 0.0
        %2120 = vmatpush1.xpose.msra.mxu0 0.0
        %2121 = vmatprep.subr.mxu0 0.0
        %2122 = vmatpush1.xpose.msra.mxu0 0.0
        %2123 = vmatprep.subr.mxu0 0.0
        %2124 = vmatpush1.xpose.msra.mxu0 0.0
        %2125 = vmatprep.subr.mxu0 0.0
        %2126 = vmatpush1.xpose.msra.mxu0 0.0
        %2127 = vmatprep.subr.mxu0 0.0
        %2128 = vmatpush1.xpose.msra.mxu0 0.0
        %2129 = vmatprep.subr.mxu0 0.0
        %2130 = vmatpush1.xpose.msra.mxu0 %v2097
        %2131 = vmatprep.subr.mxu0 0.0
        %2132 = vmatpush2.xpose.msra.mxu0 0.0
        %2133 = vmatprep.subr.mxu0 0.0
        %2134 = vmatpush2.xpose.msra.mxu0 0.0
        %2135 = vmatprep.subr.mxu0 0.0
        %2136 = vmatpush2.xpose.msra.mxu0 0.0
        %2137 = vmatprep.subr.mxu0 0.0
        %2138 = vmatpush2.xpose.msra.mxu0 0.0
        %2139 = vmatprep.subr.mxu0 0.0
        %2140 = vmatpush2.xpose.msra.mxu0 0.0
        %2141 = vmatprep.subr.mxu0 0.0
        %2142 = vmatpush2.xpose.msra.mxu0 0.0
        %2143 = vmatprep.subr.mxu0 0.0
        %2144 = vmatpush2.xpose.msra.mxu0 0.0
        %2145 = vmatprep.subr.mxu0 0.0
        %2146 = vmatpush2.xpose.msra.mxu0 0.0
        %2147 = vmatprep.subr.mxu0 0.0
        %2148 = vmatpush2.xpose.msra.mxu0 0.0
        %2149 = vmatprep.subr.mxu0 0.0
        %2150 = vmatpush2.xpose.msra.mxu0 0.0
        %2151 = vmatprep.subr.mxu0 0.0
        %2152 = vmatpush2.xpose.msra.mxu0 0.0
        %2153 = vmatprep.subr.mxu0 0.0
        %2154 = vmatpush2.xpose.msra.mxu0 0.0
        %2155 = vmatprep.subr.mxu0 0.0
        %2156 = vmatpush2.xpose.msra.mxu0 0.0
        %2157 = vmatprep.subr.mxu0 0.0
        %2158 = vmatpush2.xpose.msra.mxu0 0.0
        %2159 = vmatprep.subr.mxu0 0.0
        %2160 = vmatpush2.xpose.msra.mxu0 0.0
        %2161 = vmatprep.subr.mxu0 0.0
        %2162 = vmatpush2.xpose.msra.mxu0 0.0
        %2163 = vmatprep.mubr.f32.mxu0 0.0
        %2164 = vmatmul.mubr.f32.gmra.mxu0 %v2095
        %v2165 = vpop.f32.mrf.mxu0
        %v2166 = vadd.f32 0.0, %v2165
        %v2167 = vpop.f32.mrf.mxu0
        %2168 = vdwg.mxu0
        %v2169 = vmul.f32 %v2166, 0.35355338
        %v2170 = vadd.f32 %v2169, %v568
        %v2171 = vsel %vm682, %v2170, -inf
        %2172 = vmax.xlane.f32.xlu0 %v2171
        %v2173 = vpop.xlane.xlu0 %2172
        %v2174 = vsub.f32 %v2170, %v2173
        %v2175 = vmul.f32 %v2174, 1.442695
        %v2176 = vpow.pop %v2175
        %v2177 = vsel %vm682, %v2176, 0.0
        %2178 = vadd.xlane.f32.xlu0 %v2177
        %v2179 = vpop.xlane.xlu0 %2178
        %v2180 = vrcp.pop %v2179
        %v2181 = vmul.f32 %v2176, %v2180
        %2182 = vrot.lane.b32.xlu0 %v1755, 48
        %v2183 = vpop.permute.xlu0 %2182
        %v2186 = vsel %vm682, %v2181, 0
        %2188 = vmatprep.subr.mxu0 0.0
        %2189 = vmatpush1.msra.mxu0 0.0
        %2190 = vmatprep.subr.mxu0 0.0
        %2191 = vmatpush1.msra.mxu0 0.0
        %2192 = vmatprep.subr.mxu0 0.0
        %2193 = vmatpush1.msra.mxu0 0.0
        %2194 = vmatprep.subr.mxu0 0.0
        %2195 = vmatpush1.msra.mxu0 0.0
        %2196 = vmatprep.subr.mxu0 0.0
        %2197 = vmatpush1.msra.mxu0 0.0
        %2198 = vmatprep.subr.mxu0 0.0
        %2199 = vmatpush1.msra.mxu0 0.0
        %2200 = vmatprep.subr.mxu0 0.0
        %2201 = vmatpush1.msra.mxu0 0.0
        %2202 = vmatprep.subr.mxu0 0.0
        %2203 = vmatpush1.msra.mxu0 0.0
        %2204 = vmatprep.subr.mxu0 0.0
        %2205 = vmatpush1.msra.mxu0 0.0
        %2206 = vmatprep.subr.mxu0 0.0
        %2207 = vmatpush1.msra.mxu0 0.0
        %2208 = vmatprep.subr.mxu0 0.0
        %2209 = vmatpush1.msra.mxu0 0.0
        %2210 = vmatprep.subr.mxu0 0.0
        %2211 = vmatpush1.msra.mxu0 0.0
        %2212 = vmatprep.subr.mxu0 0.0
        %2213 = vmatpush1.msra.mxu0 0.0
        %2214 = vmatprep.subr.mxu0 0.0
        %2215 = vmatpush1.msra.mxu0 0.0
        %2216 = vmatprep.subr.mxu0 0.0
        %2217 = vmatpush1.msra.mxu0 0.0
        %2218 = vmatprep.subr.mxu0 0.0
        %2219 = vmatpush1.msra.mxu0 %v2183
        %2220 = vmatprep.subr.mxu0 0.0
        %2221 = vmatpush2.msra.mxu0 0.0
        %2222 = vmatprep.subr.mxu0 0.0
        %2223 = vmatpush2.msra.mxu0 0.0
        %2224 = vmatprep.subr.mxu0 0.0
        %2225 = vmatpush2.msra.mxu0 0.0
        %2226 = vmatprep.subr.mxu0 0.0
        %2227 = vmatpush2.msra.mxu0 0.0
        %2228 = vmatprep.subr.mxu0 0.0
        %2229 = vmatpush2.msra.mxu0 0.0
        %2230 = vmatprep.subr.mxu0 0.0
        %2231 = vmatpush2.msra.mxu0 0.0
        %2232 = vmatprep.subr.mxu0 0.0
        %2233 = vmatpush2.msra.mxu0 0.0
        %2234 = vmatprep.subr.mxu0 0.0
        %2235 = vmatpush2.msra.mxu0 0.0
        %2236 = vmatprep.subr.mxu0 0.0
        %2237 = vmatpush2.msra.mxu0 0.0
        %2238 = vmatprep.subr.mxu0 0.0
        %2239 = vmatpush2.msra.mxu0 0.0
        %2240 = vmatprep.subr.mxu0 0.0
        %2241 = vmatpush2.msra.mxu0 0.0
        %2242 = vmatprep.subr.mxu0 0.0
        %2243 = vmatpush2.msra.mxu0 0.0
        %2244 = vmatprep.subr.mxu0 0.0
        %2245 = vmatpush2.msra.mxu0 0.0
        %2246 = vmatprep.subr.mxu0 0.0
        %2247 = vmatpush2.msra.mxu0 0.0
        %2248 = vmatprep.subr.mxu0 0.0
        %2249 = vmatpush2.msra.mxu0 0.0
        %2250 = vmatprep.subr.mxu0 0.0
        %2251 = vmatpush2.msra.mxu0 0.0
        %2252 = vmatprep.mubr.f32.mxu0 0.0
        %2253 = vmatmul.mubr.f32.gmra.mxu0 %v2186
        %v2254 = vpop.f32.mrf.mxu0
        %v2255 = vadd.f32 0.0, %v2254
        %v2256 = vpop.f32.mrf.mxu0
        %2257 = vdwg.mxu0
        %2258 = vrot.lane.b32.xlu0 %v1755, 104
        %v2259 = vpop.permute.xlu0 %2258
        %2260 = vrot.lane.b32.xlu0 %v1755, 72
        %v2261 = vpop.permute.xlu0 %2260
        %v2262 = vsel %vm682, %v2259, 0
        %v2264 = vsel %vm682, %v2261, 0
        %2266 = vmatprep.subr.mxu0 0.0
        %2267 = vmatpush1.xpose.msra.mxu0 0.0
        %2268 = vmatprep.subr.mxu0 0.0
        %2269 = vmatpush1.xpose.msra.mxu0 0.0
        %2270 = vmatprep.subr.mxu0 0.0
        %2271 = vmatpush1.xpose.msra.mxu0 0.0
        %2272 = vmatprep.subr.mxu0 0.0
        %2273 = vmatpush1.xpose.msra.mxu0 0.0
        %2274 = vmatprep.subr.mxu0 0.0
        %2275 = vmatpush1.xpose.msra.mxu0 0.0
        %2276 = vmatprep.subr.mxu0 0.0
        %2277 = vmatpush1.xpose.msra.mxu0 0.0
        %2278 = vmatprep.subr.mxu0 0.0
        %2279 = vmatpush1.xpose.msra.mxu0 0.0
        %2280 = vmatprep.subr.mxu0 0.0
        %2281 = vmatpush1.xpose.msra.mxu0 0.0
        %2282 = vmatprep.subr.mxu0 0.0
        %2283 = vmatpush1.xpose.msra.mxu0 0.0
        %2284 = vmatprep.subr.mxu0 0.0
        %2285 = vmatpush1.xpose.msra.mxu0 0.0
        %2286 = vmatprep.subr.mxu0 0.0
        %2287 = vmatpush1.xpose.msra.mxu0 0.0
        %2288 = vmatprep.subr.mxu0 0.0
        %2289 = vmatpush1.xpose.msra.mxu0 0.0
        %2290 = vmatprep.subr.mxu0 0.0
        %2291 = vmatpush1.xpose.msra.mxu0 0.0
        %2292 = vmatprep.subr.mxu0 0.0
        %2293 = vmatpush1.xpose.msra.mxu0 0.0
        %2294 = vmatprep.subr.mxu0 0.0
        %2295 = vmatpush1.xpose.msra.mxu0 0.0
        %2296 = vmatprep.subr.mxu0 0.0
        %2297 = vmatpush1.xpose.msra.mxu0 %v2264
        %2298 = vmatprep.subr.mxu0 0.0
        %2299 = vmatpush2.xpose.msra.mxu0 0.0
        %2300 = vmatprep.subr.mxu0 0.0
        %2301 = vmatpush2.xpose.msra.mxu0 0.0
        %2302 = vmatprep.subr.mxu0 0.0
        %2303 = vmatpush2.xpose.msra.mxu0 0.0
        %2304 = vmatprep.subr.mxu0 0.0
        %2305 = vmatpush2.xpose.msra.mxu0 0.0
        %2306 = vmatprep.subr.mxu0 0.0
        %2307 = vmatpush2.xpose.msra.mxu0 0.0
        %2308 = vmatprep.subr.mxu0 0.0
        %2309 = vmatpush2.xpose.msra.mxu0 0.0
        %2310 = vmatprep.subr.mxu0 0.0
        %2311 = vmatpush2.xpose.msra.mxu0 0.0
        %2312 = vmatprep.subr.mxu0 0.0
        %2313 = vmatpush2.xpose.msra.mxu0 0.0
        %2314 = vmatprep.subr.mxu0 0.0
        %2315 = vmatpush2.xpose.msra.mxu0 0.0
        %2316 = vmatprep.subr.mxu0 0.0
        %2317 = vmatpush2.xpose.msra.mxu0 0.0
        %2318 = vmatprep.subr.mxu0 0.0
        %2319 = vmatpush2.xpose.msra.mxu0 0.0
        %2320 = vmatprep.subr.mxu0 0.0
        %2321 = vmatpush2.xpose.msra.mxu0 0.0
        %2322 = vmatprep.subr.mxu0 0.0
        %2323 = vmatpush2.xpose.msra.mxu0 0.0
        %2324 = vmatprep.subr.mxu0 0.0
        %2325 = vmatpush2.xpose.msra.mxu0 0.0
        %2326 = vmatprep.subr.mxu0 0.0
        %2327 = vmatpush2.xpose.msra.mxu0 0.0
        %2328 = vmatprep.subr.mxu0 0.0
        %2329 = vmatpush2.xpose.msra.mxu0 0.0
        %2330 = vmatprep.mubr.f32.mxu0 0.0
        %2331 = vmatmul.mubr.f32.gmra.mxu0 %v2262
        %v2332 = vpop.f32.mrf.mxu0
        %v2333 = vadd.f32 0.0, %v2332
        %v2334 = vpop.f32.mrf.mxu0
        %2335 = vdwg.mxu0
        %v2336 = vmul.f32 %v2333, 0.35355338
        %v2337 = vadd.f32 %v2336, %v568
        %v2338 = vsel %vm682, %v2337, -inf
        %2339 = vmax.xlane.f32.xlu0 %v2338
        %v2340 = vpop.xlane.xlu0 %2339
        %v2341 = vsub.f32 %v2337, %v2340
        %v2342 = vmul.f32 %v2341, 1.442695
        %v2343 = vpow.pop %v2342
        %v2344 = vsel %vm682, %v2343, 0.0
        %2345 = vadd.xlane.f32.xlu0 %v2344
        %v2346 = vpop.xlane.xlu0 %2345
        %v2347 = vrcp.pop %v2346
        %v2348 = vmul.f32 %v2343, %v2347
        %2349 = vrot.lane.b32.xlu0 %v1755, 40
        %v2350 = vpop.permute.xlu0 %2349
        %v2353 = vsel %vm682, %v2348, 0
        %2355 = vmatprep.subr.mxu0 0.0
        %2356 = vmatpush1.msra.mxu0 0.0
        %2357 = vmatprep.subr.mxu0 0.0
        %2358 = vmatpush1.msra.mxu0 0.0
        %2359 = vmatprep.subr.mxu0 0.0
        %2360 = vmatpush1.msra.mxu0 0.0
        %2361 = vmatprep.subr.mxu0 0.0
        %2362 = vmatpush1.msra.mxu0 0.0
        %2363 = vmatprep.subr.mxu0 0.0
        %2364 = vmatpush1.msra.mxu0 0.0
        %2365 = vmatprep.subr.mxu0 0.0
        %2366 = vmatpush1.msra.mxu0 0.0
        %2367 = vmatprep.subr.mxu0 0.0
        %2368 = vmatpush1.msra.mxu0 0.0
        %2369 = vmatprep.subr.mxu0 0.0
        %2370 = vmatpush1.msra.mxu0 0.0
        %2371 = vmatprep.subr.mxu0 0.0
        %2372 = vmatpush1.msra.mxu0 0.0
        %2373 = vmatprep.subr.mxu0 0.0
        %2374 = vmatpush1.msra.mxu0 0.0
        %2375 = vmatprep.subr.mxu0 0.0
        %2376 = vmatpush1.msra.mxu0 0.0
        %2377 = vmatprep.subr.mxu0 0.0
        %2378 = vmatpush1.msra.mxu0 0.0
        %2379 = vmatprep.subr.mxu0 0.0
        %2380 = vmatpush1.msra.mxu0 0.0
        %2381 = vmatprep.subr.mxu0 0.0
        %2382 = vmatpush1.msra.mxu0 0.0
        %2383 = vmatprep.subr.mxu0 0.0
        %2384 = vmatpush1.msra.mxu0 0.0
        %2385 = vmatprep.subr.mxu0 0.0
        %2386 = vmatpush1.msra.mxu0 %v2350
        %2387 = vmatprep.subr.mxu0 0.0
        %2388 = vmatpush2.msra.mxu0 0.0
        %2389 = vmatprep.subr.mxu0 0.0
        %2390 = vmatpush2.msra.mxu0 0.0
        %2391 = vmatprep.subr.mxu0 0.0
        %2392 = vmatpush2.msra.mxu0 0.0
        %2393 = vmatprep.subr.mxu0 0.0
        %2394 = vmatpush2.msra.mxu0 0.0
        %2395 = vmatprep.subr.mxu0 0.0
        %2396 = vmatpush2.msra.mxu0 0.0
        %2397 = vmatprep.subr.mxu0 0.0
        %2398 = vmatpush2.msra.mxu0 0.0
        %2399 = vmatprep.subr.mxu0 0.0
        %2400 = vmatpush2.msra.mxu0 0.0
        %2401 = vmatprep.subr.mxu0 0.0
        %2402 = vmatpush2.msra.mxu0 0.0
        %2403 = vmatprep.subr.mxu0 0.0
        %2404 = vmatpush2.msra.mxu0 0.0
        %2405 = vmatprep.subr.mxu0 0.0
        %2406 = vmatpush2.msra.mxu0 0.0
        %2407 = vmatprep.subr.mxu0 0.0
        %2408 = vmatpush2.msra.mxu0 0.0
        %2409 = vmatprep.subr.mxu0 0.0
        %2410 = vmatpush2.msra.mxu0 0.0
        %2411 = vmatprep.subr.mxu0 0.0
        %2412 = vmatpush2.msra.mxu0 0.0
        %2413 = vmatprep.subr.mxu0 0.0
        %2414 = vmatpush2.msra.mxu0 0.0
        %2415 = vmatprep.subr.mxu0 0.0
        %2416 = vmatpush2.msra.mxu0 0.0
        %2417 = vmatprep.subr.mxu0 0.0
        %2418 = vmatpush2.msra.mxu0 0.0
        %2419 = vmatprep.mubr.f32.mxu0 0.0
        %2420 = vmatmul.mubr.f32.gmra.mxu0 %v2353
        %v2421 = vpop.f32.mrf.mxu0
        %v2422 = vadd.f32 0.0, %v2421
        %v2423 = vpop.f32.mrf.mxu0
        %2424 = vdwg.mxu0
        %2426 = vrot.lane.b32.xlu0 %v2088, 8
        %v2427 = vpop.permute.xlu0 %2426
        %2430 = vrot.lane.b32.xlu0 %v2255, 16
        %v2431 = vpop.permute.xlu0 %2430
        %2434 = vrot.lane.b32.xlu0 %v2422, 24
        %v2435 = vpop.permute.xlu0 %2434
        %v2437 = vsel %vm682, %v1921, %v2427
        %v2438 = vsel %vm1360, %v2437, %v2431
        %v2439 = vsel %vm1362, %v2438, %v2435
        %s2440 = scalar_lea.vmem %s5, 32
        %v2441 = vld [vmem:[%s2440] sm:$0xff]
        %v2442 = vld [vmem:[%s2440 + $0x8] sm:$0xff]
        %v2443 = vld [vmem:[%s2440 + $0x10] sm:$0xff]
        %v2444 = vld [vmem:[%s2440 + $0x18] sm:$0xff]
        %s2445 = scalar_lea.vmem [#allocation8], 1
        %v2446 = vld [vmem:[%s2445] sm:$0x1]
        %v2448 = vlaneseq
        %v2449 = vshrl.u32 %v2448, 7
        %v2450 = vsub.s32 0, %v2449
        %v2451 = vrot.slane %v2446, %v2450
        %v2454 = vsel %vm570, %v2439, 0
        %2456 = vmatprep.subr.mxu0 0.0
        %2457 = vmatpush1.msra.mxu0 0.0
        %2458 = vmatprep.subr.mxu0 0.0
        %2459 = vmatpush1.msra.mxu0 0.0
        %2460 = vmatprep.subr.mxu0 0.0
        %2461 = vmatpush1.msra.mxu0 0.0
        %2462 = vmatprep.subr.mxu0 0.0
        %2463 = vmatpush1.msra.mxu0 0.0
        %2464 = vmatprep.subr.mxu0 0.0
        %2465 = vmatpush1.msra.mxu0 0.0
        %2466 = vmatprep.subr.mxu0 0.0
        %2467 = vmatpush1.msra.mxu0 0.0
        %2468 = vmatprep.subr.mxu0 0.0
        %2469 = vmatpush1.msra.mxu0 0.0
        %2470 = vmatprep.subr.mxu0 0.0
        %2471 = vmatpush1.msra.mxu0 0.0
        %2472 = vmatprep.subr.mxu0 0.0
        %2473 = vmatpush1.msra.mxu0 0.0
        %2474 = vmatprep.subr.mxu0 0.0
        %2475 = vmatpush1.msra.mxu0 0.0
        %2476 = vmatprep.subr.mxu0 0.0
        %2477 = vmatpush1.msra.mxu0 0.0
        %2478 = vmatprep.subr.mxu0 0.0
        %2479 = vmatpush1.msra.mxu0 0.0
        %2480 = vmatprep.subr.mxu0 0.0
        %2481 = vmatpush1.msra.mxu0 %v2444
        %2482 = vmatprep.subr.mxu0 0.0
        %2483 = vmatpush1.msra.mxu0 %v2443
        %2484 = vmatprep.subr.mxu0 0.0
        %2485 = vmatpush1.msra.mxu0 %v2442
        %2486 = vmatprep.subr.mxu0 0.0
        %2487 = vmatpush1.msra.mxu0 %v2441
        %2488 = vmatprep.subr.mxu0 0.0
        %2489 = vmatpush2.msra.mxu0 0.0
        %2490 = vmatprep.subr.mxu0 0.0
        %2491 = vmatpush2.msra.mxu0 0.0
        %2492 = vmatprep.subr.mxu0 0.0
        %2493 = vmatpush2.msra.mxu0 0.0
        %2494 = vmatprep.subr.mxu0 0.0
        %2495 = vmatpush2.msra.mxu0 0.0
        %2496 = vmatprep.subr.mxu0 0.0
        %2497 = vmatpush2.msra.mxu0 0.0
        %2498 = vmatprep.subr.mxu0 0.0
        %2499 = vmatpush2.msra.mxu0 0.0
        %2500 = vmatprep.subr.mxu0 0.0
        %2501 = vmatpush2.msra.mxu0 0.0
        %2502 = vmatprep.subr.mxu0 0.0
        %2503 = vmatpush2.msra.mxu0 0.0
        %2504 = vmatprep.subr.mxu0 0.0
        %2505 = vmatpush2.msra.mxu0 0.0
        %2506 = vmatprep.subr.mxu0 0.0
        %2507 = vmatpush2.msra.mxu0 0.0
        %2508 = vmatprep.subr.mxu0 0.0
        %2509 = vmatpush2.msra.mxu0 0.0
        %2510 = vmatprep.subr.mxu0 0.0
        %2511 = vmatpush2.msra.mxu0 0.0
        %2512 = vmatprep.subr.mxu0 0.0
        %2513 = vmatpush2.msra.mxu0 0.0
        %2514 = vmatprep.subr.mxu0 0.0
        %2515 = vmatpush2.msra.mxu0 0.0
        %2516 = vmatprep.subr.mxu0 0.0
        %2517 = vmatpush2.msra.mxu0 0.0
        %2518 = vmatprep.subr.mxu0 0.0
        %2519 = vmatpush2.msra.mxu0 0.0
        %2520 = vmatprep.mubr.f32.mxu0 0.0
        %2521 = vmatmul.mubr.f32.gmra.mxu0 %v2454
        %v2522 = vpop.f32.mrf.mxu0
        %v2523 = vadd.f32 %v2451, %v2522
        %v2524 = vpop.f32.mrf.mxu0
        %2525 = vdwg.mxu0
        %v2526 = vadd.f32 %v1646, %v2523
        %v2527 = vsel %vm570, %v2526, 0.0
        %2528 = vadd.xlane.f32.xlu0 %v2527
        %v2529 = vpop.xlane.xlu0 %2528
        %v2530 = vmul.f32 %v2529, %v574
        %v2531 = vsub.f32 %v2526, %v2530
        %v2532 = vmul.f32 %v2531, %v2531
        %v2533 = vsel %vm570, %v2532, 0.0
        %2534 = vadd.xlane.f32.xlu0 %v2533
        %v2535 = vpop.xlane.xlu0 %2534
        %v2536 = vmul.f32 %v2535, %v574
        %v2537 = vlaneseq
        %v2538 = vshrl.u32 %v2537, 7
        %v2539 = vsub.s32 2, %v2538
        %v2540 = vrot.slane %v1648, %v2539
        %v2541 = vmul.f32 %v2540, %v2531
        %v2542 = vadd.f32 %v2536, 1e-06
        %v2543 = vrsqrt.pop %v2542
        %v2544 = vmul.f32 %v2541, %v2543
        %v2545 = vlaneseq
        %v2546 = vshrl.u32 %v2545, 7
        %v2547 = vsub.s32 3, %v2546
        %v2548 = vrot.slane %v1648, %v2547
        %v2549 = vadd.f32 %v2544, %v2548
        %s2550 = scalar_lea.vmem %s8, 32
        %v2551 = vld [vmem:[%s2550] sm:$0xff]
        %v2552 = vld [vmem:[%s2550 + $0x8] sm:$0xff]
        %v2553 = vld [vmem:[%s2550 + $0x10] sm:$0xff]
        %v2554 = vld [vmem:[%s2550 + $0x18] sm:$0xff]
        %s2555 = scalar_lea.vmem %s9, 1
        %v2556 = vld [vmem:[%s2555] sm:$0x1]
        %v2558 = vlaneseq
        %v2559 = vshrl.u32 %v2558, 7
        %v2560 = vsub.s32 0, %v2559
        %v2561 = vrot.slane %v2556, %v2560
        %v2564 = vsel %vm570, %v2549, 0
        %2566 = vmatprep.subr.mxu0 0.0
        %2567 = vmatpush1.msra.mxu0 0.0
        %2568 = vmatprep.subr.mxu0 0.0
        %2569 = vmatpush1.msra.mxu0 0.0
        %2570 = vmatprep.subr.mxu0 0.0
        %2571 = vmatpush1.msra.mxu0 0.0
        %2572 = vmatprep.subr.mxu0 0.0
        %2573 = vmatpush1.msra.mxu0 0.0
        %2574 = vmatprep.subr.mxu0 0.0
        %2575 = vmatpush1.msra.mxu0 0.0
        %2576 = vmatprep.subr.mxu0 0.0
        %2577 = vmatpush1.msra.mxu0 0.0
        %2578 = vmatprep.subr.mxu0 0.0
        %2579 = vmatpush1.msra.mxu0 0.0
        %2580 = vmatprep.subr.mxu0 0.0
        %2581 = vmatpush1.msra.mxu0 0.0
        %2582 = vmatprep.subr.mxu0 0.0
        %2583 = vmatpush1.msra.mxu0 0.0
        %2584 = vmatprep.subr.mxu0 0.0
        %2585 = vmatpush1.msra.mxu0 0.0
        %2586 = vmatprep.subr.mxu0 0.0
        %2587 = vmatpush1.msra.mxu0 0.0
        %2588 = vmatprep.subr.mxu0 0.0
        %2589 = vmatpush1.msra.mxu0 0.0
        %2590 = vmatprep.subr.mxu0 0.0
        %2591 = vmatpush1.msra.mxu0 %v2554
        %2592 = vmatprep.subr.mxu0 0.0
        %2593 = vmatpush1.msra.mxu0 %v2553
        %2594 = vmatprep.subr.mxu0 0.0
        %2595 = vmatpush1.msra.mxu0 %v2552
        %2596 = vmatprep.subr.mxu0 0.0
        %2597 = vmatpush1.msra.mxu0 %v2551
        %2598 = vmatprep.subr.mxu0 0.0
        %2599 = vmatpush2.msra.mxu0 0.0
        %2600 = vmatprep.subr.mxu0 0.0
        %2601 = vmatpush2.msra.mxu0 0.0
        %2602 = vmatprep.subr.mxu0 0.0
        %2603 = vmatpush2.msra.mxu0 0.0
        %2604 = vmatprep.subr.mxu0 0.0
        %2605 = vmatpush2.msra.mxu0 0.0
        %2606 = vmatprep.subr.mxu0 0.0
        %2607 = vmatpush2.msra.mxu0 0.0
        %2608 = vmatprep.subr.mxu0 0.0
        %2609 = vmatpush2.msra.mxu0 0.0
        %2610 = vmatprep.subr.mxu0 0.0
        %2611 = vmatpush2.msra.mxu0 0.0
        %2612 = vmatprep.subr.mxu0 0.0
        %2613 = vmatpush2.msra.mxu0 0.0
        %2614 = vmatprep.subr.mxu0 0.0
        %2615 = vmatpush2.msra.mxu0 0.0
        %2616 = vmatprep.subr.mxu0 0.0
        %2617 = vmatpush2.msra.mxu0 0.0
        %2618 = vmatprep.subr.mxu0 0.0
        %2619 = vmatpush2.msra.mxu0 0.0
        %2620 = vmatprep.subr.mxu0 0.0
        %2621 = vmatpush2.msra.mxu0 0.0
        %2622 = vmatprep.subr.mxu0 0.0
        %2623 = vmatpush2.msra.mxu0 0.0
        %2624 = vmatprep.subr.mxu0 0.0
        %2625 = vmatpush2.msra.mxu0 0.0
        %2626 = vmatprep.subr.mxu0 0.0
        %2627 = vmatpush2.msra.mxu0 0.0
        %2628 = vmatprep.subr.mxu0 0.0
        %2629 = vmatpush2.msra.mxu0 0.0
        %2630 = vmatprep.mubr.f32.mxu0 0.0
        %2631 = vmatmul.mubr.f32.gmra.mxu0 %v2564
        %v2632 = vpop.f32.mrf.mxu0
        %v2633 = vadd.f32 %v2561, %v2632
        %v2634 = vpop.f32.mrf.mxu0
        %2635 = vdwg.mxu0
        %v2636 = vmax.f32 %v2633, 0.0
        %s2637 = scalar_lea.vmem %s10, 64
        %v2638 = vld [vmem:[%s2637] sm:$0xff]
        %v2639 = vld [vmem:[%s2637 + $0x8] sm:$0xff]
        %v2640 = vld [vmem:[%s2637 + $0x10] sm:$0xff]
        %v2641 = vld [vmem:[%s2637 + $0x18] sm:$0xff]
        %v2642 = vld [vmem:[%s2637 + $0x20] sm:$0xff]
        %v2643 = vld [vmem:[%s2637 + $0x28] sm:$0xff]
        %v2644 = vld [vmem:[%s2637 + $0x30] sm:$0xff]
        %v2645 = vld [vmem:[%s2637 + $0x38] sm:$0xff]
        %s2646 = scalar_lea.vmem %s11, 1
        %v2647 = vld [vmem:[%s2646] sm:$0x1]
        %v2649 = vlaneseq
        %v2650 = vshrl.u32 %v2649, 7
        %v2651 = vsub.s32 0, %v2650
        %v2652 = vrot.slane %v2647, %v2651
        %v2655 = vsel %vm1572, %v2636, 0
        %2657 = vmatprep.subr.mxu0 0.0
        %2658 = vmatpush1.msra.mxu0 0.0
        %2659 = vmatprep.subr.mxu0 0.0
        %2660 = vmatpush1.msra.mxu0 0.0
        %2661 = vmatprep.subr.mxu0 0.0
        %2662 = vmatpush1.msra.mxu0 0.0
        %2663 = vmatprep.subr.mxu0 0.0
        %2664 = vmatpush1.msra.mxu0 0.0
        %2665 = vmatprep.subr.mxu0 0.0
        %2666 = vmatpush1.msra.mxu0 0.0
        %2667 = vmatprep.subr.mxu0 0.0
        %2668 = vmatpush1.msra.mxu0 0.0
        %2669 = vmatprep.subr.mxu0 0.0
        %2670 = vmatpush1.msra.mxu0 0.0
        %2671 = vmatprep.subr.mxu0 0.0
        %2672 = vmatpush1.msra.mxu0 0.0
        %2673 = vmatprep.subr.mxu0 0.0
        %2674 = vmatpush1.msra.mxu0 %v2645
        %2675 = vmatprep.subr.mxu0 0.0
        %2676 = vmatpush1.msra.mxu0 %v2644
        %2677 = vmatprep.subr.mxu0 0.0
        %2678 = vmatpush1.msra.mxu0 %v2643
        %2679 = vmatprep.subr.mxu0 0.0
        %2680 = vmatpush1.msra.mxu0 %v2642
        %2681 = vmatprep.subr.mxu0 0.0
        %2682 = vmatpush1.msra.mxu0 %v2641
        %2683 = vmatprep.subr.mxu0 0.0
        %2684 = vmatpush1.msra.mxu0 %v2640
        %2685 = vmatprep.subr.mxu0 0.0
        %2686 = vmatpush1.msra.mxu0 %v2639
        %2687 = vmatprep.subr.mxu0 0.0
        %2688 = vmatpush1.msra.mxu0 %v2638
        %2689 = vmatprep.subr.mxu0 0.0
        %2690 = vmatpush2.msra.mxu0 0.0
        %2691 = vmatprep.subr.mxu0 0.0
        %2692 = vmatpush2.msra.mxu0 0.0
        %2693 = vmatprep.subr.mxu0 0.0
        %2694 = vmatpush2.msra.mxu0 0.0
        %2695 = vmatprep.subr.mxu0 0.0
        %2696 = vmatpush2.msra.mxu0 0.0
        %2697 = vmatprep.subr.mxu0 0.0
        %2698 = vmatpush2.msra.mxu0 0.0
        %2699 = vmatprep.subr.mxu0 0.0
        %2700 = vmatpush2.msra.mxu0 0.0
        %2701 = vmatprep.subr.mxu0 0.0
        %2702 = vmatpush2.msra.mxu0 0.0
        %2703 = vmatprep.subr.mxu0 0.0
        %2704 = vmatpush2.msra.mxu0 0.0
        %2705 = vmatprep.subr.mxu0 0.0
        %2706 = vmatpush2.msra.mxu0 0.0
        %2707 = vmatprep.subr.mxu0 0.0
        %2708 = vmatpush2.msra.mxu0 0.0
        %2709 = vmatprep.subr.mxu0 0.0
        %2710 = vmatpush2.msra.mxu0 0.0
        %2711 = vmatprep.subr.mxu0 0.0
        %2712 = vmatpush2.msra.mxu0 0.0
        %2713 = vmatprep.subr.mxu0 0.0
        %2714 = vmatpush2.msra.mxu0 0.0
        %2715 = vmatprep.subr.mxu0 0.0
        %2716 = vmatpush2.msra.mxu0 0.0
        %2717 = vmatprep.subr.mxu0 0.0
        %2718 = vmatpush2.msra.mxu0 0.0
        %2719 = vmatprep.subr.mxu0 0.0
        %2720 = vmatpush2.msra.mxu0 0.0
        %2721 = vmatprep.mubr.f32.mxu0 0.0
        %2722 = vmatmul.mubr.f32.gmra.mxu0 %v2655
        %v2723 = vpop.f32.mrf.mxu0
        %v2724 = vadd.f32 %v2652, %v2723
        %v2725 = vpop.f32.mrf.mxu0
        %2726 = vdwg.mxu0
        %v2727 = vadd.f32 %v2526, %v2724
        %v2728 = vld [vmem:[%s12] sm:$0x3]
        %v2729 = vsel %vm570, %v2727, 0.0
        %2730 = vadd.xlane.f32.xlu0 %v2729
        %v2731 = vpop.xlane.xlu0 %2730
        %v2732 = vmul.f32 %v2731, %v574
        %v2733 = vsub.f32 %v2727, %v2732
        %v2734 = vmul.f32 %v2733, %v2733
        %v2735 = vsel %vm570, %v2734, 0.0
        %2736 = vadd.xlane.f32.xlu0 %v2735
        %v2737 = vpop.xlane.xlu0 %2736
        %v2738 = vmul.f32 %v2737, %v574
        %v2739 = vlaneseq
        %v2740 = vshrl.u32 %v2739, 7
        %v2741 = vsub.s32 0, %v2740
        %v2742 = vrot.slane %v2728, %v2741
        %v2743 = vmul.f32 %v2742, %v2733
        %v2744 = vadd.f32 %v2738, 1e-06
        %v2745 = vrsqrt.pop %v2744
        %v2746 = vmul.f32 %v2743, %v2745
        %v2747 = vlaneseq
        %v2748 = vshrl.u32 %v2747, 7
        %v2749 = vsub.s32 1, %v2748
        %v2750 = vrot.slane %v2728, %v2749
        %v2751 = vadd.f32 %v2746, %v2750
        %v2752 = vld [vmem:[#allocation10] sm:$0xff]
        %v2753 = vld [vmem:[#allocation10 + $0x8] sm:$0xff]
        %v2754 = vld [vmem:[#allocation10 + $0x10] sm:$0xff]
        %v2755 = vld [vmem:[#allocation10 + $0x18] sm:$0xff]
        %v2756 = vld [vmem:[%s14] sm:$0x1]
        %v2758 = vlaneseq
        %v2759 = vshrl.u32 %v2758, 7
        %v2760 = vsub.s32 0, %v2759
        %v2761 = vrot.slane %v2756, %v2760
        %v2764 = vsel %vm570, %v2751, 0
        %2766 = vmatprep.subr.mxu0 0.0
        %2767 = vmatpush1.msra.mxu0 0.0
        %2768 = vmatprep.subr.mxu0 0.0
        %2769 = vmatpush1.msra.mxu0 0.0
        %2770 = vmatprep.subr.mxu0 0.0
        %2771 = vmatpush1.msra.mxu0 0.0
        %2772 = vmatprep.subr.mxu0 0.0
        %2773 = vmatpush1.msra.mxu0 0.0
        %2774 = vmatprep.subr.mxu0 0.0
        %2775 = vmatpush1.msra.mxu0 0.0
        %2776 = vmatprep.subr.mxu0 0.0
        %2777 = vmatpush1.msra.mxu0 0.0
        %2778 = vmatprep.subr.mxu0 0.0
        %2779 = vmatpush1.msra.mxu0 0.0
        %2780 = vmatprep.subr.mxu0 0.0
        %2781 = vmatpush1.msra.mxu0 0.0
        %2782 = vmatprep.subr.mxu0 0.0
        %2783 = vmatpush1.msra.mxu0 0.0
        %2784 = vmatprep.subr.mxu0 0.0
        %2785 = vmatpush1.msra.mxu0 0.0
        %2786 = vmatprep.subr.mxu0 0.0
        %2787 = vmatpush1.msra.mxu0 0.0
        %2788 = vmatprep.subr.mxu0 0.0
        %2789 = vmatpush1.msra.mxu0 0.0
        %2790 = vmatprep.subr.mxu0 0.0
        %2791 = vmatpush1.msra.mxu0 %v2755
        %2792 = vmatprep.subr.mxu0 0.0
        %2793 = vmatpush1.msra.mxu0 %v2754
        %2794 = vmatprep.subr.mxu0 0.0
        %2795 = vmatpush1.msra.mxu0 %v2753
        %2796 = vmatprep.subr.mxu0 0.0
        %2797 = vmatpush1.msra.mxu0 %v2752
        %2798 = vmatprep.subr.mxu0 0.0
        %2799 = vmatpush2.msra.mxu0 0.0
        %2800 = vmatprep.subr.mxu0 0.0
        %2801 = vmatpush2.msra.mxu0 0.0
        %2802 = vmatprep.subr.mxu0 0.0
        %2803 = vmatpush2.msra.mxu0 0.0
        %2804 = vmatprep.subr.mxu0 0.0
        %2805 = vmatpush2.msra.mxu0 0.0
        %2806 = vmatprep.subr.mxu0 0.0
        %2807 = vmatpush2.msra.mxu0 0.0
        %2808 = vmatprep.subr.mxu0 0.0
        %2809 = vmatpush2.msra.mxu0 0.0
        %2810 = vmatprep.subr.mxu0 0.0
        %2811 = vmatpush2.msra.mxu0 0.0
        %2812 = vmatprep.subr.mxu0 0.0
        %2813 = vmatpush2.msra.mxu0 0.0
        %2814 = vmatprep.subr.mxu0 0.0
        %2815 = vmatpush2.msra.mxu0 0.0
        %2816 = vmatprep.subr.mxu0 0.0
        %2817 = vmatpush2.msra.mxu0 0.0
        %2818 = vmatprep.subr.mxu0 0.0
        %2819 = vmatpush2.msra.mxu0 0.0
        %2820 = vmatprep.subr.mxu0 0.0
        %2821 = vmatpush2.msra.mxu0 0.0
        %2822 = vmatprep.subr.mxu0 0.0
        %2823 = vmatpush2.msra.mxu0 0.0
        %2824 = vmatprep.subr.mxu0 0.0
        %2825 = vmatpush2.msra.mxu0 0.0
        %2826 = vmatprep.subr.mxu0 0.0
        %2827 = vmatpush2.msra.mxu0 0.0
        %2828 = vmatprep.subr.mxu0 0.0
        %2829 = vmatpush2.msra.mxu0 0.0
        %2830 = vmatprep.mubr.f32.mxu0 0.0
        %2831 = vmatmul.mubr.f32.gmra.mxu0 %v2764
        %v2832 = vpop.f32.mrf.mxu0
        %v2833 = vadd.f32 %v2761, %v2832
        %v2834 = vpop.f32.mrf.mxu0
        %2835 = vdwg.mxu0
        %v2836 = vsel %vm1572, %v2833, -inf
        %2837 = vmax.xlane.f32.xlu0 %v2836
        %v2838 = vpop.xlane.xlu0 %2837
        %v2839 = vsub.f32 %v2833, %v2838
        %v2840 = vmul.f32 %v2839, 1.442695
        %v2841 = vpow.pop %v2840
        %v2842 = vsel %vm1572, %v2841, 0.0
        %2843 = vadd.xlane.f32.xlu0 %v2842
        %v2844 = vpop.xlane.xlu0 %2843
        %v2845 = vlog2.pop %v2844
        %v2846 = vmul.f32 %v2845, 0.6931472
        %v2847 = vsub.f32 %v2839, %v2846
        %2848 = vst.msk [vmem:[%s563] sm:$0xff] %vm1572, %v2847
        %s2849 = sand.u32 %s362, 1
        %s2850 = scalar_lea.sflag [#allocation4], %s2849
        %s2851 = sand.u32 %s362, 1
        %s2852 = smul.addr %s2851, 8
        %s2853 = scalar_lea.vmem [#allocation11], %s2852
        // Predicated region
        $region101: #{tpu_custom_call.1} parent=79 // pred_check
          %p2854 = pneg %p372
        $region102: #{tpu_custom_call.1} parent=79 // pred_check_branch
          %2856 = sbr.rel (%p2854) target = $region104
        $region103: #{tpu_custom_call.1} parent=79 // pred_region
          %s2858 = ssub.s32 128, 128
          %2859 = vsyncadd %s2850, %s2858
          %s2860 = smul.addr %s34, 128
          %s2861 = scalar_lea.hbm %s15, %s2860
          %s2863 = sshll.u32 %s2853, 4
          %s2864 = int_to_ptr.vmem [resolvable:$true] %s2863
          %2866 = dma.vmem_to_hbm [thread:$0]  %s2864, 128, %s2861, %s2850
        $region104: #{tpu_custom_call.1} parent=79 // pred_fallthru
          _
      $region80: #{tpu_custom_call.1} parent=5 // pred_fallthru
        _
      %p2867 = scmp.le.s32.totalorder 2, %s29
      // Predicated region
      $region105: #{tpu_custom_call.1} parent=5 // pred_check
        %p2868 = pneg %p2867
      $region106: #{tpu_custom_call.1} parent=5 // pred_check_branch
        %2870 = sbr.rel (%p2868) target = $region108
      $region107: #{tpu_custom_call.1} parent=5 // pred_region
        %s2871 = ssub.s32 %s29, 2
        // Predicated region
        $region109: #{tpu_custom_call.1} parent=107 // pred_check
          %p2872 = pneg %p378
        $region110: #{tpu_custom_call.1} parent=107 // pred_check_branch
          %2874 = sbr.rel (%p2872) target = $region112
        $region111: #{tpu_custom_call.1} parent=107 // pred_region
          %s2875 = sand.u32 %s363, 1
          %s2876 = scalar_lea.sflag [#allocation4], %s2875
          %s2877 = sand.u32 %s363, 1
          %s2878 = smul.addr %s2877, 8
          %s2879 = scalar_lea.vmem [#allocation11], %s2878
          %2880 = dma.done %s2876, 128
        $region112: #{tpu_custom_call.1} parent=107 // pred_fallthru
          _
      $region108: #{tpu_custom_call.1} parent=5 // pred_fallthru
        _
    $region6: #{tpu_custom_call.1} parent=1 // loop_footer
      %s33 = sadd.s32 1, %s29
    $region7: #{tpu_custom_call.1} parent=1 // loop_footer_branch
      %28 = sbr.rel target = $region3
    $region8: #{tpu_custom_call.1} parent=1 // loop_exit
      _
    %2881 = vsyncpa [#allocation3], 1
    %s2882 = scalar_lea.sflag [#allocation3], 1
    %2883 = vsyncpa %s2882, 1
    %2884 = vsyncpa [#allocation6], 1
    %2885 = vsyncpa [#allocation9], 1
    %2886 = vsyncpa [#allocation4], 1
    %s2887 = scalar_lea.sflag [#allocation4], 1
    %2888 = vsyncpa %s2887, 1

</llo_original>
